<compile_context>
chip_gen: v7x
topology: tpu7x:2x2x1
jax: 0.10.0
libtpu: 0.0.40
codegen_flags: <defaults>
</compile_context>

<pallas_src>
import jax
import jax.numpy as jnp
from jax.experimental import pallas as pl
from jax.experimental.pallas import tpu as pltpu

# ----------------------- scaled-down config (structurally faithful) -----------------
B = 2              # batch
T = 8              # text tokens  (MAX_QUESTION_LEN=17 scaled down)
V = 4              # visual tokens
V_PAD = 8          # visual tokens padded to a full sublane group
S_PAD = T + V_PAD  # padded per-batch sequence length (16)
BS = B * S_PAD     # total padded token rows (32)
C_VIS = 32         # visual_embedding_dim (1984 scaled down)
H = 64             # hidden_size (768 scaled down)
N_HEADS = 4
D_HEAD = H // N_HEADS
FFN = 128          # intermediate_size
N_LAYERS = 2
VOCAB = 100
EMB_SIZE = 32      # emb_size (512 scaled down)
NUM_CLASSES = 16   # num_classes (178 scaled down)
LN_EPS = 1e-12
NEG = -1e9

OUT_ROWS = 8
OUT_LANES = 128

VMEM = pl.BlockSpec(memory_space=pltpu.MemorySpace.VMEM)


# ----------------------------- fused Pallas kernel -----------------------------------
def _ln(x, g, b):
    """LayerNorm over the last (lane) dim; all math stays f32 on the VPU."""
    mean = jnp.mean(x, axis=-1, keepdims=True)
    var = jnp.mean((x - mean) ** 2, axis=-1, keepdims=True)
    return (x - mean) * jax.lax.rsqrt(var + LN_EPS) * g + b


def _fused_forward_kernel(
    # inputs (27)
    txt_in_ref, vis_in_ref, mask_ref,
    vis_proj_w_ref, vis_proj_b_ref, emb_ln_g_ref, emb_ln_b_ref,
    wqkv_ref, bqkv_ref, wo_ref, bo_ref, ln1g_ref, ln1b_ref,
    w1_ref, b1_ref, w2_ref, b2_ref, ln2g_ref, ln2b_ref,
    pool_w_ref, pool_b_ref, lt_w_ref, lt_b_ref, li_w_ref, li_b_ref,
    cls_w_ref, cls_b_ref,
    # output (1): packed (OUT_ROWS, OUT_LANES) slab
    out_ref,
):
    bf16 = jnp.bfloat16
    mask = mask_ref[...]                                                     # (BS, BS) f32

    # ---- VisualBertEmbeddings ----
    txt = _ln(txt_in_ref[...], emb_ln_g_ref[...], emb_ln_b_ref[...])        # (B*T, H) f32
    vis = jnp.dot(vis_in_ref[...], vis_proj_w_ref[...],
                  preferred_element_type=jnp.float32) + vis_proj_b_ref[...]  # (B*V_PAD, H)
    vis = _ln(vis, emb_ln_g_ref[...], emb_ln_b_ref[...])

    # interleave text + (padded) visual tokens per batch as a value: all pieces are
    # aligned 8-row groups, so this is a cheap in-register concat (no scratch store).
    pieces = []
    for b in range(B):
        pieces.append(txt[b * T:(b + 1) * T, :])
        pieces.append(vis[b * V_PAD:(b + 1) * V_PAD, :])
    hf = jnp.concatenate(pieces, axis=0)                                     # (BS, H) f32

    # ---- transformer encoder (fully unrolled, all weights resident in VMEM) ----
    # TODO(synk): switch to a layer grid axis + streamed weight BlockSpecs at real depth.
    for l in range(N_LAYERS):
        # fused QKV projection (1/sqrt(D_HEAD) folded into Q weights/bias), bf16 MXU
        qkv = jnp.dot(hf.astype(bf16), wqkv_ref[l],
                      preferred_element_type=jnp.float32) + bqkv_ref[l]      # (BS, 3H) f32
        q = qkv[:, 0:H].astype(bf16)
        k = qkv[:, H:2 * H].astype(bf16)
        v = qkv[:, 2 * H:3 * H].astype(bf16)

        # batch folded into one (BS, BS) score matmul per head; block-diagonal mask
        ctx_heads = []
        for hd in range(N_HEADS):
            c0 = hd * D_HEAD
            q_h = q[:, c0:c0 + D_HEAD]
            k_h = k[:, c0:c0 + D_HEAD]
            v_h = v[:, c0:c0 + D_HEAD]
            scores = jax.lax.dot_general(
                q_h, k_h, (((1,), (1,)), ((), ())),
                preferred_element_type=jnp.float32) + mask                   # (BS, BS) f32
            scores = scores - jnp.max(scores, axis=-1, keepdims=True)
            p = jnp.exp(scores)
            p = p * pl.reciprocal(jnp.sum(p, axis=-1, keepdims=True), approx=True)
            ctx_heads.append(jnp.dot(p.astype(bf16), v_h,
                                     preferred_element_type=jnp.float32))    # (BS, Dh)
        ctx = jnp.concatenate(ctx_heads, axis=-1)                            # (BS, H) f32

        # output projection + residual + LN1
        attn_out = jnp.dot(ctx.astype(bf16), wo_ref[l],
                           preferred_element_type=jnp.float32) + bo_ref[l]
        hf = _ln(attn_out + hf, ln1g_ref[l], ln1b_ref[l])

        # FFN + residual + LN2
        ff = jnp.dot(hf.astype(bf16), w1_ref[l],
                     preferred_element_type=jnp.float32) + b1_ref[l]
        # TODO(synk): HF BERT uses erf-gelu; tanh approximation used for robust lowering.
        ff = jax.nn.gelu(ff, approximate=True)
        ff = jnp.dot(ff.astype(bf16), w2_ref[l],
                     preferred_element_type=jnp.float32) + b2_ref[l]
        hf = _ln(ff + hf, ln2g_ref[l], ln2b_ref[l])

    # ---- CLS gather (in-register), pooler, projection heads, classifier ----
    cls_tok = jnp.concatenate([hf[b * S_PAD:b * S_PAD + 1, :] for b in range(B)],
                              axis=0)                                        # (B, H) f32
    cls16 = cls_tok.astype(bf16)

    pooled = jnp.tanh(jnp.dot(cls16, pool_w_ref[...],
                              preferred_element_type=jnp.float32) + pool_b_ref[...])
    text_emb = jnp.dot(cls16, lt_w_ref[...],
                       preferred_element_type=jnp.float32) + lt_b_ref[...]
    img_emb = jnp.dot(pooled.astype(bf16), li_w_ref[...],
                      preferred_element_type=jnp.float32) + li_b_ref[...]

    # classifier([img_emb, text_emb]) without an in-kernel concat of the inputs
    logits = (jnp.dot(img_emb.astype(bf16), cls_w_ref[0:EMB_SIZE, :],
                      preferred_element_type=jnp.float32)
              + jnp.dot(text_emb.astype(bf16), cls_w_ref[EMB_SIZE:2 * EMB_SIZE, :],
                        preferred_element_type=jnp.float32)
              + cls_b_ref[...])                                              # (B, NUM_CLASSES)

    # pack all three tiny outputs into one lane-dense (8, 128) slab -> single store
    pad_lanes = OUT_LANES - NUM_CLASSES - 2 * EMB_SIZE
    packed = jnp.concatenate(
        [logits, img_emb, text_emb, jnp.zeros((B, pad_lanes), jnp.float32)], axis=-1)
    packed = jnp.concatenate(
        [packed, jnp.zeros((OUT_ROWS - B, OUT_LANES), jnp.float32)], axis=0)
    out_ref[...] = packed


# --------------------------- parameter initialization -------------------------------
def _dense_params(key, fan_in, fan_out):
    w = jax.random.normal(key, (fan_in, fan_out), jnp.float32) * 0.02
    b = jnp.zeros((1, fan_out), jnp.float32)
    return w, b


def init_params(key):
    ks = iter(jax.random.split(key, 64))
    p = {}
    p["word_emb"] = jax.random.normal(next(ks), (VOCAB, H), jnp.float32) * 0.02
    p["pos_emb"] = jax.random.normal(next(ks), (T, H), jnp.float32) * 0.02
    p["tok_type_emb"] = jax.random.normal(next(ks), (2, H), jnp.float32) * 0.02
    p["emb_ln_g"] = jnp.ones((1, H), jnp.float32)
    p["emb_ln_b"] = jnp.zeros((1, H), jnp.float32)
    p["vis_proj_w"], p["vis_proj_b"] = _dense_params(next(ks), C_VIS, H)

    layers = []
    for _ in range(N_LAYERS):
        lp = {}
        lp["wq"], lp["bq"] = _dense_params(next(ks), H, H)
        lp["wk"], lp["bk"] = _dense_params(next(ks), H, H)
        lp["wv"], lp["bv"] = _dense_params(next(ks), H, H)
        lp["wo"], lp["bo"] = _dense_params(next(ks), H, H)
        lp["ln1_g"] = jnp.ones((1, H), jnp.float32)
        lp["ln1_b"] = jnp.zeros((1, H), jnp.float32)
        lp["w1"], lp["b1"] = _dense_params(next(ks), H, FFN)
        lp["w2"], lp["b2"] = _dense_params(next(ks), FFN, H)
        lp["ln2_g"] = jnp.ones((1, H), jnp.float32)
        lp["ln2_b"] = jnp.zeros((1, H), jnp.float32)
        layers.append(lp)
    p["layers"] = layers

    p["pool_w"], p["pool_b"] = _dense_params(next(ks), H, H)       # BERT pooler
    p["lt_w"], p["lt_b"] = _dense_params(next(ks), H, EMB_SIZE)    # self.linear_text
    p["li_w"], p["li_b"] = _dense_params(next(ks), H, EMB_SIZE)    # self.linear_img
    p["cls_w"], p["cls_b"] = _dense_params(next(ks), 2 * EMB_SIZE, NUM_CLASSES)
    return p


def prepare_weights(params):
    """One-time (init-time) weight packing: fused QKV (+scale fold), bf16 casts,
    effective visual bias. Keeps this re-materialization out of the jitted forward."""
    bf16 = jnp.bfloat16
    scale = 1.0 / (D_HEAD ** 0.5)
    layers = params["layers"]
    w = {
        "word_emb": params["word_emb"],
        "pos_emb": params["pos_emb"],
        "tok_type_emb": params["tok_type_emb"],
        "emb_ln_g": params["emb_ln_g"],
        "emb_ln_b": params["emb_ln_b"],
        "vis_proj_w": params["vis_proj_w"].astype(bf16),
        "vis_proj_b_eff": (params["vis_proj_b"]
                           + params["tok_type_emb"][1][None, :]
                           + params["pos_emb"][0][None, :]),
        "wqkv": jnp.stack([jnp.concatenate(
            [lp["wq"] * scale, lp["wk"], lp["wv"]], axis=1) for lp in layers]).astype(bf16),
        "bqkv": jnp.stack([jnp.concatenate(
            [lp["bq"] * scale, lp["bk"], lp["bv"]], axis=1) for lp in layers]),
        "wo": jnp.stack([lp["wo"] for lp in layers]).astype(bf16),
        "bo": jnp.stack([lp["bo"] for lp in layers]),
        "ln1g": jnp.stack([lp["ln1_g"] for lp in layers]),
        "ln1b": jnp.stack([lp["ln1_b"] for lp in layers]),
        "w1": jnp.stack([lp["w1"] for lp in layers]).astype(bf16),
        "b1": jnp.stack([lp["b1"] for lp in layers]),
        "w2": jnp.stack([lp["w2"] for lp in layers]).astype(bf16),
        "b2": jnp.stack([lp["b2"] for lp in layers]),
        "ln2g": jnp.stack([lp["ln2_g"] for lp in layers]),
        "ln2b": jnp.stack([lp["ln2_b"] for lp in layers]),
        "pool_w": params["pool_w"].astype(bf16), "pool_b": params["pool_b"],
        "lt_w": params["lt_w"].astype(bf16), "lt_b": params["lt_b"],
        "li_w": params["li_w"].astype(bf16), "li_b": params["li_b"],
        "cls_w": params["cls_w"].astype(bf16), "cls_b": params["cls_b"],
    }
    return w


# --------------------------------- forward pass --------------------------------------
def visualbert_classification_forward(w, visual_embeds_ncl, input_ids, attention_mask):
    # --- JAX glue: embedding gathers, padding, mask construction only ---
    # visual_embeds.transpose(1, 2): (B, C_vis, V) -> (B, V, C_vis), pad V -> V_PAD
    vis = jnp.transpose(visual_embeds_ncl, (0, 2, 1))
    vis = jnp.pad(vis, ((0, 0), (0, V_PAD - V), (0, 0)))
    vis_in = vis.reshape(B * V_PAD, C_VIS).astype(jnp.bfloat16)

    # text embedding sum (word + position + token_type 0); LayerNorm happens in-kernel
    txt_in = (w["word_emb"][input_ids]
              + w["pos_emb"][:T][None, :, :]
              + w["tok_type_emb"][0][None, None, :]).reshape(B * T, H)

    # block-diagonal additive mask over the padded, batch-concatenated sequence:
    # real text mask ++ [ones(V), zeros(V_PAD-V)] per batch; cross-batch entries = NEG
    vis_mask = jnp.concatenate(
        [jnp.ones((B, V), jnp.float32), jnp.zeros((B, V_PAD - V), jnp.float32)], axis=1)
    full_mask = jnp.concatenate([attention_mask.astype(jnp.float32), vis_mask], axis=1)
    key_add = ((1.0 - full_mask) * NEG).reshape(BS)                          # (BS,)
    batch_ids = jnp.repeat(jnp.arange(B), S_PAD)
    same_batch = batch_ids[:, None] == batch_ids[None, :]
    mask_bd = jnp.where(same_batch, key_add[None, :], NEG).astype(jnp.float32)  # (BS, BS)

    packed = pl.pallas_call(
        _fused_forward_kernel,
        out_shape=jax.ShapeDtypeStruct((OUT_ROWS, OUT_LANES), jnp.float32),
        in_specs=[VMEM] * 27,
        out_specs=VMEM,
    )(txt_in, vis_in, mask_bd,
      w["vis_proj_w"], w["vis_proj_b_eff"], w["emb_ln_g"], w["emb_ln_b"],
      w["wqkv"], w["bqkv"], w["wo"], w["bo"], w["ln1g"], w["ln1b"],
      w["w1"], w["b1"], w["w2"], w["b2"], w["ln2g"], w["ln2b"],
      w["pool_w"], w["pool_b"], w["lt_w"], w["lt_b"], w["li_w"], w["li_b"],
      w["cls_w"], w["cls_b"])

    logits = packed[:B, 0:NUM_CLASSES]
    img_emb = packed[:B, NUM_CLASSES:NUM_CLASSES + EMB_SIZE]
    text_emb = packed[:B, NUM_CLASSES + EMB_SIZE:NUM_CLASSES + 2 * EMB_SIZE]
    # TODO(synk): `output_attentions=True` attention maps are not returned (unused by head).
    return logits, img_emb, text_emb


# ------------------------------------- main -------------------------------------------
if __name__ == "__main__":
    key = jax.random.PRNGKey(0)
    kp, kv, kq = jax.random.split(key, 3)
    params = init_params(kp)
    w = prepare_weights(params)   # one-time packing, outside the jitted forward

    # synthetic inputs
    visual_embeds = jax.random.normal(kv, (B, C_VIS, V), jnp.float32)  # (B, C_vis, V)
    # TODO(synk): BERT WordPiece tokenization (BERTokenizer/AutoTokenizer) has no Pallas
    # equivalent; deterministic token ids + padding mask are supplied directly instead.
    input_ids = jax.random.randint(kq, (B, T), 0, VOCAB)
    lengths = jnp.array([T, T - 2], dtype=jnp.int32)
    attention_mask = (jnp.arange(T)[None, :] < lengths[:, None]).astype(jnp.float32)

    fwd = jax.jit(visualbert_classification_forward)
    logits, img_emb, text_emb = fwd(w, visual_embeds, input_ids, attention_mask)
    jax.block_until_ready((logits, img_emb, text_emb))

    assert logits.shape == (B, NUM_CLASSES)
    assert img_emb.shape == (B, EMB_SIZE)
    assert text_emb.shape == (B, EMB_SIZE)
    assert bool(jnp.all(jnp.isfinite(logits)))
    assert bool(jnp.all(jnp.isfinite(img_emb)))
    assert bool(jnp.all(jnp.isfinite(text_emb)))
    print("KERNEL_OK")
</pallas_src>

<mosaic_0001>
module attributes {stable_mosaic.version = 11 : i64} {
  func.func @_fused_forward_kernel(%arg0: memref<16x64xf32, #tpu.memory_space<vmem>>, %arg1: memref<16x32xbf16, #tpu.memory_space<vmem>>, %arg2: memref<32x32xf32, #tpu.memory_space<vmem>>, %arg3: memref<32x64xbf16, #tpu.memory_space<vmem>>, %arg4: memref<1x64xf32, #tpu.memory_space<vmem>>, %arg5: memref<1x64xf32, #tpu.memory_space<vmem>>, %arg6: memref<1x64xf32, #tpu.memory_space<vmem>>, %arg7: memref<2x64x192xbf16, #tpu.memory_space<vmem>>, %arg8: memref<2x1x192xf32, #tpu.memory_space<vmem>>, %arg9: memref<2x64x64xbf16, #tpu.memory_space<vmem>>, %arg10: memref<2x1x64xf32, #tpu.memory_space<vmem>>, %arg11: memref<2x1x64xf32, #tpu.memory_space<vmem>>, %arg12: memref<2x1x64xf32, #tpu.memory_space<vmem>>, %arg13: memref<2x64x128xbf16, #tpu.memory_space<vmem>>, %arg14: memref<2x1x128xf32, #tpu.memory_space<vmem>>, %arg15: memref<2x128x64xbf16, #tpu.memory_space<vmem>>, %arg16: memref<2x1x64xf32, #tpu.memory_space<vmem>>, %arg17: memref<2x1x64xf32, #tpu.memory_space<vmem>>, %arg18: memref<2x1x64xf32, #tpu.memory_space<vmem>>, %arg19: memref<64x64xbf16, #tpu.memory_space<vmem>>, %arg20: memref<1x64xf32, #tpu.memory_space<vmem>>, %arg21: memref<64x32xbf16, #tpu.memory_space<vmem>>, %arg22: memref<1x32xf32, #tpu.memory_space<vmem>>, %arg23: memref<64x32xbf16, #tpu.memory_space<vmem>>, %arg24: memref<1x32xf32, #tpu.memory_space<vmem>>, %arg25: memref<64x16xbf16, #tpu.memory_space<vmem>>, %arg26: memref<1x16xf32, #tpu.memory_space<vmem>>, %arg27: memref<8x128xf32, #tpu.memory_space<vmem>>) attributes {dimension_semantics = [], scalar_prefetch = 0 : i64, scratch_operands = 0 : i64, tpu.core_type = #tpu.core_type<tc>} {
    %c0 = arith.constant 0 : index
    %c0_0 = arith.constant 0 : index
    %0 = vector.load %arg2[%c0, %c0_0] : memref<32x32xf32, #tpu.memory_space<vmem>>, vector<32x32xf32>
    %c0_1 = arith.constant 0 : index
    %c0_2 = arith.constant 0 : index
    %1 = vector.load %arg0[%c0_1, %c0_2] : memref<16x64xf32, #tpu.memory_space<vmem>>, vector<16x64xf32>
    %c0_3 = arith.constant 0 : index
    %c0_4 = arith.constant 0 : index
    %2 = vector.load %arg5[%c0_3, %c0_4] : memref<1x64xf32, #tpu.memory_space<vmem>>, vector<1x64xf32>
    %c0_5 = arith.constant 0 : index
    %c0_6 = arith.constant 0 : index
    %3 = vector.load %arg6[%c0_5, %c0_6] : memref<1x64xf32, #tpu.memory_space<vmem>>, vector<1x64xf32>
    %cst = arith.constant dense<0.000000e+00> : vector<16xf32>
    %4 = vector.multi_reduction <add>, %1, %cst [1] : vector<16x64xf32> to vector<16xf32>
    %5 = vector.shape_cast %4 : vector<16xf32> to vector<16x1xf32>
    %cst_7 = arith.constant 6.400000e+01 : f32
    %6 = vector.broadcast %cst_7 : f32 to vector<16x1xf32>
    %7 = arith.divf %5, %6 : vector<16x1xf32>
    %8 = vector.broadcast %7 : vector<16x1xf32> to vector<16x64xf32>
    %9 = arith.subf %1, %8 : vector<16x64xf32>
    %10 = arith.mulf %9, %9 : vector<16x64xf32>
    %cst_8 = arith.constant dense<0.000000e+00> : vector<16xf32>
    %11 = vector.multi_reduction <add>, %10, %cst_8 [1] : vector<16x64xf32> to vector<16xf32>
    %12 = vector.shape_cast %11 : vector<16xf32> to vector<16x1xf32>
    %cst_9 = arith.constant 6.400000e+01 : f32
    %13 = vector.broadcast %cst_9 : f32 to vector<16x1xf32>
    %14 = arith.divf %12, %13 : vector<16x1xf32>
    %15 = vector.broadcast %7 : vector<16x1xf32> to vector<16x64xf32>
    %16 = arith.subf %1, %15 : vector<16x64xf32>
    %cst_10 = arith.constant 9.99999996E-13 : f32
    %17 = vector.broadcast %cst_10 : f32 to vector<16x1xf32>
    %18 = arith.addf %14, %17 : vector<16x1xf32>
    %19 = math.rsqrt %18 : vector<16x1xf32>
    %20 = vector.broadcast %19 : vector<16x1xf32> to vector<16x64xf32>
    %21 = arith.mulf %16, %20 : vector<16x64xf32>
    %22 = vector.broadcast %2 : vector<1x64xf32> to vector<16x64xf32>
    %23 = arith.mulf %21, %22 : vector<16x64xf32>
    %24 = vector.broadcast %3 : vector<1x64xf32> to vector<16x64xf32>
    %25 = arith.addf %23, %24 : vector<16x64xf32>
    %c0_11 = arith.constant 0 : index
    %c0_12 = arith.constant 0 : index
    %26 = vector.load %arg1[%c0_11, %c0_12] : memref<16x32xbf16, #tpu.memory_space<vmem>>, vector<16x32xbf16>
    %c0_13 = arith.constant 0 : index
    %c0_14 = arith.constant 0 : index
    %27 = vector.load %arg3[%c0_13, %c0_14] : memref<32x64xbf16, #tpu.memory_space<vmem>>, vector<32x64xbf16>
    %cst_15 = arith.constant dense<0.000000e+00> : vector<16x64xf32>
    %28 = tpu.matmul %26, %27, %cst_15 {dimension_numbers = #tpu.dot_dimension_numbers<[1], [0], [0], [1], [0, 0, 1, 1], [], []>} : vector<16x32xbf16>, vector<32x64xbf16>, vector<16x64xf32> -> vector<16x64xf32>
    %c0_16 = arith.constant 0 : index
    %c0_17 = arith.constant 0 : index
    %29 = vector.load %arg4[%c0_16, %c0_17] : memref<1x64xf32, #tpu.memory_space<vmem>>, vector<1x64xf32>
    %30 = vector.broadcast %29 : vector<1x64xf32> to vector<16x64xf32>
    %31 = arith.addf %28, %30 : vector<16x64xf32>
    %c0_18 = arith.constant 0 : index
    %c0_19 = arith.constant 0 : index
    %32 = vector.load %arg5[%c0_18, %c0_19] : memref<1x64xf32, #tpu.memory_space<vmem>>, vector<1x64xf32>
    %c0_20 = arith.constant 0 : index
    %c0_21 = arith.constant 0 : index
    %33 = vector.load %arg6[%c0_20, %c0_21] : memref<1x64xf32, #tpu.memory_space<vmem>>, vector<1x64xf32>
    %cst_22 = arith.constant dense<0.000000e+00> : vector<16xf32>
    %34 = vector.multi_reduction <add>, %31, %cst_22 [1] : vector<16x64xf32> to vector<16xf32>
    %35 = vector.shape_cast %34 : vector<16xf32> to vector<16x1xf32>
    %cst_23 = arith.constant 6.400000e+01 : f32
    %36 = vector.broadcast %cst_23 : f32 to vector<16x1xf32>
    %37 = arith.divf %35, %36 : vector<16x1xf32>
    %38 = vector.broadcast %37 : vector<16x1xf32> to vector<16x64xf32>
    %39 = arith.subf %31, %38 : vector<16x64xf32>
    %40 = arith.mulf %39, %39 : vector<16x64xf32>
    %cst_24 = arith.constant dense<0.000000e+00> : vector<16xf32>
    %41 = vector.multi_reduction <add>, %40, %cst_24 [1] : vector<16x64xf32> to vector<16xf32>
    %42 = vector.shape_cast %41 : vector<16xf32> to vector<16x1xf32>
    %cst_25 = arith.constant 6.400000e+01 : f32
    %43 = vector.broadcast %cst_25 : f32 to vector<16x1xf32>
    %44 = arith.divf %42, %43 : vector<16x1xf32>
    %45 = vector.broadcast %37 : vector<16x1xf32> to vector<16x64xf32>
    %46 = arith.subf %31, %45 : vector<16x64xf32>
    %cst_26 = arith.constant 9.99999996E-13 : f32
    %47 = vector.broadcast %cst_26 : f32 to vector<16x1xf32>
    %48 = arith.addf %44, %47 : vector<16x1xf32>
    %49 = math.rsqrt %48 : vector<16x1xf32>
    %50 = vector.broadcast %49 : vector<16x1xf32> to vector<16x64xf32>
    %51 = arith.mulf %46, %50 : vector<16x64xf32>
    %52 = vector.broadcast %32 : vector<1x64xf32> to vector<16x64xf32>
    %53 = arith.mulf %51, %52 : vector<16x64xf32>
    %54 = vector.broadcast %33 : vector<1x64xf32> to vector<16x64xf32>
    %55 = arith.addf %53, %54 : vector<16x64xf32>
    %56 = vector.extract_strided_slice %25 {offsets = [0, 0], sizes = [8, 64], strides = [1, 1]} : vector<16x64xf32> to vector<8x64xf32>
    %57 = vector.extract_strided_slice %55 {offsets = [0, 0], sizes = [8, 64], strides = [1, 1]} : vector<16x64xf32> to vector<8x64xf32>
    %58 = vector.extract_strided_slice %25 {offsets = [8, 0], sizes = [8, 64], strides = [1, 1]} : vector<16x64xf32> to vector<8x64xf32>
    %59 = vector.extract_strided_slice %55 {offsets = [8, 0], sizes = [8, 64], strides = [1, 1]} : vector<16x64xf32> to vector<8x64xf32>
    %60 = tpu.concatenate %56, %57, %58, %59 in 0 : vector<8x64xf32>, vector<8x64xf32>, vector<8x64xf32>, vector<8x64xf32> -> vector<32x64xf32>
    %61 = arith.truncf %60 : vector<32x64xf32> to vector<32x64xbf16>
    %c0_27 = arith.constant 0 : index
    %c0_28 = arith.constant 0 : index
    %c0_29 = arith.constant 0 : index
    %62 = vector.load %arg7[%c0_27, %c0_28, %c0_29] : memref<2x64x192xbf16, #tpu.memory_space<vmem>>, vector<1x64x192xbf16>
    %63 = vector.shape_cast %62 : vector<1x64x192xbf16> to vector<64x192xbf16>
    %cst_30 = arith.constant dense<0.000000e+00> : vector<32x192xf32>
    %64 = tpu.matmul %61, %63, %cst_30 {dimension_numbers = #tpu.dot_dimension_numbers<[1], [0], [0], [1], [0, 0, 1, 1], [], []>} : vector<32x64xbf16>, vector<64x192xbf16>, vector<32x192xf32> -> vector<32x192xf32>
    %c0_31 = arith.constant 0 : index
    %c0_32 = arith.constant 0 : index
    %c0_33 = arith.constant 0 : index
    %65 = vector.load %arg8[%c0_31, %c0_32, %c0_33] : memref<2x1x192xf32, #tpu.memory_space<vmem>>, vector<1x1x192xf32>
    %66 = vector.shape_cast %65 : vector<1x1x192xf32> to vector<1x192xf32>
    %67 = vector.broadcast %66 : vector<1x192xf32> to vector<32x192xf32>
    %68 = arith.addf %64, %67 : vector<32x192xf32>
    %69 = vector.extract_strided_slice %68 {offsets = [0, 0], sizes = [32, 64], strides = [1, 1]} : vector<32x192xf32> to vector<32x64xf32>
    %70 = arith.truncf %69 : vector<32x64xf32> to vector<32x64xbf16>
    %71 = vector.extract_strided_slice %68 {offsets = [0, 64], sizes = [32, 64], strides = [1, 1]} : vector<32x192xf32> to vector<32x64xf32>
    %72 = arith.truncf %71 : vector<32x64xf32> to vector<32x64xbf16>
    %73 = vector.extract_strided_slice %68 {offsets = [0, 128], sizes = [32, 64], strides = [1, 1]} : vector<32x192xf32> to vector<32x64xf32>
    %74 = arith.truncf %73 : vector<32x64xf32> to vector<32x64xbf16>
    %75 = vector.extract_strided_slice %70 {offsets = [0, 0], sizes = [32, 16], strides = [1, 1]} : vector<32x64xbf16> to vector<32x16xbf16>
    %76 = vector.extract_strided_slice %72 {offsets = [0, 0], sizes = [32, 16], strides = [1, 1]} : vector<32x64xbf16> to vector<32x16xbf16>
    %77 = vector.extract_strided_slice %74 {offsets = [0, 0], sizes = [32, 16], strides = [1, 1]} : vector<32x64xbf16> to vector<32x16xbf16>
    %cst_34 = arith.constant dense<0.000000e+00> : vector<32x32xf32>
    %78 = tpu.matmul %75, %76, %cst_34 {dimension_numbers = #tpu.dot_dimension_numbers<[1], [1], [0], [0], [0, 0, 1, 0], [], []>} : vector<32x16xbf16>, vector<32x16xbf16>, vector<32x32xf32> -> vector<32x32xf32>
    %79 = arith.addf %78, %0 : vector<32x32xf32>
    %cst_35 = arith.constant dense<0xFF800000> : vector<32xf32>
    %80 = vector.multi_reduction <maximumf>, %79, %cst_35 [1] : vector<32x32xf32> to vector<32xf32>
    %81 = vector.shape_cast %80 : vector<32xf32> to vector<32x1xf32>
    %82 = vector.broadcast %81 : vector<32x1xf32> to vector<32x32xf32>
    %83 = arith.subf %79, %82 : vector<32x32xf32>
    %84 = math.exp %83 : vector<32x32xf32>
    %cst_36 = arith.constant dense<0.000000e+00> : vector<32xf32>
    %85 = vector.multi_reduction <add>, %84, %cst_36 [1] : vector<32x32xf32> to vector<32xf32>
    %86 = vector.shape_cast %85 : vector<32xf32> to vector<32x1xf32>
    %87 = tpu.reciprocal %86 {approx = true} : vector<32x1xf32> -> vector<32x1xf32>
    %88 = vector.broadcast %87 : vector<32x1xf32> to vector<32x32xf32>
    %89 = arith.mulf %84, %88 : vector<32x32xf32>
    %90 = arith.truncf %89 : vector<32x32xf32> to vector<32x32xbf16>
    %cst_37 = arith.constant dense<0.000000e+00> : vector<32x16xf32>
    %91 = tpu.matmul %90, %77, %cst_37 {dimension_numbers = #tpu.dot_dimension_numbers<[1], [0], [0], [1], [0, 0, 1, 1], [], []>} : vector<32x32xbf16>, vector<32x16xbf16>, vector<32x16xf32> -> vector<32x16xf32>
    %92 = vector.extract_strided_slice %70 {offsets = [0, 16], sizes = [32, 16], strides = [1, 1]} : vector<32x64xbf16> to vector<32x16xbf16>
    %93 = vector.extract_strided_slice %72 {offsets = [0, 16], sizes = [32, 16], strides = [1, 1]} : vector<32x64xbf16> to vector<32x16xbf16>
    %94 = vector.extract_strided_slice %74 {offsets = [0, 16], sizes = [32, 16], strides = [1, 1]} : vector<32x64xbf16> to vector<32x16xbf16>
    %cst_38 = arith.constant dense<0.000000e+00> : vector<32x32xf32>
    %95 = tpu.matmul %92, %93, %cst_38 {dimension_numbers = #tpu.dot_dimension_numbers<[1], [1], [0], [0], [0, 0, 1, 0], [], []>} : vector<32x16xbf16>, vector<32x16xbf16>, vector<32x32xf32> -> vector<32x32xf32>
    %96 = arith.addf %95, %0 : vector<32x32xf32>
    %cst_39 = arith.constant dense<0xFF800000> : vector<32xf32>
    %97 = vector.multi_reduction <maximumf>, %96, %cst_39 [1] : vector<32x32xf32> to vector<32xf32>
    %98 = vector.shape_cast %97 : vector<32xf32> to vector<32x1xf32>
    %99 = vector.broadcast %98 : vector<32x1xf32> to vector<32x32xf32>
    %100 = arith.subf %96, %99 : vector<32x32xf32>
    %101 = math.exp %100 : vector<32x32xf32>
    %cst_40 = arith.constant dense<0.000000e+00> : vector<32xf32>
    %102 = vector.multi_reduction <add>, %101, %cst_40 [1] : vector<32x32xf32> to vector<32xf32>
    %103 = vector.shape_cast %102 : vector<32xf32> to vector<32x1xf32>
    %104 = tpu.reciprocal %103 {approx = true} : vector<32x1xf32> -> vector<32x1xf32>
    %105 = vector.broadcast %104 : vector<32x1xf32> to vector<32x32xf32>
    %106 = arith.mulf %101, %105 : vector<32x32xf32>
    %107 = arith.truncf %106 : vector<32x32xf32> to vector<32x32xbf16>
    %cst_41 = arith.constant dense<0.000000e+00> : vector<32x16xf32>
    %108 = tpu.matmul %107, %94, %cst_41 {dimension_numbers = #tpu.dot_dimension_numbers<[1], [0], [0], [1], [0, 0, 1, 1], [], []>} : vector<32x32xbf16>, vector<32x16xbf16>, vector<32x16xf32> -> vector<32x16xf32>
    %109 = vector.extract_strided_slice %70 {offsets = [0, 32], sizes = [32, 16], strides = [1, 1]} : vector<32x64xbf16> to vector<32x16xbf16>
    %110 = vector.extract_strided_slice %72 {offsets = [0, 32], sizes = [32, 16], strides = [1, 1]} : vector<32x64xbf16> to vector<32x16xbf16>
    %111 = vector.extract_strided_slice %74 {offsets = [0, 32], sizes = [32, 16], strides = [1, 1]} : vector<32x64xbf16> to vector<32x16xbf16>
    %cst_42 = arith.constant dense<0.000000e+00> : vector<32x32xf32>
    %112 = tpu.matmul %109, %110, %cst_42 {dimension_numbers = #tpu.dot_dimension_numbers<[1], [1], [0], [0], [0, 0, 1, 0], [], []>} : vector<32x16xbf16>, vector<32x16xbf16>, vector<32x32xf32> -> vector<32x32xf32>
    %113 = arith.addf %112, %0 : vector<32x32xf32>
    %cst_43 = arith.constant dense<0xFF800000> : vector<32xf32>
    %114 = vector.multi_reduction <maximumf>, %113, %cst_43 [1] : vector<32x32xf32> to vector<32xf32>
    %115 = vector.shape_cast %114 : vector<32xf32> to vector<32x1xf32>
    %116 = vector.broadcast %115 : vector<32x1xf32> to vector<32x32xf32>
    %117 = arith.subf %113, %116 : vector<32x32xf32>
    %118 = math.exp %117 : vector<32x32xf32>
    %cst_44 = arith.constant dense<0.000000e+00> : vector<32xf32>
    %119 = vector.multi_reduction <add>, %118, %cst_44 [1] : vector<32x32xf32> to vector<32xf32>
    %120 = vector.shape_cast %119 : vector<32xf32> to vector<32x1xf32>
    %121 = tpu.reciprocal %120 {approx = true} : vector<32x1xf32> -> vector<32x1xf32>
    %122 = vector.broadcast %121 : vector<32x1xf32> to vector<32x32xf32>
    %123 = arith.mulf %118, %122 : vector<32x32xf32>
    %124 = arith.truncf %123 : vector<32x32xf32> to vector<32x32xbf16>
    %cst_45 = arith.constant dense<0.000000e+00> : vector<32x16xf32>
    %125 = tpu.matmul %124, %111, %cst_45 {dimension_numbers = #tpu.dot_dimension_numbers<[1], [0], [0], [1], [0, 0, 1, 1], [], []>} : vector<32x32xbf16>, vector<32x16xbf16>, vector<32x16xf32> -> vector<32x16xf32>
    %126 = vector.extract_strided_slice %70 {offsets = [0, 48], sizes = [32, 16], strides = [1, 1]} : vector<32x64xbf16> to vector<32x16xbf16>
    %127 = vector.extract_strided_slice %72 {offsets = [0, 48], sizes = [32, 16], strides = [1, 1]} : vector<32x64xbf16> to vector<32x16xbf16>
    %128 = vector.extract_strided_slice %74 {offsets = [0, 48], sizes = [32, 16], strides = [1, 1]} : vector<32x64xbf16> to vector<32x16xbf16>
    %cst_46 = arith.constant dense<0.000000e+00> : vector<32x32xf32>
    %129 = tpu.matmul %126, %127, %cst_46 {dimension_numbers = #tpu.dot_dimension_numbers<[1], [1], [0], [0], [0, 0, 1, 0], [], []>} : vector<32x16xbf16>, vector<32x16xbf16>, vector<32x32xf32> -> vector<32x32xf32>
    %130 = arith.addf %129, %0 : vector<32x32xf32>
    %cst_47 = arith.constant dense<0xFF800000> : vector<32xf32>
    %131 = vector.multi_reduction <maximumf>, %130, %cst_47 [1] : vector<32x32xf32> to vector<32xf32>
    %132 = vector.shape_cast %131 : vector<32xf32> to vector<32x1xf32>
    %133 = vector.broadcast %132 : vector<32x1xf32> to vector<32x32xf32>
    %134 = arith.subf %130, %133 : vector<32x32xf32>
    %135 = math.exp %134 : vector<32x32xf32>
    %cst_48 = arith.constant dense<0.000000e+00> : vector<32xf32>
    %136 = vector.multi_reduction <add>, %135, %cst_48 [1] : vector<32x32xf32> to vector<32xf32>
    %137 = vector.shape_cast %136 : vector<32xf32> to vector<32x1xf32>
    %138 = tpu.reciprocal %137 {approx = true} : vector<32x1xf32> -> vector<32x1xf32>
    %139 = vector.broadcast %138 : vector<32x1xf32> to vector<32x32xf32>
    %140 = arith.mulf %135, %139 : vector<32x32xf32>
    %141 = arith.truncf %140 : vector<32x32xf32> to vector<32x32xbf16>
    %cst_49 = arith.constant dense<0.000000e+00> : vector<32x16xf32>
    %142 = tpu.matmul %141, %128, %cst_49 {dimension_numbers = #tpu.dot_dimension_numbers<[1], [0], [0], [1], [0, 0, 1, 1], [], []>} : vector<32x32xbf16>, vector<32x16xbf16>, vector<32x16xf32> -> vector<32x16xf32>
    %143 = tpu.concatenate %91, %108, %125, %142 in 1 : vector<32x16xf32>, vector<32x16xf32>, vector<32x16xf32>, vector<32x16xf32> -> vector<32x64xf32>
    %144 = arith.truncf %143 : vector<32x64xf32> to vector<32x64xbf16>
    %c0_50 = arith.constant 0 : index
    %c0_51 = arith.constant 0 : index
    %c0_52 = arith.constant 0 : index
    %145 = vector.load %arg9[%c0_50, %c0_51, %c0_52] : memref<2x64x64xbf16, #tpu.memory_space<vmem>>, vector<1x64x64xbf16>
    %146 = vector.shape_cast %145 : vector<1x64x64xbf16> to vector<64x64xbf16>
    %cst_53 = arith.constant dense<0.000000e+00> : vector<32x64xf32>
    %147 = tpu.matmul %144, %146, %cst_53 {dimension_numbers = #tpu.dot_dimension_numbers<[1], [0], [0], [1], [0, 0, 1, 1], [], []>} : vector<32x64xbf16>, vector<64x64xbf16>, vector<32x64xf32> -> vector<32x64xf32>
    %c0_54 = arith.constant 0 : index
    %c0_55 = arith.constant 0 : index
    %c0_56 = arith.constant 0 : index
    %148 = vector.load %arg10[%c0_54, %c0_55, %c0_56] : memref<2x1x64xf32, #tpu.memory_space<vmem>>, vector<1x1x64xf32>
    %149 = vector.shape_cast %148 : vector<1x1x64xf32> to vector<1x64xf32>
    %150 = vector.broadcast %149 : vector<1x64xf32> to vector<32x64xf32>
    %151 = arith.addf %147, %150 : vector<32x64xf32>
    %152 = arith.addf %151, %60 : vector<32x64xf32>
    %c0_57 = arith.constant 0 : index
    %c0_58 = arith.constant 0 : index
    %c0_59 = arith.constant 0 : index
    %153 = vector.load %arg11[%c0_57, %c0_58, %c0_59] : memref<2x1x64xf32, #tpu.memory_space<vmem>>, vector<1x1x64xf32>
    %154 = vector.shape_cast %153 : vector<1x1x64xf32> to vector<1x64xf32>
    %c0_60 = arith.constant 0 : index
    %c0_61 = arith.constant 0 : index
    %c0_62 = arith.constant 0 : index
    %155 = vector.load %arg12[%c0_60, %c0_61, %c0_62] : memref<2x1x64xf32, #tpu.memory_space<vmem>>, vector<1x1x64xf32>
    %156 = vector.shape_cast %155 : vector<1x1x64xf32> to vector<1x64xf32>
    %cst_63 = arith.constant dense<0.000000e+00> : vector<32xf32>
    %157 = vector.multi_reduction <add>, %152, %cst_63 [1] : vector<32x64xf32> to vector<32xf32>
    %158 = vector.shape_cast %157 : vector<32xf32> to vector<32x1xf32>
    %cst_64 = arith.constant 6.400000e+01 : f32
    %159 = vector.broadcast %cst_64 : f32 to vector<32x1xf32>
    %160 = arith.divf %158, %159 : vector<32x1xf32>
    %161 = vector.broadcast %160 : vector<32x1xf32> to vector<32x64xf32>
    %162 = arith.subf %152, %161 : vector<32x64xf32>
    %163 = arith.mulf %162, %162 : vector<32x64xf32>
    %cst_65 = arith.constant dense<0.000000e+00> : vector<32xf32>
    %164 = vector.multi_reduction <add>, %163, %cst_65 [1] : vector<32x64xf32> to vector<32xf32>
    %165 = vector.shape_cast %164 : vector<32xf32> to vector<32x1xf32>
    %cst_66 = arith.constant 6.400000e+01 : f32
    %166 = vector.broadcast %cst_66 : f32 to vector<32x1xf32>
    %167 = arith.divf %165, %166 : vector<32x1xf32>
    %168 = vector.broadcast %160 : vector<32x1xf32> to vector<32x64xf32>
    %169 = arith.subf %152, %168 : vector<32x64xf32>
    %cst_67 = arith.constant 9.99999996E-13 : f32
    %170 = vector.broadcast %cst_67 : f32 to vector<32x1xf32>
    %171 = arith.addf %167, %170 : vector<32x1xf32>
    %172 = math.rsqrt %171 : vector<32x1xf32>
    %173 = vector.broadcast %172 : vector<32x1xf32> to vector<32x64xf32>
    %174 = arith.mulf %169, %173 : vector<32x64xf32>
    %175 = vector.broadcast %154 : vector<1x64xf32> to vector<32x64xf32>
    %176 = arith.mulf %174, %175 : vector<32x64xf32>
    %177 = vector.broadcast %156 : vector<1x64xf32> to vector<32x64xf32>
    %178 = arith.addf %176, %177 : vector<32x64xf32>
    %179 = arith.truncf %178 : vector<32x64xf32> to vector<32x64xbf16>
    %c0_68 = arith.constant 0 : index
    %c0_69 = arith.constant 0 : index
    %c0_70 = arith.constant 0 : index
    %180 = vector.load %arg13[%c0_68, %c0_69, %c0_70] : memref<2x64x128xbf16, #tpu.memory_space<vmem>>, vector<1x64x128xbf16>
    %181 = vector.shape_cast %180 : vector<1x64x128xbf16> to vector<64x128xbf16>
    %cst_71 = arith.constant dense<0.000000e+00> : vector<32x128xf32>
    %182 = tpu.matmul %179, %181, %cst_71 {dimension_numbers = #tpu.dot_dimension_numbers<[1], [0], [0], [1], [0, 0, 1, 1], [], []>} : vector<32x64xbf16>, vector<64x128xbf16>, vector<32x128xf32> -> vector<32x128xf32>
    %c0_72 = arith.constant 0 : index
    %c0_73 = arith.constant 0 : index
    %c0_74 = arith.constant 0 : index
    %183 = vector.load %arg14[%c0_72, %c0_73, %c0_74] : memref<2x1x128xf32, #tpu.memory_space<vmem>>, vector<1x1x128xf32>
    %184 = vector.shape_cast %183 : vector<1x1x128xf32> to vector<1x128xf32>
    %185 = vector.broadcast %184 : vector<1x128xf32> to vector<32x128xf32>
    %186 = arith.addf %182, %185 : vector<32x128xf32>
    %187 = arith.mulf %186, %186 : vector<32x128xf32>
    %188 = arith.mulf %186, %187 : vector<32x128xf32>
    %cst_75 = arith.constant 4.471500e-02 : f32
    %189 = vector.broadcast %cst_75 : f32 to vector<32x128xf32>
    %190 = arith.mulf %189, %188 : vector<32x128xf32>
    %191 = arith.addf %186, %190 : vector<32x128xf32>
    %cst_76 = arith.constant 0.797884583 : f32
    %192 = vector.broadcast %cst_76 : f32 to vector<32x128xf32>
    %193 = arith.mulf %192, %191 : vector<32x128xf32>
    %194 = math.tanh %193 : vector<32x128xf32>
    %cst_77 = arith.constant 1.000000e+00 : f32
    %195 = vector.broadcast %cst_77 : f32 to vector<32x128xf32>
    %196 = arith.addf %195, %194 : vector<32x128xf32>
    %cst_78 = arith.constant 5.000000e-01 : f32
    %197 = vector.broadcast %cst_78 : f32 to vector<32x128xf32>
    %198 = arith.mulf %197, %196 : vector<32x128xf32>
    %199 = arith.mulf %186, %198 : vector<32x128xf32>
    %200 = arith.truncf %199 : vector<32x128xf32> to vector<32x128xbf16>
    %c0_79 = arith.constant 0 : index
    %c0_80 = arith.constant 0 : index
    %c0_81 = arith.constant 0 : index
    %201 = vector.load %arg15[%c0_79, %c0_80, %c0_81] : memref<2x128x64xbf16, #tpu.memory_space<vmem>>, vector<1x128x64xbf16>
    %202 = vector.shape_cast %201 : vector<1x128x64xbf16> to vector<128x64xbf16>
    %cst_82 = arith.constant dense<0.000000e+00> : vector<32x64xf32>
    %203 = tpu.matmul %200, %202, %cst_82 {dimension_numbers = #tpu.dot_dimension_numbers<[1], [0], [0], [1], [0, 0, 1, 1], [], []>} : vector<32x128xbf16>, vector<128x64xbf16>, vector<32x64xf32> -> vector<32x64xf32>
    %c0_83 = arith.constant 0 : index
    %c0_84 = arith.constant 0 : index
    %c0_85 = arith.constant 0 : index
    %204 = vector.load %arg16[%c0_83, %c0_84, %c0_85] : memref<2x1x64xf32, #tpu.memory_space<vmem>>, vector<1x1x64xf32>
    %205 = vector.shape_cast %204 : vector<1x1x64xf32> to vector<1x64xf32>
    %206 = vector.broadcast %205 : vector<1x64xf32> to vector<32x64xf32>
    %207 = arith.addf %203, %206 : vector<32x64xf32>
    %208 = arith.addf %207, %178 : vector<32x64xf32>
    %c0_86 = arith.constant 0 : index
    %c0_87 = arith.constant 0 : index
    %c0_88 = arith.constant 0 : index
    %209 = vector.load %arg17[%c0_86, %c0_87, %c0_88] : memref<2x1x64xf32, #tpu.memory_space<vmem>>, vector<1x1x64xf32>
    %210 = vector.shape_cast %209 : vector<1x1x64xf32> to vector<1x64xf32>
    %c0_89 = arith.constant 0 : index
    %c0_90 = arith.constant 0 : index
    %c0_91 = arith.constant 0 : index
    %211 = vector.load %arg18[%c0_89, %c0_90, %c0_91] : memref<2x1x64xf32, #tpu.memory_space<vmem>>, vector<1x1x64xf32>
    %212 = vector.shape_cast %211 : vector<1x1x64xf32> to vector<1x64xf32>
    %cst_92 = arith.constant dense<0.000000e+00> : vector<32xf32>
    %213 = vector.multi_reduction <add>, %208, %cst_92 [1] : vector<32x64xf32> to vector<32xf32>
    %214 = vector.shape_cast %213 : vector<32xf32> to vector<32x1xf32>
    %cst_93 = arith.constant 6.400000e+01 : f32
    %215 = vector.broadcast %cst_93 : f32 to vector<32x1xf32>
    %216 = arith.divf %214, %215 : vector<32x1xf32>
    %217 = vector.broadcast %216 : vector<32x1xf32> to vector<32x64xf32>
    %218 = arith.subf %208, %217 : vector<32x64xf32>
    %219 = arith.mulf %218, %218 : vector<32x64xf32>
    %cst_94 = arith.constant dense<0.000000e+00> : vector<32xf32>
    %220 = vector.multi_reduction <add>, %219, %cst_94 [1] : vector<32x64xf32> to vector<32xf32>
    %221 = vector.shape_cast %220 : vector<32xf32> to vector<32x1xf32>
    %cst_95 = arith.constant 6.400000e+01 : f32
    %222 = vector.broadcast %cst_95 : f32 to vector<32x1xf32>
    %223 = arith.divf %221, %222 : vector<32x1xf32>
    %224 = vector.broadcast %216 : vector<32x1xf32> to vector<32x64xf32>
    %225 = arith.subf %208, %224 : vector<32x64xf32>
    %cst_96 = arith.constant 9.99999996E-13 : f32
    %226 = vector.broadcast %cst_96 : f32 to vector<32x1xf32>
    %227 = arith.addf %223, %226 : vector<32x1xf32>
    %228 = math.rsqrt %227 : vector<32x1xf32>
    %229 = vector.broadcast %228 : vector<32x1xf32> to vector<32x64xf32>
    %230 = arith.mulf %225, %229 : vector<32x64xf32>
    %231 = vector.broadcast %210 : vector<1x64xf32> to vector<32x64xf32>
    %232 = arith.mulf %230, %231 : vector<32x64xf32>
    %233 = vector.broadcast %212 : vector<1x64xf32> to vector<32x64xf32>
    %234 = arith.addf %232, %233 : vector<32x64xf32>
    %235 = arith.truncf %234 : vector<32x64xf32> to vector<32x64xbf16>
    %c1 = arith.constant 1 : index
    %c0_97 = arith.constant 0 : index
    %c0_98 = arith.constant 0 : index
    %236 = vector.load %arg7[%c1, %c0_97, %c0_98] : memref<2x64x192xbf16, #tpu.memory_space<vmem>>, vector<1x64x192xbf16>
    %237 = vector.shape_cast %236 : vector<1x64x192xbf16> to vector<64x192xbf16>
    %cst_99 = arith.constant dense<0.000000e+00> : vector<32x192xf32>
    %238 = tpu.matmul %235, %237, %cst_99 {dimension_numbers = #tpu.dot_dimension_numbers<[1], [0], [0], [1], [0, 0, 1, 1], [], []>} : vector<32x64xbf16>, vector<64x192xbf16>, vector<32x192xf32> -> vector<32x192xf32>
    %c1_100 = arith.constant 1 : index
    %c0_101 = arith.constant 0 : index
    %c0_102 = arith.constant 0 : index
    %239 = vector.load %arg8[%c1_100, %c0_101, %c0_102] : memref<2x1x192xf32, #tpu.memory_space<vmem>>, vector<1x1x192xf32>
    %240 = vector.shape_cast %239 : vector<1x1x192xf32> to vector<1x192xf32>
    %241 = vector.broadcast %240 : vector<1x192xf32> to vector<32x192xf32>
    %242 = arith.addf %238, %241 : vector<32x192xf32>
    %243 = vector.extract_strided_slice %242 {offsets = [0, 0], sizes = [32, 64], strides = [1, 1]} : vector<32x192xf32> to vector<32x64xf32>
    %244 = arith.truncf %243 : vector<32x64xf32> to vector<32x64xbf16>
    %245 = vector.extract_strided_slice %242 {offsets = [0, 64], sizes = [32, 64], strides = [1, 1]} : vector<32x192xf32> to vector<32x64xf32>
    %246 = arith.truncf %245 : vector<32x64xf32> to vector<32x64xbf16>
    %247 = vector.extract_strided_slice %242 {offsets = [0, 128], sizes = [32, 64], strides = [1, 1]} : vector<32x192xf32> to vector<32x64xf32>
    %248 = arith.truncf %247 : vector<32x64xf32> to vector<32x64xbf16>
    %249 = vector.extract_strided_slice %244 {offsets = [0, 0], sizes = [32, 16], strides = [1, 1]} : vector<32x64xbf16> to vector<32x16xbf16>
    %250 = vector.extract_strided_slice %246 {offsets = [0, 0], sizes = [32, 16], strides = [1, 1]} : vector<32x64xbf16> to vector<32x16xbf16>
    %251 = vector.extract_strided_slice %248 {offsets = [0, 0], sizes = [32, 16], strides = [1, 1]} : vector<32x64xbf16> to vector<32x16xbf16>
    %cst_103 = arith.constant dense<0.000000e+00> : vector<32x32xf32>
    %252 = tpu.matmul %249, %250, %cst_103 {dimension_numbers = #tpu.dot_dimension_numbers<[1], [1], [0], [0], [0, 0, 1, 0], [], []>} : vector<32x16xbf16>, vector<32x16xbf16>, vector<32x32xf32> -> vector<32x32xf32>
    %253 = arith.addf %252, %0 : vector<32x32xf32>
    %cst_104 = arith.constant dense<0xFF800000> : vector<32xf32>
    %254 = vector.multi_reduction <maximumf>, %253, %cst_104 [1] : vector<32x32xf32> to vector<32xf32>
    %255 = vector.shape_cast %254 : vector<32xf32> to vector<32x1xf32>
    %256 = vector.broadcast %255 : vector<32x1xf32> to vector<32x32xf32>
    %257 = arith.subf %253, %256 : vector<32x32xf32>
    %258 = math.exp %257 : vector<32x32xf32>
    %cst_105 = arith.constant dense<0.000000e+00> : vector<32xf32>
    %259 = vector.multi_reduction <add>, %258, %cst_105 [1] : vector<32x32xf32> to vector<32xf32>
    %260 = vector.shape_cast %259 : vector<32xf32> to vector<32x1xf32>
    %261 = tpu.reciprocal %260 {approx = true} : vector<32x1xf32> -> vector<32x1xf32>
    %262 = vector.broadcast %261 : vector<32x1xf32> to vector<32x32xf32>
    %263 = arith.mulf %258, %262 : vector<32x32xf32>
    %264 = arith.truncf %263 : vector<32x32xf32> to vector<32x32xbf16>
    %cst_106 = arith.constant dense<0.000000e+00> : vector<32x16xf32>
    %265 = tpu.matmul %264, %251, %cst_106 {dimension_numbers = #tpu.dot_dimension_numbers<[1], [0], [0], [1], [0, 0, 1, 1], [], []>} : vector<32x32xbf16>, vector<32x16xbf16>, vector<32x16xf32> -> vector<32x16xf32>
    %266 = vector.extract_strided_slice %244 {offsets = [0, 16], sizes = [32, 16], strides = [1, 1]} : vector<32x64xbf16> to vector<32x16xbf16>
    %267 = vector.extract_strided_slice %246 {offsets = [0, 16], sizes = [32, 16], strides = [1, 1]} : vector<32x64xbf16> to vector<32x16xbf16>
    %268 = vector.extract_strided_slice %248 {offsets = [0, 16], sizes = [32, 16], strides = [1, 1]} : vector<32x64xbf16> to vector<32x16xbf16>
    %cst_107 = arith.constant dense<0.000000e+00> : vector<32x32xf32>
    %269 = tpu.matmul %266, %267, %cst_107 {dimension_numbers = #tpu.dot_dimension_numbers<[1], [1], [0], [0], [0, 0, 1, 0], [], []>} : vector<32x16xbf16>, vector<32x16xbf16>, vector<32x32xf32> -> vector<32x32xf32>
    %270 = arith.addf %269, %0 : vector<32x32xf32>
    %cst_108 = arith.constant dense<0xFF800000> : vector<32xf32>
    %271 = vector.multi_reduction <maximumf>, %270, %cst_108 [1] : vector<32x32xf32> to vector<32xf32>
    %272 = vector.shape_cast %271 : vector<32xf32> to vector<32x1xf32>
    %273 = vector.broadcast %272 : vector<32x1xf32> to vector<32x32xf32>
    %274 = arith.subf %270, %273 : vector<32x32xf32>
    %275 = math.exp %274 : vector<32x32xf32>
    %cst_109 = arith.constant dense<0.000000e+00> : vector<32xf32>
    %276 = vector.multi_reduction <add>, %275, %cst_109 [1] : vector<32x32xf32> to vector<32xf32>
    %277 = vector.shape_cast %276 : vector<32xf32> to vector<32x1xf32>
    %278 = tpu.reciprocal %277 {approx = true} : vector<32x1xf32> -> vector<32x1xf32>
    %279 = vector.broadcast %278 : vector<32x1xf32> to vector<32x32xf32>
    %280 = arith.mulf %275, %279 : vector<32x32xf32>
    %281 = arith.truncf %280 : vector<32x32xf32> to vector<32x32xbf16>
    %cst_110 = arith.constant dense<0.000000e+00> : vector<32x16xf32>
    %282 = tpu.matmul %281, %268, %cst_110 {dimension_numbers = #tpu.dot_dimension_numbers<[1], [0], [0], [1], [0, 0, 1, 1], [], []>} : vector<32x32xbf16>, vector<32x16xbf16>, vector<32x16xf32> -> vector<32x16xf32>
    %283 = vector.extract_strided_slice %244 {offsets = [0, 32], sizes = [32, 16], strides = [1, 1]} : vector<32x64xbf16> to vector<32x16xbf16>
    %284 = vector.extract_strided_slice %246 {offsets = [0, 32], sizes = [32, 16], strides = [1, 1]} : vector<32x64xbf16> to vector<32x16xbf16>
    %285 = vector.extract_strided_slice %248 {offsets = [0, 32], sizes = [32, 16], strides = [1, 1]} : vector<32x64xbf16> to vector<32x16xbf16>
    %cst_111 = arith.constant dense<0.000000e+00> : vector<32x32xf32>
    %286 = tpu.matmul %283, %284, %cst_111 {dimension_numbers = #tpu.dot_dimension_numbers<[1], [1], [0], [0], [0, 0, 1, 0], [], []>} : vector<32x16xbf16>, vector<32x16xbf16>, vector<32x32xf32> -> vector<32x32xf32>
    %287 = arith.addf %286, %0 : vector<32x32xf32>
    %cst_112 = arith.constant dense<0xFF800000> : vector<32xf32>
    %288 = vector.multi_reduction <maximumf>, %287, %cst_112 [1] : vector<32x32xf32> to vector<32xf32>
    %289 = vector.shape_cast %288 : vector<32xf32> to vector<32x1xf32>
    %290 = vector.broadcast %289 : vector<32x1xf32> to vector<32x32xf32>
    %291 = arith.subf %287, %290 : vector<32x32xf32>
    %292 = math.exp %291 : vector<32x32xf32>
    %cst_113 = arith.constant dense<0.000000e+00> : vector<32xf32>
    %293 = vector.multi_reduction <add>, %292, %cst_113 [1] : vector<32x32xf32> to vector<32xf32>
    %294 = vector.shape_cast %293 : vector<32xf32> to vector<32x1xf32>
    %295 = tpu.reciprocal %294 {approx = true} : vector<32x1xf32> -> vector<32x1xf32>
    %296 = vector.broadcast %295 : vector<32x1xf32> to vector<32x32xf32>
    %297 = arith.mulf %292, %296 : vector<32x32xf32>
    %298 = arith.truncf %297 : vector<32x32xf32> to vector<32x32xbf16>
    %cst_114 = arith.constant dense<0.000000e+00> : vector<32x16xf32>
    %299 = tpu.matmul %298, %285, %cst_114 {dimension_numbers = #tpu.dot_dimension_numbers<[1], [0], [0], [1], [0, 0, 1, 1], [], []>} : vector<32x32xbf16>, vector<32x16xbf16>, vector<32x16xf32> -> vector<32x16xf32>
    %300 = vector.extract_strided_slice %244 {offsets = [0, 48], sizes = [32, 16], strides = [1, 1]} : vector<32x64xbf16> to vector<32x16xbf16>
    %301 = vector.extract_strided_slice %246 {offsets = [0, 48], sizes = [32, 16], strides = [1, 1]} : vector<32x64xbf16> to vector<32x16xbf16>
    %302 = vector.extract_strided_slice %248 {offsets = [0, 48], sizes = [32, 16], strides = [1, 1]} : vector<32x64xbf16> to vector<32x16xbf16>
    %cst_115 = arith.constant dense<0.000000e+00> : vector<32x32xf32>
    %303 = tpu.matmul %300, %301, %cst_115 {dimension_numbers = #tpu.dot_dimension_numbers<[1], [1], [0], [0], [0, 0, 1, 0], [], []>} : vector<32x16xbf16>, vector<32x16xbf16>, vector<32x32xf32> -> vector<32x32xf32>
    %304 = arith.addf %303, %0 : vector<32x32xf32>
    %cst_116 = arith.constant dense<0xFF800000> : vector<32xf32>
    %305 = vector.multi_reduction <maximumf>, %304, %cst_116 [1] : vector<32x32xf32> to vector<32xf32>
    %306 = vector.shape_cast %305 : vector<32xf32> to vector<32x1xf32>
    %307 = vector.broadcast %306 : vector<32x1xf32> to vector<32x32xf32>
    %308 = arith.subf %304, %307 : vector<32x32xf32>
    %309 = math.exp %308 : vector<32x32xf32>
    %cst_117 = arith.constant dense<0.000000e+00> : vector<32xf32>
    %310 = vector.multi_reduction <add>, %309, %cst_117 [1] : vector<32x32xf32> to vector<32xf32>
    %311 = vector.shape_cast %310 : vector<32xf32> to vector<32x1xf32>
    %312 = tpu.reciprocal %311 {approx = true} : vector<32x1xf32> -> vector<32x1xf32>
    %313 = vector.broadcast %312 : vector<32x1xf32> to vector<32x32xf32>
    %314 = arith.mulf %309, %313 : vector<32x32xf32>
    %315 = arith.truncf %314 : vector<32x32xf32> to vector<32x32xbf16>
    %cst_118 = arith.constant dense<0.000000e+00> : vector<32x16xf32>
    %316 = tpu.matmul %315, %302, %cst_118 {dimension_numbers = #tpu.dot_dimension_numbers<[1], [0], [0], [1], [0, 0, 1, 1], [], []>} : vector<32x32xbf16>, vector<32x16xbf16>, vector<32x16xf32> -> vector<32x16xf32>
    %317 = tpu.concatenate %265, %282, %299, %316 in 1 : vector<32x16xf32>, vector<32x16xf32>, vector<32x16xf32>, vector<32x16xf32> -> vector<32x64xf32>
    %318 = arith.truncf %317 : vector<32x64xf32> to vector<32x64xbf16>
    %c1_119 = arith.constant 1 : index
    %c0_120 = arith.constant 0 : index
    %c0_121 = arith.constant 0 : index
    %319 = vector.load %arg9[%c1_119, %c0_120, %c0_121] : memref<2x64x64xbf16, #tpu.memory_space<vmem>>, vector<1x64x64xbf16>
    %320 = vector.shape_cast %319 : vector<1x64x64xbf16> to vector<64x64xbf16>
    %cst_122 = arith.constant dense<0.000000e+00> : vector<32x64xf32>
    %321 = tpu.matmul %318, %320, %cst_122 {dimension_numbers = #tpu.dot_dimension_numbers<[1], [0], [0], [1], [0, 0, 1, 1], [], []>} : vector<32x64xbf16>, vector<64x64xbf16>, vector<32x64xf32> -> vector<32x64xf32>
    %c1_123 = arith.constant 1 : index
    %c0_124 = arith.constant 0 : index
    %c0_125 = arith.constant 0 : index
    %322 = vector.load %arg10[%c1_123, %c0_124, %c0_125] : memref<2x1x64xf32, #tpu.memory_space<vmem>>, vector<1x1x64xf32>
    %323 = vector.shape_cast %322 : vector<1x1x64xf32> to vector<1x64xf32>
    %324 = vector.broadcast %323 : vector<1x64xf32> to vector<32x64xf32>
    %325 = arith.addf %321, %324 : vector<32x64xf32>
    %326 = arith.addf %325, %234 : vector<32x64xf32>
    %c1_126 = arith.constant 1 : index
    %c0_127 = arith.constant 0 : index
    %c0_128 = arith.constant 0 : index
    %327 = vector.load %arg11[%c1_126, %c0_127, %c0_128] : memref<2x1x64xf32, #tpu.memory_space<vmem>>, vector<1x1x64xf32>
    %328 = vector.shape_cast %327 : vector<1x1x64xf32> to vector<1x64xf32>
    %c1_129 = arith.constant 1 : index
    %c0_130 = arith.constant 0 : index
    %c0_131 = arith.constant 0 : index
    %329 = vector.load %arg12[%c1_129, %c0_130, %c0_131] : memref<2x1x64xf32, #tpu.memory_space<vmem>>, vector<1x1x64xf32>
    %330 = vector.shape_cast %329 : vector<1x1x64xf32> to vector<1x64xf32>
    %cst_132 = arith.constant dense<0.000000e+00> : vector<32xf32>
    %331 = vector.multi_reduction <add>, %326, %cst_132 [1] : vector<32x64xf32> to vector<32xf32>
    %332 = vector.shape_cast %331 : vector<32xf32> to vector<32x1xf32>
    %cst_133 = arith.constant 6.400000e+01 : f32
    %333 = vector.broadcast %cst_133 : f32 to vector<32x1xf32>
    %334 = arith.divf %332, %333 : vector<32x1xf32>
    %335 = vector.broadcast %334 : vector<32x1xf32> to vector<32x64xf32>
    %336 = arith.subf %326, %335 : vector<32x64xf32>
    %337 = arith.mulf %336, %336 : vector<32x64xf32>
    %cst_134 = arith.constant dense<0.000000e+00> : vector<32xf32>
    %338 = vector.multi_reduction <add>, %337, %cst_134 [1] : vector<32x64xf32> to vector<32xf32>
    %339 = vector.shape_cast %338 : vector<32xf32> to vector<32x1xf32>
    %cst_135 = arith.constant 6.400000e+01 : f32
    %340 = vector.broadcast %cst_135 : f32 to vector<32x1xf32>
    %341 = arith.divf %339, %340 : vector<32x1xf32>
    %342 = vector.broadcast %334 : vector<32x1xf32> to vector<32x64xf32>
    %343 = arith.subf %326, %342 : vector<32x64xf32>
    %cst_136 = arith.constant 9.99999996E-13 : f32
    %344 = vector.broadcast %cst_136 : f32 to vector<32x1xf32>
    %345 = arith.addf %341, %344 : vector<32x1xf32>
    %346 = math.rsqrt %345 : vector<32x1xf32>
    %347 = vector.broadcast %346 : vector<32x1xf32> to vector<32x64xf32>
    %348 = arith.mulf %343, %347 : vector<32x64xf32>
    %349 = vector.broadcast %328 : vector<1x64xf32> to vector<32x64xf32>
    %350 = arith.mulf %348, %349 : vector<32x64xf32>
    %351 = vector.broadcast %330 : vector<1x64xf32> to vector<32x64xf32>
    %352 = arith.addf %350, %351 : vector<32x64xf32>
    %353 = arith.truncf %352 : vector<32x64xf32> to vector<32x64xbf16>
    %c1_137 = arith.constant 1 : index
    %c0_138 = arith.constant 0 : index
    %c0_139 = arith.constant 0 : index
    %354 = vector.load %arg13[%c1_137, %c0_138, %c0_139] : memref<2x64x128xbf16, #tpu.memory_space<vmem>>, vector<1x64x128xbf16>
    %355 = vector.shape_cast %354 : vector<1x64x128xbf16> to vector<64x128xbf16>
    %cst_140 = arith.constant dense<0.000000e+00> : vector<32x128xf32>
    %356 = tpu.matmul %353, %355, %cst_140 {dimension_numbers = #tpu.dot_dimension_numbers<[1], [0], [0], [1], [0, 0, 1, 1], [], []>} : vector<32x64xbf16>, vector<64x128xbf16>, vector<32x128xf32> -> vector<32x128xf32>
    %c1_141 = arith.constant 1 : index
    %c0_142 = arith.constant 0 : index
    %c0_143 = arith.constant 0 : index
    %357 = vector.load %arg14[%c1_141, %c0_142, %c0_143] : memref<2x1x128xf32, #tpu.memory_space<vmem>>, vector<1x1x128xf32>
    %358 = vector.shape_cast %357 : vector<1x1x128xf32> to vector<1x128xf32>
    %359 = vector.broadcast %358 : vector<1x128xf32> to vector<32x128xf32>
    %360 = arith.addf %356, %359 : vector<32x128xf32>
    %361 = arith.mulf %360, %360 : vector<32x128xf32>
    %362 = arith.mulf %360, %361 : vector<32x128xf32>
    %cst_144 = arith.constant 4.471500e-02 : f32
    %363 = vector.broadcast %cst_144 : f32 to vector<32x128xf32>
    %364 = arith.mulf %363, %362 : vector<32x128xf32>
    %365 = arith.addf %360, %364 : vector<32x128xf32>
    %cst_145 = arith.constant 0.797884583 : f32
    %366 = vector.broadcast %cst_145 : f32 to vector<32x128xf32>
    %367 = arith.mulf %366, %365 : vector<32x128xf32>
    %368 = math.tanh %367 : vector<32x128xf32>
    %cst_146 = arith.constant 1.000000e+00 : f32
    %369 = vector.broadcast %cst_146 : f32 to vector<32x128xf32>
    %370 = arith.addf %369, %368 : vector<32x128xf32>
    %cst_147 = arith.constant 5.000000e-01 : f32
    %371 = vector.broadcast %cst_147 : f32 to vector<32x128xf32>
    %372 = arith.mulf %371, %370 : vector<32x128xf32>
    %373 = arith.mulf %360, %372 : vector<32x128xf32>
    %374 = arith.truncf %373 : vector<32x128xf32> to vector<32x128xbf16>
    %c1_148 = arith.constant 1 : index
    %c0_149 = arith.constant 0 : index
    %c0_150 = arith.constant 0 : index
    %375 = vector.load %arg15[%c1_148, %c0_149, %c0_150] : memref<2x128x64xbf16, #tpu.memory_space<vmem>>, vector<1x128x64xbf16>
    %376 = vector.shape_cast %375 : vector<1x128x64xbf16> to vector<128x64xbf16>
    %cst_151 = arith.constant dense<0.000000e+00> : vector<32x64xf32>
    %377 = tpu.matmul %374, %376, %cst_151 {dimension_numbers = #tpu.dot_dimension_numbers<[1], [0], [0], [1], [0, 0, 1, 1], [], []>} : vector<32x128xbf16>, vector<128x64xbf16>, vector<32x64xf32> -> vector<32x64xf32>
    %c1_152 = arith.constant 1 : index
    %c0_153 = arith.constant 0 : index
    %c0_154 = arith.constant 0 : index
    %378 = vector.load %arg16[%c1_152, %c0_153, %c0_154] : memref<2x1x64xf32, #tpu.memory_space<vmem>>, vector<1x1x64xf32>
    %379 = vector.shape_cast %378 : vector<1x1x64xf32> to vector<1x64xf32>
    %380 = vector.broadcast %379 : vector<1x64xf32> to vector<32x64xf32>
    %381 = arith.addf %377, %380 : vector<32x64xf32>
    %382 = arith.addf %381, %352 : vector<32x64xf32>
    %c1_155 = arith.constant 1 : index
    %c0_156 = arith.constant 0 : index
    %c0_157 = arith.constant 0 : index
    %383 = vector.load %arg17[%c1_155, %c0_156, %c0_157] : memref<2x1x64xf32, #tpu.memory_space<vmem>>, vector<1x1x64xf32>
    %384 = vector.shape_cast %383 : vector<1x1x64xf32> to vector<1x64xf32>
    %c1_158 = arith.constant 1 : index
    %c0_159 = arith.constant 0 : index
    %c0_160 = arith.constant 0 : index
    %385 = vector.load %arg18[%c1_158, %c0_159, %c0_160] : memref<2x1x64xf32, #tpu.memory_space<vmem>>, vector<1x1x64xf32>
    %386 = vector.shape_cast %385 : vector<1x1x64xf32> to vector<1x64xf32>
    %cst_161 = arith.constant dense<0.000000e+00> : vector<32xf32>
    %387 = vector.multi_reduction <add>, %382, %cst_161 [1] : vector<32x64xf32> to vector<32xf32>
    %388 = vector.shape_cast %387 : vector<32xf32> to vector<32x1xf32>
    %cst_162 = arith.constant 6.400000e+01 : f32
    %389 = vector.broadcast %cst_162 : f32 to vector<32x1xf32>
    %390 = arith.divf %388, %389 : vector<32x1xf32>
    %391 = vector.broadcast %390 : vector<32x1xf32> to vector<32x64xf32>
    %392 = arith.subf %382, %391 : vector<32x64xf32>
    %393 = arith.mulf %392, %392 : vector<32x64xf32>
    %cst_163 = arith.constant dense<0.000000e+00> : vector<32xf32>
    %394 = vector.multi_reduction <add>, %393, %cst_163 [1] : vector<32x64xf32> to vector<32xf32>
    %395 = vector.shape_cast %394 : vector<32xf32> to vector<32x1xf32>
    %cst_164 = arith.constant 6.400000e+01 : f32
    %396 = vector.broadcast %cst_164 : f32 to vector<32x1xf32>
    %397 = arith.divf %395, %396 : vector<32x1xf32>
    %398 = vector.broadcast %390 : vector<32x1xf32> to vector<32x64xf32>
    %399 = arith.subf %382, %398 : vector<32x64xf32>
    %cst_165 = arith.constant 9.99999996E-13 : f32
    %400 = vector.broadcast %cst_165 : f32 to vector<32x1xf32>
    %401 = arith.addf %397, %400 : vector<32x1xf32>
    %402 = math.rsqrt %401 : vector<32x1xf32>
    %403 = vector.broadcast %402 : vector<32x1xf32> to vector<32x64xf32>
    %404 = arith.mulf %399, %403 : vector<32x64xf32>
    %405 = vector.broadcast %384 : vector<1x64xf32> to vector<32x64xf32>
    %406 = arith.mulf %404, %405 : vector<32x64xf32>
    %407 = vector.broadcast %386 : vector<1x64xf32> to vector<32x64xf32>
    %408 = arith.addf %406, %407 : vector<32x64xf32>
    %409 = vector.extract_strided_slice %408 {offsets = [0, 0], sizes = [1, 64], strides = [1, 1]} : vector<32x64xf32> to vector<1x64xf32>
    %410 = vector.extract_strided_slice %408 {offsets = [16, 0], sizes = [1, 64], strides = [1, 1]} : vector<32x64xf32> to vector<1x64xf32>
    %411 = tpu.concatenate %409, %410 in 0 : vector<1x64xf32>, vector<1x64xf32> -> vector<2x64xf32>
    %412 = arith.truncf %411 : vector<2x64xf32> to vector<2x64xbf16>
    %c0_166 = arith.constant 0 : index
    %c0_167 = arith.constant 0 : index
    %413 = vector.load %arg19[%c0_166, %c0_167] : memref<64x64xbf16, #tpu.memory_space<vmem>>, vector<64x64xbf16>
    %cst_168 = arith.constant dense<0.000000e+00> : vector<2x64xf32>
    %414 = tpu.matmul %412, %413, %cst_168 {dimension_numbers = #tpu.dot_dimension_numbers<[1], [0], [0], [1], [0, 0, 1, 1], [], []>} : vector<2x64xbf16>, vector<64x64xbf16>, vector<2x64xf32> -> vector<2x64xf32>
    %c0_169 = arith.constant 0 : index
    %c0_170 = arith.constant 0 : index
    %415 = vector.load %arg20[%c0_169, %c0_170] : memref<1x64xf32, #tpu.memory_space<vmem>>, vector<1x64xf32>
    %416 = vector.broadcast %415 : vector<1x64xf32> to vector<2x64xf32>
    %417 = arith.addf %414, %416 : vector<2x64xf32>
    %418 = math.tanh %417 : vector<2x64xf32>
    %c0_171 = arith.constant 0 : index
    %c0_172 = arith.constant 0 : index
    %419 = vector.load %arg21[%c0_171, %c0_172] : memref<64x32xbf16, #tpu.memory_space<vmem>>, vector<64x32xbf16>
    %cst_173 = arith.constant dense<0.000000e+00> : vector<2x32xf32>
    %420 = tpu.matmul %412, %419, %cst_173 {dimension_numbers = #tpu.dot_dimension_numbers<[1], [0], [0], [1], [0, 0, 1, 1], [], []>} : vector<2x64xbf16>, vector<64x32xbf16>, vector<2x32xf32> -> vector<2x32xf32>
    %c0_174 = arith.constant 0 : index
    %c0_175 = arith.constant 0 : index
    %421 = vector.load %arg22[%c0_174, %c0_175] : memref<1x32xf32, #tpu.memory_space<vmem>>, vector<1x32xf32>
    %422 = vector.broadcast %421 : vector<1x32xf32> to vector<2x32xf32>
    %423 = arith.addf %420, %422 : vector<2x32xf32>
    %424 = arith.truncf %418 : vector<2x64xf32> to vector<2x64xbf16>
    %c0_176 = arith.constant 0 : index
    %c0_177 = arith.constant 0 : index
    %425 = vector.load %arg23[%c0_176, %c0_177] : memref<64x32xbf16, #tpu.memory_space<vmem>>, vector<64x32xbf16>
    %cst_178 = arith.constant dense<0.000000e+00> : vector<2x32xf32>
    %426 = tpu.matmul %424, %425, %cst_178 {dimension_numbers = #tpu.dot_dimension_numbers<[1], [0], [0], [1], [0, 0, 1, 1], [], []>} : vector<2x64xbf16>, vector<64x32xbf16>, vector<2x32xf32> -> vector<2x32xf32>
    %c0_179 = arith.constant 0 : index
    %c0_180 = arith.constant 0 : index
    %427 = vector.load %arg24[%c0_179, %c0_180] : memref<1x32xf32, #tpu.memory_space<vmem>>, vector<1x32xf32>
    %428 = vector.broadcast %427 : vector<1x32xf32> to vector<2x32xf32>
    %429 = arith.addf %426, %428 : vector<2x32xf32>
    %430 = arith.truncf %429 : vector<2x32xf32> to vector<2x32xbf16>
    %c0_181 = arith.constant 0 : index
    %c0_182 = arith.constant 0 : index
    %431 = vector.load %arg25[%c0_181, %c0_182] : memref<64x16xbf16, #tpu.memory_space<vmem>>, vector<32x16xbf16>
    %cst_183 = arith.constant dense<0.000000e+00> : vector<2x16xf32>
    %432 = tpu.matmul %430, %431, %cst_183 {dimension_numbers = #tpu.dot_dimension_numbers<[1], [0], [0], [1], [0, 0, 1, 1], [], []>} : vector<2x32xbf16>, vector<32x16xbf16>, vector<2x16xf32> -> vector<2x16xf32>
    %433 = arith.truncf %423 : vector<2x32xf32> to vector<2x32xbf16>
    %c32 = arith.constant 32 : index
    %c0_184 = arith.constant 0 : index
    %434 = vector.load %arg25[%c32, %c0_184] : memref<64x16xbf16, #tpu.memory_space<vmem>>, vector<32x16xbf16>
    %cst_185 = arith.constant dense<0.000000e+00> : vector<2x16xf32>
    %435 = tpu.matmul %433, %434, %cst_185 {dimension_numbers = #tpu.dot_dimension_numbers<[1], [0], [0], [1], [0, 0, 1, 1], [], []>} : vector<2x32xbf16>, vector<32x16xbf16>, vector<2x16xf32> -> vector<2x16xf32>
    %436 = arith.addf %432, %435 : vector<2x16xf32>
    %c0_186 = arith.constant 0 : index
    %c0_187 = arith.constant 0 : index
    %437 = vector.load %arg26[%c0_186, %c0_187] : memref<1x16xf32, #tpu.memory_space<vmem>>, vector<1x16xf32>
    %438 = vector.broadcast %437 : vector<1x16xf32> to vector<2x16xf32>
    %439 = arith.addf %436, %438 : vector<2x16xf32>
    %cst_188 = arith.constant 0.000000e+00 : f32
    %440 = vector.broadcast %cst_188 : f32 to vector<2x48xf32>
    %441 = tpu.concatenate %439, %429, %423, %440 in 1 : vector<2x16xf32>, vector<2x32xf32>, vector<2x32xf32>, vector<2x48xf32> -> vector<2x128xf32>
    %cst_189 = arith.constant 0.000000e+00 : f32
    %442 = vector.broadcast %cst_189 : f32 to vector<6x128xf32>
    %443 = tpu.concatenate %441, %442 in 0 : vector<2x128xf32>, vector<6x128xf32> -> vector<8x128xf32>
    %c0_190 = arith.constant 0 : index
    %c0_191 = arith.constant 0 : index
    %444 = vector.load %arg27[%c0_190, %c0_191] : memref<8x128xf32, #tpu.memory_space<vmem>>, vector<8x128xf32>
    tpu.vector_store %arg27[%c0_190, %c0_191], %443 {strides = array<i32>} : memref<8x128xf32, #tpu.memory_space<vmem>>, vector<8x128xf32>,
    return
  }
}

</mosaic_0001>

<llo_original>
// kernel: eq.8
$region0: #{eq.8}
  %s0 = inlined_call_operand.vmem [shape: s32[2,16], index: 0, kind: input, shape index: {}]
  %s1 = inlined_call_operand.vmem [shape: s32[32], index: 1, kind: output, shape index: {}]
  $region1: #{eq.8} parent=0
    #allocation0 [shape = 'u8[4096]{0}', space=vmem, size = 0x1000, scoped, tag = 'scoped mem for output reshape']
    #allocation1 [shape = 'u8[4096]{0}', space=vmem, size = 0x1000, scoped, tag = 'scoped mem for input reshape']
    %s3 = sshllo.u32 0, 2
    %v4 = vld [vmem:[%s0] sm:%s3]
    %5 = vst [vmem:[#allocation1] sm:%s3] %v4
    %v6 = vld [vmem:[#allocation1] sm:$0x1]
    %vm7 = vcmask 130048
    %8 = vst.msk [vmem:[#allocation0] sm:$0x1] %vm7, %v6
    %s9 = scalar_lea.vmem [#allocation1], 1
    %v10 = vld [vmem:[%s9] sm:$0x1]
    %11 = vrot.lane.b32.xlu0 %v10, 16
    %v12 = vpop.permute.xlu0 %11
    %vm13 = vcmask 261248
    %14 = vst.msk [vmem:[#allocation0] sm:$0x1] %vm13, %v12
    %s16 = sshllo.u32 0, 1
    %v18 = vld [vmem:[#allocation0] sm:%s16]
    %s19 = sshllo.u32 0, 1
    %20 = vst [vmem:[%s1] sm:%s19] %v18

// kernel: visualbert_classification_forward.1
$region0: #{visualbert_classification_forward.1}
  #allocation0 [shape = 'u32[]', space=smem, size = 0x4, offset = 0x4, fixed_abs, tag = 'smem constant byte address 0x4 - core index']
  #allocation1 [shape = 'u32[144,128]{1,0:T(1,128)}', space=vmem, size = 0x12000, scoped, tag = 'internal scratch']
  %s0 = inlined_call_operand.vmem [shape: f32[16,64], index: 0, kind: input, shape index: {}]
  %s1 = inlined_call_operand.vmem [shape: bf16[16,32], index: 1, kind: input, shape index: {}]
  %s2 = inlined_call_operand.vmem [shape: f32[32,32], index: 2, kind: input, shape index: {}]
  %s3 = inlined_call_operand.vmem [shape: bf16[32,64], index: 3, kind: input, shape index: {}]
  %s4 = inlined_call_operand.vmem [shape: f32[1,64], index: 4, kind: input, shape index: {}]
  %s5 = inlined_call_operand.vmem [shape: f32[1,64], index: 5, kind: input, shape index: {}]
  %s6 = inlined_call_operand.vmem [shape: f32[1,64], index: 6, kind: input, shape index: {}]
  %s7 = inlined_call_operand.vmem [shape: bf16[2,64,192], index: 7, kind: input, shape index: {}]
  %s8 = inlined_call_operand.vmem [shape: f32[2,1,192], index: 8, kind: input, shape index: {}]
  %s9 = inlined_call_operand.vmem [shape: bf16[2,64,64], index: 9, kind: input, shape index: {}]
  %s10 = inlined_call_operand.vmem [shape: f32[2,1,64], index: 10, kind: input, shape index: {}]
  %s11 = inlined_call_operand.vmem [shape: f32[2,1,64], index: 11, kind: input, shape index: {}]
  %s12 = inlined_call_operand.vmem [shape: f32[2,1,64], index: 12, kind: input, shape index: {}]
  %s13 = inlined_call_operand.vmem [shape: bf16[2,64,128], index: 13, kind: input, shape index: {}]
  %s14 = inlined_call_operand.vmem [shape: f32[2,1,128], index: 14, kind: input, shape index: {}]
  %s15 = inlined_call_operand.vmem [shape: bf16[2,128,64], index: 15, kind: input, shape index: {}]
  %s16 = inlined_call_operand.vmem [shape: f32[2,1,64], index: 16, kind: input, shape index: {}]
  %s17 = inlined_call_operand.vmem [shape: f32[2,1,64], index: 17, kind: input, shape index: {}]
  %s18 = inlined_call_operand.vmem [shape: f32[2,1,64], index: 18, kind: input, shape index: {}]
  %s19 = inlined_call_operand.vmem [shape: bf16[64,64], index: 19, kind: input, shape index: {}]
  %s20 = inlined_call_operand.vmem [shape: f32[1,64], index: 20, kind: input, shape index: {}]
  %s21 = inlined_call_operand.vmem [shape: bf16[64,32], index: 21, kind: input, shape index: {}]
  %s22 = inlined_call_operand.vmem [shape: f32[1,32], index: 22, kind: input, shape index: {}]
  %s23 = inlined_call_operand.vmem [shape: bf16[64,32], index: 23, kind: input, shape index: {}]
  %s24 = inlined_call_operand.vmem [shape: f32[1,32], index: 24, kind: input, shape index: {}]
  %s25 = inlined_call_operand.vmem [shape: bf16[64,16], index: 25, kind: input, shape index: {}]
  %s26 = inlined_call_operand.vmem [shape: f32[1,16], index: 26, kind: input, shape index: {}]
  %s27 = inlined_call_operand.vmem [shape: f32[8,128], index: 27, kind: output, shape index: {}]
  %s28 = sld [smem:[#allocation0]]
  $region118: #{visualbert_classification_forward.1} parent=0
    _
  %s30 = ssub.s32 1, %s28
  %s31 = scalar_select 0, %s30, %s28
  // Predicated region
  $region2: #{visualbert_classification_forward.1} parent=0 // pred_check
    _
  $region3: #{visualbert_classification_forward.1} parent=0 // pred_check_branch
    %33 = sbr.rel (0) target = $region5
  $region4: #{visualbert_classification_forward.1} parent=0 // pred_region
    _
  $region5: #{visualbert_classification_forward.1} parent=0 // pred_fallthru
    _
  // Predicated region
  $region6: #{visualbert_classification_forward.1} parent=0 // pred_check
    _
  $region7: #{visualbert_classification_forward.1} parent=0 // pred_check_branch
    %35 = sbr.rel (0) target = $region9
  $region8: #{visualbert_classification_forward.1} parent=0 // pred_region
    _
  $region9: #{visualbert_classification_forward.1} parent=0 // pred_fallthru
    _
  // Predicated region
  $region10: #{visualbert_classification_forward.1} parent=0 // pred_check
    _
  $region11: #{visualbert_classification_forward.1} parent=0 // pred_check_branch
    %37 = sbr.rel (0) target = $region13
  $region12: #{visualbert_classification_forward.1} parent=0 // pred_region
    _
  $region13: #{visualbert_classification_forward.1} parent=0 // pred_fallthru
    _
  // Predicated region
  $region14: #{visualbert_classification_forward.1} parent=0 // pred_check
    _
  $region15: #{visualbert_classification_forward.1} parent=0 // pred_check_branch
    %39 = sbr.rel (0) target = $region17
  $region16: #{visualbert_classification_forward.1} parent=0 // pred_region
    _
  $region17: #{visualbert_classification_forward.1} parent=0 // pred_fallthru
    _
  // Predicated region
  $region18: #{visualbert_classification_forward.1} parent=0 // pred_check
    _
  $region19: #{visualbert_classification_forward.1} parent=0 // pred_check_branch
    %41 = sbr.rel (0) target = $region21
  $region20: #{visualbert_classification_forward.1} parent=0 // pred_region
    _
  $region21: #{visualbert_classification_forward.1} parent=0 // pred_fallthru
    _
  // Predicated region
  $region22: #{visualbert_classification_forward.1} parent=0 // pred_check
    _
  $region23: #{visualbert_classification_forward.1} parent=0 // pred_check_branch
    %43 = sbr.rel (0) target = $region25
  $region24: #{visualbert_classification_forward.1} parent=0 // pred_region
    _
  $region25: #{visualbert_classification_forward.1} parent=0 // pred_fallthru
    _
  // Predicated region
  $region26: #{visualbert_classification_forward.1} parent=0 // pred_check
    _
  $region27: #{visualbert_classification_forward.1} parent=0 // pred_check_branch
    %45 = sbr.rel (0) target = $region29
  $region28: #{visualbert_classification_forward.1} parent=0 // pred_region
    _
  $region29: #{visualbert_classification_forward.1} parent=0 // pred_fallthru
    _
  // Predicated region
  $region30: #{visualbert_classification_forward.1} parent=0 // pred_check
    _
  $region31: #{visualbert_classification_forward.1} parent=0 // pred_check_branch
    %47 = sbr.rel (0) target = $region33
  $region32: #{visualbert_classification_forward.1} parent=0 // pred_region
    _
  $region33: #{visualbert_classification_forward.1} parent=0 // pred_fallthru
    _
  // Predicated region
  $region34: #{visualbert_classification_forward.1} parent=0 // pred_check
    _
  $region35: #{visualbert_classification_forward.1} parent=0 // pred_check_branch
    %49 = sbr.rel (0) target = $region37
  $region36: #{visualbert_classification_forward.1} parent=0 // pred_region
    _
  $region37: #{visualbert_classification_forward.1} parent=0 // pred_fallthru
    _
  // Predicated region
  $region38: #{visualbert_classification_forward.1} parent=0 // pred_check
    _
  $region39: #{visualbert_classification_forward.1} parent=0 // pred_check_branch
    %51 = sbr.rel (0) target = $region41
  $region40: #{visualbert_classification_forward.1} parent=0 // pred_region
    _
  $region41: #{visualbert_classification_forward.1} parent=0 // pred_fallthru
    _
  // Predicated region
  $region42: #{visualbert_classification_forward.1} parent=0 // pred_check
    _
  $region43: #{visualbert_classification_forward.1} parent=0 // pred_check_branch
    %53 = sbr.rel (0) target = $region45
  $region44: #{visualbert_classification_forward.1} parent=0 // pred_region
    _
  $region45: #{visualbert_classification_forward.1} parent=0 // pred_fallthru
    _
  // Predicated region
  $region46: #{visualbert_classification_forward.1} parent=0 // pred_check
    _
  $region47: #{visualbert_classification_forward.1} parent=0 // pred_check_branch
    %55 = sbr.rel (0) target = $region49
  $region48: #{visualbert_classification_forward.1} parent=0 // pred_region
    _
  $region49: #{visualbert_classification_forward.1} parent=0 // pred_fallthru
    _
  // Predicated region
  $region50: #{visualbert_classification_forward.1} parent=0 // pred_check
    _
  $region51: #{visualbert_classification_forward.1} parent=0 // pred_check_branch
    %57 = sbr.rel (0) target = $region53
  $region52: #{visualbert_classification_forward.1} parent=0 // pred_region
    _
  $region53: #{visualbert_classification_forward.1} parent=0 // pred_fallthru
    _
  // Predicated region
  $region54: #{visualbert_classification_forward.1} parent=0 // pred_check
    _
  $region55: #{visualbert_classification_forward.1} parent=0 // pred_check_branch
    %59 = sbr.rel (0) target = $region57
  $region56: #{visualbert_classification_forward.1} parent=0 // pred_region
    _
  $region57: #{visualbert_classification_forward.1} parent=0 // pred_fallthru
    _
  // Predicated region
  $region58: #{visualbert_classification_forward.1} parent=0 // pred_check
    _
  $region59: #{visualbert_classification_forward.1} parent=0 // pred_check_branch
    %61 = sbr.rel (0) target = $region61
  $region60: #{visualbert_classification_forward.1} parent=0 // pred_region
    _
  $region61: #{visualbert_classification_forward.1} parent=0 // pred_fallthru
    _
  // Predicated region
  $region62: #{visualbert_classification_forward.1} parent=0 // pred_check
    _
  $region63: #{visualbert_classification_forward.1} parent=0 // pred_check_branch
    %63 = sbr.rel (0) target = $region65
  $region64: #{visualbert_classification_forward.1} parent=0 // pred_region
    _
  $region65: #{visualbert_classification_forward.1} parent=0 // pred_fallthru
    _
  // Predicated region
  $region66: #{visualbert_classification_forward.1} parent=0 // pred_check
    _
  $region67: #{visualbert_classification_forward.1} parent=0 // pred_check_branch
    %65 = sbr.rel (0) target = $region69
  $region68: #{visualbert_classification_forward.1} parent=0 // pred_region
    _
  $region69: #{visualbert_classification_forward.1} parent=0 // pred_fallthru
    _
  // Predicated region
  $region70: #{visualbert_classification_forward.1} parent=0 // pred_check
    _
  $region71: #{visualbert_classification_forward.1} parent=0 // pred_check_branch
    %67 = sbr.rel (0) target = $region73
  $region72: #{visualbert_classification_forward.1} parent=0 // pred_region
    _
  $region73: #{visualbert_classification_forward.1} parent=0 // pred_fallthru
    _
  // Predicated region
  $region74: #{visualbert_classification_forward.1} parent=0 // pred_check
    _
  $region75: #{visualbert_classification_forward.1} parent=0 // pred_check_branch
    %69 = sbr.rel (0) target = $region77
  $region76: #{visualbert_classification_forward.1} parent=0 // pred_region
    _
  $region77: #{visualbert_classification_forward.1} parent=0 // pred_fallthru
    _
  // Predicated region
  $region78: #{visualbert_classification_forward.1} parent=0 // pred_check
    _
  $region79: #{visualbert_classification_forward.1} parent=0 // pred_check_branch
    %71 = sbr.rel (0) target = $region81
  $region80: #{visualbert_classification_forward.1} parent=0 // pred_region
    _
  $region81: #{visualbert_classification_forward.1} parent=0 // pred_fallthru
    _
  // Predicated region
  $region82: #{visualbert_classification_forward.1} parent=0 // pred_check
    _
  $region83: #{visualbert_classification_forward.1} parent=0 // pred_check_branch
    %73 = sbr.rel (0) target = $region85
  $region84: #{visualbert_classification_forward.1} parent=0 // pred_region
    _
  $region85: #{visualbert_classification_forward.1} parent=0 // pred_fallthru
    _
  // Predicated region
  $region86: #{visualbert_classification_forward.1} parent=0 // pred_check
    _
  $region87: #{visualbert_classification_forward.1} parent=0 // pred_check_branch
    %75 = sbr.rel (0) target = $region89
  $region88: #{visualbert_classification_forward.1} parent=0 // pred_region
    _
  $region89: #{visualbert_classification_forward.1} parent=0 // pred_fallthru
    _
  // Predicated region
  $region90: #{visualbert_classification_forward.1} parent=0 // pred_check
    _
  $region91: #{visualbert_classification_forward.1} parent=0 // pred_check_branch
    %77 = sbr.rel (0) target = $region93
  $region92: #{visualbert_classification_forward.1} parent=0 // pred_region
    _
  $region93: #{visualbert_classification_forward.1} parent=0 // pred_fallthru
    _
  // Predicated region
  $region94: #{visualbert_classification_forward.1} parent=0 // pred_check
    _
  $region95: #{visualbert_classification_forward.1} parent=0 // pred_check_branch
    %79 = sbr.rel (0) target = $region97
  $region96: #{visualbert_classification_forward.1} parent=0 // pred_region
    _
  $region97: #{visualbert_classification_forward.1} parent=0 // pred_fallthru
    _
  // Predicated region
  $region98: #{visualbert_classification_forward.1} parent=0 // pred_check
    _
  $region99: #{visualbert_classification_forward.1} parent=0 // pred_check_branch
    %81 = sbr.rel (0) target = $region101
  $region100: #{visualbert_classification_forward.1} parent=0 // pred_region
    _
  $region101: #{visualbert_classification_forward.1} parent=0 // pred_fallthru
    _
  // Predicated region
  $region102: #{visualbert_classification_forward.1} parent=0 // pred_check
    _
  $region103: #{visualbert_classification_forward.1} parent=0 // pred_check_branch
    %83 = sbr.rel (0) target = $region105
  $region104: #{visualbert_classification_forward.1} parent=0 // pred_region
    _
  $region105: #{visualbert_classification_forward.1} parent=0 // pred_fallthru
    _
  // Predicated region
  $region106: #{visualbert_classification_forward.1} parent=0 // pred_check
    _
  $region107: #{visualbert_classification_forward.1} parent=0 // pred_check_branch
    %85 = sbr.rel (0) target = $region109
  $region108: #{visualbert_classification_forward.1} parent=0 // pred_region
    _
  $region109: #{visualbert_classification_forward.1} parent=0 // pred_fallthru
    _
  %v87 = vld [vmem:[%s2] sm:$0xff]
  %v88 = vld [vmem:[%s2 + $0x8] sm:$0xff]
  %v89 = vld [vmem:[%s2 + $0x10] sm:$0xff]
  %v90 = vld [vmem:[%s2 + $0x18] sm:$0xff]
  %v91 = vld [vmem:[%s0] sm:$0xff]
  %v92 = vld [vmem:[%s0 + $0x8] sm:$0xff]
  %v93 = vld [vmem:[%s5] sm:$0x1]
  %v94 = vld [vmem:[%s6] sm:$0x1]
  %vm95 = vcmask 523264
  %v96 = vsel %vm95, %v91, 0.0
  %97 = vadd.xlane.f32.xlu0 %v96
  %v98 = vpop.xlane.xlu0 %97
  %v99 = vsel %vm95, %v92, 0.0
  %100 = vadd.xlane.f32.xlu0 %v99
  %v101 = vpop.xlane.xlu0 %100
  %v102 = vrcp.pop 64.0
  %v103 = vmul.f32 %v98, %v102
  %v104 = vmul.f32 %v101, %v102
  %v105 = vsub.f32 %v91, %v103
  %v106 = vsub.f32 %v92, %v104
  %v107 = vmul.f32 %v105, %v105
  %v108 = vmul.f32 %v106, %v106
  %v109 = vsel %vm95, %v107, 0.0
  %110 = vadd.xlane.f32.xlu0 %v109
  %v111 = vpop.xlane.xlu0 %110
  %v112 = vsel %vm95, %v108, 0.0
  %113 = vadd.xlane.f32.xlu0 %v112
  %v114 = vpop.xlane.xlu0 %113
  %v115 = vmul.f32 %v111, %v102
  %v116 = vmul.f32 %v114, %v102
  %v117 = vadd.f32 %v115, 1e-12
  %v118 = vadd.f32 %v116, 1e-12
  %v119 = vrsqrt.pop %v117
  %v120 = vrsqrt.pop %v118
  %v121 = vmul.f32 %v105, %v119
  %v122 = vmul.f32 %v106, %v120
  %v124 = vlaneseq
  %v125 = vshrl.u32 %v124, 7
  %v126 = vsub.s32 0, %v125
  %v127 = vrot.slane %v93, %v126
  %v129 = vmul.f32 %v121, %v127
  %v130 = vmul.f32 %v122, %v127
  %v132 = vlaneseq
  %v133 = vshrl.u32 %v132, 7
  %v134 = vsub.s32 0, %v133
  %v135 = vrot.slane %v94, %v134
  %v137 = vadd.f32 %v129, %v135
  %v138 = vadd.f32 %v130, %v135
  %v139 = vld [vmem:[%s1] sm:$0xf]
  %v140 = vld [vmem:[%s1 + $0x4] sm:$0xf]
  %v141 = vld [vmem:[%s3] sm:$0xf]
  %v142 = vld [vmem:[%s3 + $0x4] sm:$0xf]
  %v143 = vld [vmem:[%s3 + $0x8] sm:$0xf]
  %v144 = vld [vmem:[%s3 + $0xc] sm:$0xf]
  %v145 = vld [vmem:[%s4] sm:$0x1]
  %v147 = vlaneseq
  %v148 = vshrl.u32 %v147, 7
  %v149 = vsub.s32 0, %v148
  %v150 = vrot.slane %v145, %v149
  %v154 = vunpack.c.l.b16 %v139
  %v155 = vunpack.c.l.b16 %v140
  %v156 = vpack.c.b16 %v155, %v154
  %v161 = vunpack.c.l.b16 %v141
  %v162 = vunpack.c.l.b16 %v142
  %v163 = vunpack.c.l.b16 %v143
  %v164 = vunpack.c.l.b16 %v144
  %v165 = vpack.c.b16 %v162, %v161
  %v166 = vpack.c.b16 %v164, %v163
  %vm169 = vcmask 261120
  %v171 = vsel %vm169, %v156, 0
  %173 = vmatprep.subr.bf16.mxu0 0
  %174 = vmatpush1.bf16.msra.mxu0 %v165
  %175 = vmatprep.subr.bf16.mxu0 0
  %176 = vmatpush1.bf16.msra.mxu0 %v166
  %177 = vmatprep.subr.bf16.mxu0 0
  %178 = vmatpush1.bf16.msra.mxu0 0
  %179 = vmatprep.subr.bf16.mxu0 0
  %180 = vmatpush1.bf16.msra.mxu0 0
  %181 = vmatprep.subr.bf16.mxu0 0
  %182 = vmatpush1.bf16.msra.mxu0 0
  %183 = vmatprep.subr.bf16.mxu0 0
  %184 = vmatpush1.bf16.msra.mxu0 0
  %185 = vmatprep.subr.bf16.mxu0 0
  %186 = vmatpush1.bf16.msra.mxu0 0
  %187 = vmatprep.subr.bf16.mxu0 0
  %188 = vmatpush1.bf16.msra.mxu0 0
  %189 = vmatprep.subr.bf16.mxu0 0
  %190 = vmatpush1.bf16.msra.mxu0 0
  %191 = vmatprep.subr.bf16.mxu0 0
  %192 = vmatpush1.bf16.msra.mxu0 0
  %193 = vmatprep.subr.bf16.mxu0 0
  %194 = vmatpush1.bf16.msra.mxu0 0
  %195 = vmatprep.subr.bf16.mxu0 0
  %196 = vmatpush1.bf16.msra.mxu0 0
  %197 = vmatprep.subr.bf16.mxu0 0
  %198 = vmatpush1.bf16.msra.mxu0 0
  %199 = vmatprep.subr.bf16.mxu0 0
  %200 = vmatpush1.bf16.msra.mxu0 0
  %201 = vmatprep.subr.bf16.mxu0 0
  %202 = vmatpush1.bf16.msra.mxu0 0
  %203 = vmatprep.subr.bf16.mxu0 0
  %204 = vmatpush1.bf16.msra.mxu0 0
  %205 = vmatprep.mubr.bf16.mxu0 0
  %206 = vmatmul.mubr.bf16.gmra.mrb[0].mxu0 %v171
  %v207 = vpop.f32.mrb[0].mxu0
  %v208 = vadd.f32 %v150, %v207
  %v209 = vpop.f32.mrb[0].mxu0
  %v210 = vpop.f32.mrb[0].mxu0
  %v211 = vadd.f32 %v150, %v210
  %v212 = vpop.f32.mrb[0].mxu0
  %213 = vdwg.mxu0
  %v214 = vsel %vm95, %v208, 0.0
  %215 = vadd.xlane.f32.xlu0 %v214
  %v216 = vpop.xlane.xlu0 %215
  %v217 = vsel %vm95, %v211, 0.0
  %218 = vadd.xlane.f32.xlu0 %v217
  %v219 = vpop.xlane.xlu0 %218
  %v220 = vmul.f32 %v216, %v102
  %v221 = vmul.f32 %v219, %v102
  %v222 = vsub.f32 %v208, %v220
  %v223 = vsub.f32 %v211, %v221
  %v224 = vmul.f32 %v222, %v222
  %v225 = vmul.f32 %v223, %v223
  %v226 = vsel %vm95, %v224, 0.0
  %227 = vadd.xlane.f32.xlu0 %v226
  %v228 = vpop.xlane.xlu0 %227
  %v229 = vsel %vm95, %v225, 0.0
  %230 = vadd.xlane.f32.xlu0 %v229
  %v231 = vpop.xlane.xlu0 %230
  %v232 = vmul.f32 %v228, %v102
  %v233 = vmul.f32 %v231, %v102
  %v234 = vadd.f32 %v232, 1e-12
  %v235 = vadd.f32 %v233, 1e-12
  %v236 = vrsqrt.pop %v234
  %v237 = vrsqrt.pop %v235
  %v238 = vmul.f32 %v222, %v236
  %v239 = vmul.f32 %v223, %v237
  %v240 = vmul.f32 %v238, %v127
  %v241 = vmul.f32 %v239, %v127
  %v242 = vadd.f32 %v240, %v135
  %v243 = vadd.f32 %v241, %v135
  %v244 = vpack.c.bf16 %v242, %v137
  %v245 = vpack.c.bf16 %v243, %v138
  %v246 = vld [vmem:[%s7] sm:$0xff]
  %v247 = vld [vmem:[%s7 + $0x8] sm:$0xff]
  %v248 = vld [vmem:[%s7 + $0x10] sm:$0xff]
  %v249 = vld [vmem:[%s7 + $0x18] sm:$0xff]
  %v250 = vld [vmem:[%s7 + $0x20] sm:$0xff]
  %v251 = vld [vmem:[%s7 + $0x28] sm:$0xff]
  %v252 = vld [vmem:[%s7 + $0x30] sm:$0xff]
  %v253 = vld [vmem:[%s7 + $0x38] sm:$0xff]
  %v254 = vld [vmem:[%s8] sm:$0x3]
  %v256 = vlaneseq
  %v257 = vshrl.u32 %v256, 7
  %v258 = vsub.s32 0, %v257
  %v259 = vrot.slane %v254, %v258
  %v260 = vlaneseq
  %v261 = vshrl.u32 %v260, 7
  %v262 = vsub.s32 1, %v261
  %v263 = vrot.slane %v254, %v262
  %v274 = vunpack.c.l.b16 %v246
  %v275 = vunpack.c.h.b16 %v246
  %v276 = vunpack.c.l.b16 %v247
  %v277 = vunpack.c.h.b16 %v247
  %v278 = vunpack.c.l.b16 %v248
  %v279 = vunpack.c.h.b16 %v248
  %v280 = vunpack.c.l.b16 %v249
  %v281 = vunpack.c.h.b16 %v249
  %v282 = vunpack.c.l.b16 %v250
  %v283 = vunpack.c.h.b16 %v250
  %v284 = vunpack.c.l.b16 %v251
  %v285 = vunpack.c.h.b16 %v251
  %v286 = vunpack.c.l.b16 %v252
  %v287 = vunpack.c.h.b16 %v252
  %v288 = vunpack.c.l.b16 %v253
  %v289 = vunpack.c.h.b16 %v253
  %v290 = vpack.c.b16 %v276, %v274
  %v291 = vpack.c.b16 %v277, %v275
  %v292 = vpack.c.b16 %v280, %v278
  %v293 = vpack.c.b16 %v281, %v279
  %v294 = vpack.c.b16 %v284, %v282
  %v295 = vpack.c.b16 %v285, %v283
  %v296 = vpack.c.b16 %v288, %v286
  %v297 = vpack.c.b16 %v289, %v287
  %v307 = vsel %vm95, %v244, 0
  %v310 = vsel %vm95, %v245, 0
  %312 = vmatprep.subr.bf16.mxu0 %v291
  %313 = vmatpush1.bf16.msra.mxu0 %v290
  %314 = vmatprep.subr.bf16.mxu0 %v293
  %315 = vmatpush1.bf16.msra.mxu0 %v292
  %316 = vmatprep.subr.bf16.mxu0 %v295
  %317 = vmatpush1.bf16.msra.mxu0 %v294
  %318 = vmatprep.subr.bf16.mxu0 %v297
  %319 = vmatpush1.bf16.msra.mxu0 %v296
  %320 = vmatprep.subr.bf16.mxu0 0
  %321 = vmatpush1.bf16.msra.mxu0 0
  %322 = vmatprep.subr.bf16.mxu0 0
  %323 = vmatpush1.bf16.msra.mxu0 0
  %324 = vmatprep.subr.bf16.mxu0 0
  %325 = vmatpush1.bf16.msra.mxu0 0
  %326 = vmatprep.subr.bf16.mxu0 0
  %327 = vmatpush1.bf16.msra.mxu0 0
  %328 = vmatprep.subr.bf16.mxu0 0
  %329 = vmatpush1.bf16.msra.mxu0 0
  %330 = vmatprep.subr.bf16.mxu0 0
  %331 = vmatpush1.bf16.msra.mxu0 0
  %332 = vmatprep.subr.bf16.mxu0 0
  %333 = vmatpush1.bf16.msra.mxu0 0
  %334 = vmatprep.subr.bf16.mxu0 0
  %335 = vmatpush1.bf16.msra.mxu0 0
  %336 = vmatprep.subr.bf16.mxu0 0
  %337 = vmatpush1.bf16.msra.mxu0 0
  %338 = vmatprep.subr.bf16.mxu0 0
  %339 = vmatpush1.bf16.msra.mxu0 0
  %340 = vmatprep.subr.bf16.mxu0 0
  %341 = vmatpush1.bf16.msra.mxu0 0
  %342 = vmatprep.subr.bf16.mxu0 0
  %343 = vmatpush1.bf16.msra.mxu0 0
  %344 = vmatprep.mubr.bf16.mxu0 0
  %345 = vmatmul.mubr.bf16.gmra.mrb[0].mxu0 %v307
  %v346 = vpop.f32.mrb[0].mxu0
  %v347 = vadd.f32 %v259, %v346
  %v348 = vpop.f32.mrb[0].mxu0
  %v349 = vadd.f32 %v263, %v348
  %v350 = vpop.f32.mrb[0].mxu0
  %v351 = vadd.f32 %v259, %v350
  %v352 = vpop.f32.mrb[0].mxu0
  %v353 = vadd.f32 %v263, %v352
  %354 = vmatprep.mubr.bf16.mxu0 0
  %355 = vmatmul.mubr.bf16.gmra.mrb[0].mxu0 %v310
  %v356 = vpop.f32.mrb[0].mxu0
  %v357 = vadd.f32 %v259, %v356
  %v358 = vpop.f32.mrb[0].mxu0
  %v359 = vadd.f32 %v263, %v358
  %v360 = vpop.f32.mrb[0].mxu0
  %v361 = vadd.f32 %v259, %v360
  %v362 = vpop.f32.mrb[0].mxu0
  %v363 = vadd.f32 %v263, %v362
  %364 = vdwg.mxu0
  %v365 = vpack.c.bf16 %v351, %v347
  %v366 = vpack.c.bf16 %v361, %v357
  %v367 = vpack.c.bf16 %v353, %v349
  %v368 = vpack.c.bf16 %v363, %v359
  %371 = vrot.lane.b32.xlu0 %v365, 64
  %v372 = vpop.permute.xlu0 %371
  %373 = vrot.lane.b32.xlu0 %v366, 64
  %v374 = vpop.permute.xlu0 %373
  %vm375 = vcmask 130048
  %v377 = vsel %vm375, %v365, 0
  %v380 = vsel %vm375, %v366, 0
  %v383 = vsel %vm375, %v372, 0
  %v386 = vsel %vm375, %v374, 0
  %388 = vmatprep.subr.bf16.mxu0 0
  %389 = vmatpush1.bf16.xpose.msra.mxu0 %v383
  %390 = vmatprep.subr.bf16.mxu0 0
  %391 = vmatpush1.bf16.xpose.msra.mxu0 %v386
  %392 = vmatprep.subr.bf16.mxu0 0
  %393 = vmatpush1.bf16.xpose.msra.mxu0 0
  %394 = vmatprep.subr.bf16.mxu0 0
  %395 = vmatpush1.bf16.xpose.msra.mxu0 0
  %396 = vmatprep.subr.bf16.mxu0 0
  %397 = vmatpush1.bf16.xpose.msra.mxu0 0
  %398 = vmatprep.subr.bf16.mxu0 0
  %399 = vmatpush1.bf16.xpose.msra.mxu0 0
  %400 = vmatprep.subr.bf16.mxu0 0
  %401 = vmatpush1.bf16.xpose.msra.mxu0 0
  %402 = vmatprep.subr.bf16.mxu0 0
  %403 = vmatpush1.bf16.xpose.msra.mxu0 0
  %404 = vmatprep.subr.bf16.mxu0 0
  %405 = vmatpush1.bf16.xpose.msra.mxu0 0
  %406 = vmatprep.subr.bf16.mxu0 0
  %407 = vmatpush1.bf16.xpose.msra.mxu0 0
  %408 = vmatprep.subr.bf16.mxu0 0
  %409 = vmatpush1.bf16.xpose.msra.mxu0 0
  %410 = vmatprep.subr.bf16.mxu0 0
  %411 = vmatpush1.bf16.xpose.msra.mxu0 0
  %412 = vmatprep.subr.bf16.mxu0 0
  %413 = vmatpush1.bf16.xpose.msra.mxu0 0
  %414 = vmatprep.subr.bf16.mxu0 0
  %415 = vmatpush1.bf16.xpose.msra.mxu0 0
  %416 = vmatprep.subr.bf16.mxu0 0
  %417 = vmatpush1.bf16.xpose.msra.mxu0 0
  %418 = vmatprep.subr.bf16.mxu0 0
  %419 = vmatpush1.bf16.xpose.msra.mxu0 0
  %420 = vmatprep.mubr.bf16.mxu0 0
  %421 = vmatmul.mubr.bf16.gmra.mrb[0].mxu0 %v377
  %v422 = vpop.f32.mrb[0].mxu0
  %v423 = vadd.f32 %v87, %v422
  %v424 = vpop.f32.mrb[0].mxu0
  %v425 = vpop.f32.mrb[0].mxu0
  %v426 = vadd.f32 %v88, %v425
  %v427 = vpop.f32.mrb[0].mxu0
  %428 = vmatprep.mubr.bf16.mxu0 0
  %429 = vmatmul.mubr.bf16.gmra.mrb[0].mxu0 %v380
  %v430 = vpop.f32.mrb[0].mxu0
  %v431 = vadd.f32 %v89, %v430
  %v432 = vpop.f32.mrb[0].mxu0
  %v433 = vpop.f32.mrb[0].mxu0
  %v434 = vadd.f32 %v90, %v433
  %v435 = vpop.f32.mrb[0].mxu0
  %436 = vdwg.mxu0
  %v437 = vsel %vm169, %v423, -inf
  %438 = vmax.xlane.f32.xlu0 %v437
  %v439 = vpop.xlane.xlu0 %438
  %v440 = vsel %vm169, %v426, -inf
  %441 = vmax.xlane.f32.xlu0 %v440
  %v442 = vpop.xlane.xlu0 %441
  %v443 = vsel %vm169, %v431, -inf
  %444 = vmax.xlane.f32.xlu0 %v443
  %v445 = vpop.xlane.xlu0 %444
  %v446 = vsel %vm169, %v434, -inf
  %447 = vmax.xlane.f32.xlu0 %v446
  %v448 = vpop.xlane.xlu0 %447
  %v449 = vsub.f32 %v423, %v439
  %v450 = vsub.f32 %v426, %v442
  %v451 = vsub.f32 %v431, %v445
  %v452 = vsub.f32 %v434, %v448
  %v453 = vmul.f32 %v449, 1.442695
  %v454 = vpow.pop %v453
  %v455 = vmul.f32 %v450, 1.442695
  %v456 = vpow.pop %v455
  %v457 = vmul.f32 %v451, 1.442695
  %v458 = vpow.pop %v457
  %v459 = vmul.f32 %v452, 1.442695
  %v460 = vpow.pop %v459
  %v461 = vsel %vm169, %v454, 0.0
  %462 = vadd.xlane.f32.xlu0 %v461
  %v463 = vpop.xlane.xlu0 %462
  %v464 = vsel %vm169, %v456, 0.0
  %465 = vadd.xlane.f32.xlu0 %v464
  %v466 = vpop.xlane.xlu0 %465
  %v467 = vsel %vm169, %v458, 0.0
  %468 = vadd.xlane.f32.xlu0 %v467
  %v469 = vpop.xlane.xlu0 %468
  %v470 = vsel %vm169, %v460, 0.0
  %471 = vadd.xlane.f32.xlu0 %v470
  %v472 = vpop.xlane.xlu0 %471
  %v473 = vrcp.pop %v463
  %v474 = vrcp.pop %v466
  %v475 = vrcp.pop %v469
  %v476 = vrcp.pop %v472
  %v477 = vmul.f32 %v454, %v473
  %v478 = vmul.f32 %v456, %v474
  %v479 = vmul.f32 %v458, %v475
  %v480 = vmul.f32 %v460, %v476
  %v481 = vpack.c.bf16 %v478, %v477
  %v482 = vpack.c.bf16 %v480, %v479
  %v484 = vsel %vm169, %v481, 0
  %v487 = vsel %vm169, %v482, 0
  %489 = vmatprep.subr.bf16.mxu0 0
  %490 = vmatpush1.bf16.msra.mxu0 %v367
  %491 = vmatprep.subr.bf16.mxu0 0
  %492 = vmatpush1.bf16.msra.mxu0 %v368
  %493 = vmatprep.subr.bf16.mxu0 0
  %494 = vmatpush1.bf16.msra.mxu0 0
  %495 = vmatprep.subr.bf16.mxu0 0
  %496 = vmatpush1.bf16.msra.mxu0 0
  %497 = vmatprep.subr.bf16.mxu0 0
  %498 = vmatpush1.bf16.msra.mxu0 0
  %499 = vmatprep.subr.bf16.mxu0 0
  %500 = vmatpush1.bf16.msra.mxu0 0
  %501 = vmatprep.subr.bf16.mxu0 0
  %502 = vmatpush1.bf16.msra.mxu0 0
  %503 = vmatprep.subr.bf16.mxu0 0
  %504 = vmatpush1.bf16.msra.mxu0 0
  %505 = vmatprep.subr.bf16.mxu0 0
  %506 = vmatpush1.bf16.msra.mxu0 0
  %507 = vmatprep.subr.bf16.mxu0 0
  %508 = vmatpush1.bf16.msra.mxu0 0
  %509 = vmatprep.subr.bf16.mxu0 0
  %510 = vmatpush1.bf16.msra.mxu0 0
  %511 = vmatprep.subr.bf16.mxu0 0
  %512 = vmatpush1.bf16.msra.mxu0 0
  %513 = vmatprep.subr.bf16.mxu0 0
  %514 = vmatpush1.bf16.msra.mxu0 0
  %515 = vmatprep.subr.bf16.mxu0 0
  %516 = vmatpush1.bf16.msra.mxu0 0
  %517 = vmatprep.subr.bf16.mxu0 0
  %518 = vmatpush1.bf16.msra.mxu0 0
  %519 = vmatprep.subr.bf16.mxu0 0
  %520 = vmatpush1.bf16.msra.mxu0 0
  %521 = vmatprep.mubr.bf16.mxu0 0
  %522 = vmatmul.mubr.bf16.gmra.mrb[0].mxu0 %v484
  %v523 = vpop.f32.mrb[0].mxu0
  %v524 = vadd.f32 0.0, %v523
  %v525 = vpop.f32.mrb[0].mxu0
  %v526 = vpop.f32.mrb[0].mxu0
  %v527 = vadd.f32 0.0, %v526
  %v528 = vpop.f32.mrb[0].mxu0
  %529 = vmatprep.mubr.bf16.mxu0 0
  %530 = vmatmul.mubr.bf16.gmra.mrb[0].mxu0 %v487
  %v531 = vpop.f32.mrb[0].mxu0
  %v532 = vadd.f32 0.0, %v531
  %v533 = vpop.f32.mrb[0].mxu0
  %v534 = vpop.f32.mrb[0].mxu0
  %v535 = vadd.f32 0.0, %v534
  %v536 = vpop.f32.mrb[0].mxu0
  %537 = vdwg.mxu0
  %538 = vrot.lane.b32.xlu0 %v365, 112
  %v539 = vpop.permute.xlu0 %538
  %540 = vrot.lane.b32.xlu0 %v366, 112
  %v541 = vpop.permute.xlu0 %540
  %542 = vrot.lane.b32.xlu0 %v365, 48
  %v543 = vpop.permute.xlu0 %542
  %544 = vrot.lane.b32.xlu0 %v366, 48
  %v545 = vpop.permute.xlu0 %544
  %v547 = vsel %vm375, %v539, 0
  %v550 = vsel %vm375, %v541, 0
  %v553 = vsel %vm375, %v543, 0
  %v556 = vsel %vm375, %v545, 0
  %558 = vmatprep.subr.bf16.mxu0 0
  %559 = vmatpush1.bf16.xpose.msra.mxu0 %v553
  %560 = vmatprep.subr.bf16.mxu0 0
  %561 = vmatpush1.bf16.xpose.msra.mxu0 %v556
  %562 = vmatprep.subr.bf16.mxu0 0
  %563 = vmatpush1.bf16.xpose.msra.mxu0 0
  %564 = vmatprep.subr.bf16.mxu0 0
  %565 = vmatpush1.bf16.xpose.msra.mxu0 0
  %566 = vmatprep.subr.bf16.mxu0 0
  %567 = vmatpush1.bf16.xpose.msra.mxu0 0
  %568 = vmatprep.subr.bf16.mxu0 0
  %569 = vmatpush1.bf16.xpose.msra.mxu0 0
  %570 = vmatprep.subr.bf16.mxu0 0
  %571 = vmatpush1.bf16.xpose.msra.mxu0 0
  %572 = vmatprep.subr.bf16.mxu0 0
  %573 = vmatpush1.bf16.xpose.msra.mxu0 0
  %574 = vmatprep.subr.bf16.mxu0 0
  %575 = vmatpush1.bf16.xpose.msra.mxu0 0
  %576 = vmatprep.subr.bf16.mxu0 0
  %577 = vmatpush1.bf16.xpose.msra.mxu0 0
  %578 = vmatprep.subr.bf16.mxu0 0
  %579 = vmatpush1.bf16.xpose.msra.mxu0 0
  %580 = vmatprep.subr.bf16.mxu0 0
  %581 = vmatpush1.bf16.xpose.msra.mxu0 0
  %582 = vmatprep.subr.bf16.mxu0 0
  %583 = vmatpush1.bf16.xpose.msra.mxu0 0
  %584 = vmatprep.subr.bf16.mxu0 0
  %585 = vmatpush1.bf16.xpose.msra.mxu0 0
  %586 = vmatprep.subr.bf16.mxu0 0
  %587 = vmatpush1.bf16.xpose.msra.mxu0 0
  %588 = vmatprep.subr.bf16.mxu0 0
  %589 = vmatpush1.bf16.xpose.msra.mxu0 0
  %590 = vmatprep.mubr.bf16.mxu0 0
  %591 = vmatmul.mubr.bf16.gmra.mrb[0].mxu0 %v547
  %v592 = vpop.f32.mrb[0].mxu0
  %v593 = vadd.f32 %v87, %v592
  %v594 = vpop.f32.mrb[0].mxu0
  %v595 = vpop.f32.mrb[0].mxu0
  %v596 = vadd.f32 %v88, %v595
  %v597 = vpop.f32.mrb[0].mxu0
  %598 = vmatprep.mubr.bf16.mxu0 0
  %599 = vmatmul.mubr.bf16.gmra.mrb[0].mxu0 %v550
  %v600 = vpop.f32.mrb[0].mxu0
  %v601 = vadd.f32 %v89, %v600
  %v602 = vpop.f32.mrb[0].mxu0
  %v603 = vpop.f32.mrb[0].mxu0
  %v604 = vadd.f32 %v90, %v603
  %v605 = vpop.f32.mrb[0].mxu0
  %606 = vdwg.mxu0
  %v607 = vsel %vm169, %v593, -inf
  %608 = vmax.xlane.f32.xlu0 %v607
  %v609 = vpop.xlane.xlu0 %608
  %v610 = vsel %vm169, %v596, -inf
  %611 = vmax.xlane.f32.xlu0 %v610
  %v612 = vpop.xlane.xlu0 %611
  %v613 = vsel %vm169, %v601, -inf
  %614 = vmax.xlane.f32.xlu0 %v613
  %v615 = vpop.xlane.xlu0 %614
  %v616 = vsel %vm169, %v604, -inf
  %617 = vmax.xlane.f32.xlu0 %v616
  %v618 = vpop.xlane.xlu0 %617
  %v619 = vsub.f32 %v593, %v609
  %v620 = vsub.f32 %v596, %v612
  %v621 = vsub.f32 %v601, %v615
  %v622 = vsub.f32 %v604, %v618
  %v623 = vmul.f32 %v619, 1.442695
  %v624 = vpow.pop %v623
  %v625 = vmul.f32 %v620, 1.442695
  %v626 = vpow.pop %v625
  %v627 = vmul.f32 %v621, 1.442695
  %v628 = vpow.pop %v627
  %v629 = vmul.f32 %v622, 1.442695
  %v630 = vpow.pop %v629
  %v631 = vsel %vm169, %v624, 0.0
  %632 = vadd.xlane.f32.xlu0 %v631
  %v633 = vpop.xlane.xlu0 %632
  %v634 = vsel %vm169, %v626, 0.0
  %635 = vadd.xlane.f32.xlu0 %v634
  %v636 = vpop.xlane.xlu0 %635
  %v637 = vsel %vm169, %v628, 0.0
  %638 = vadd.xlane.f32.xlu0 %v637
  %v639 = vpop.xlane.xlu0 %638
  %v640 = vsel %vm169, %v630, 0.0
  %641 = vadd.xlane.f32.xlu0 %v640
  %v642 = vpop.xlane.xlu0 %641
  %v643 = vrcp.pop %v633
  %v644 = vrcp.pop %v636
  %v645 = vrcp.pop %v639
  %v646 = vrcp.pop %v642
  %v647 = vmul.f32 %v624, %v643
  %v648 = vmul.f32 %v626, %v644
  %v649 = vmul.f32 %v628, %v645
  %v650 = vmul.f32 %v630, %v646
  %v651 = vpack.c.bf16 %v648, %v647
  %v652 = vpack.c.bf16 %v650, %v649
  %655 = vrot.lane.b32.xlu0 %v367, 112
  %v656 = vpop.permute.xlu0 %655
  %657 = vrot.lane.b32.xlu0 %v368, 112
  %v658 = vpop.permute.xlu0 %657
  %v662 = vsel %vm169, %v651, 0
  %v665 = vsel %vm169, %v652, 0
  %667 = vmatprep.subr.bf16.mxu0 0
  %668 = vmatpush1.bf16.msra.mxu0 %v656
  %669 = vmatprep.subr.bf16.mxu0 0
  %670 = vmatpush1.bf16.msra.mxu0 %v658
  %671 = vmatprep.subr.bf16.mxu0 0
  %672 = vmatpush1.bf16.msra.mxu0 0
  %673 = vmatprep.subr.bf16.mxu0 0
  %674 = vmatpush1.bf16.msra.mxu0 0
  %675 = vmatprep.subr.bf16.mxu0 0
  %676 = vmatpush1.bf16.msra.mxu0 0
  %677 = vmatprep.subr.bf16.mxu0 0
  %678 = vmatpush1.bf16.msra.mxu0 0
  %679 = vmatprep.subr.bf16.mxu0 0
  %680 = vmatpush1.bf16.msra.mxu0 0
  %681 = vmatprep.subr.bf16.mxu0 0
  %682 = vmatpush1.bf16.msra.mxu0 0
  %683 = vmatprep.subr.bf16.mxu0 0
  %684 = vmatpush1.bf16.msra.mxu0 0
  %685 = vmatprep.subr.bf16.mxu0 0
  %686 = vmatpush1.bf16.msra.mxu0 0
  %687 = vmatprep.subr.bf16.mxu0 0
  %688 = vmatpush1.bf16.msra.mxu0 0
  %689 = vmatprep.subr.bf16.mxu0 0
  %690 = vmatpush1.bf16.msra.mxu0 0
  %691 = vmatprep.subr.bf16.mxu0 0
  %692 = vmatpush1.bf16.msra.mxu0 0
  %693 = vmatprep.subr.bf16.mxu0 0
  %694 = vmatpush1.bf16.msra.mxu0 0
  %695 = vmatprep.subr.bf16.mxu0 0
  %696 = vmatpush1.bf16.msra.mxu0 0
  %697 = vmatprep.subr.bf16.mxu0 0
  %698 = vmatpush1.bf16.msra.mxu0 0
  %699 = vmatprep.mubr.bf16.mxu0 0
  %700 = vmatmul.mubr.bf16.gmra.mrb[0].mxu0 %v662
  %v701 = vpop.f32.mrb[0].mxu0
  %v702 = vadd.f32 0.0, %v701
  %v703 = vpop.f32.mrb[0].mxu0
  %v704 = vpop.f32.mrb[0].mxu0
  %v705 = vadd.f32 0.0, %v704
  %v706 = vpop.f32.mrb[0].mxu0
  %707 = vmatprep.mubr.bf16.mxu0 0
  %708 = vmatmul.mubr.bf16.gmra.mrb[0].mxu0 %v665
  %v709 = vpop.f32.mrb[0].mxu0
  %v710 = vadd.f32 0.0, %v709
  %v711 = vpop.f32.mrb[0].mxu0
  %v712 = vpop.f32.mrb[0].mxu0
  %v713 = vadd.f32 0.0, %v712
  %v714 = vpop.f32.mrb[0].mxu0
  %715 = vdwg.mxu0
  %716 = vrot.lane.b32.xlu0 %v365, 96
  %v717 = vpop.permute.xlu0 %716
  %718 = vrot.lane.b32.xlu0 %v366, 96
  %v719 = vpop.permute.xlu0 %718
  %720 = vrot.lane.b32.xlu0 %v365, 32
  %v721 = vpop.permute.xlu0 %720
  %722 = vrot.lane.b32.xlu0 %v366, 32
  %v723 = vpop.permute.xlu0 %722
  %v725 = vsel %vm375, %v717, 0
  %v728 = vsel %vm375, %v719, 0
  %v731 = vsel %vm375, %v721, 0
  %v734 = vsel %vm375, %v723, 0
  %736 = vmatprep.subr.bf16.mxu0 0
  %737 = vmatpush1.bf16.xpose.msra.mxu0 %v731
  %738 = vmatprep.subr.bf16.mxu0 0
  %739 = vmatpush1.bf16.xpose.msra.mxu0 %v734
  %740 = vmatprep.subr.bf16.mxu0 0
  %741 = vmatpush1.bf16.xpose.msra.mxu0 0
  %742 = vmatprep.subr.bf16.mxu0 0
  %743 = vmatpush1.bf16.xpose.msra.mxu0 0
  %744 = vmatprep.subr.bf16.mxu0 0
  %745 = vmatpush1.bf16.xpose.msra.mxu0 0
  %746 = vmatprep.subr.bf16.mxu0 0
  %747 = vmatpush1.bf16.xpose.msra.mxu0 0
  %748 = vmatprep.subr.bf16.mxu0 0
  %749 = vmatpush1.bf16.xpose.msra.mxu0 0
  %750 = vmatprep.subr.bf16.mxu0 0
  %751 = vmatpush1.bf16.xpose.msra.mxu0 0
  %752 = vmatprep.subr.bf16.mxu0 0
  %753 = vmatpush1.bf16.xpose.msra.mxu0 0
  %754 = vmatprep.subr.bf16.mxu0 0
  %755 = vmatpush1.bf16.xpose.msra.mxu0 0
  %756 = vmatprep.subr.bf16.mxu0 0
  %757 = vmatpush1.bf16.xpose.msra.mxu0 0
  %758 = vmatprep.subr.bf16.mxu0 0
  %759 = vmatpush1.bf16.xpose.msra.mxu0 0
  %760 = vmatprep.subr.bf16.mxu0 0
  %761 = vmatpush1.bf16.xpose.msra.mxu0 0
  %762 = vmatprep.subr.bf16.mxu0 0
  %763 = vmatpush1.bf16.xpose.msra.mxu0 0
  %764 = vmatprep.subr.bf16.mxu0 0
  %765 = vmatpush1.bf16.xpose.msra.mxu0 0
  %766 = vmatprep.subr.bf16.mxu0 0
  %767 = vmatpush1.bf16.xpose.msra.mxu0 0
  %768 = vmatprep.mubr.bf16.mxu0 0
  %769 = vmatmul.mubr.bf16.gmra.mrb[0].mxu0 %v725
  %v770 = vpop.f32.mrb[0].mxu0
  %v771 = vadd.f32 %v87, %v770
  %v772 = vpop.f32.mrb[0].mxu0
  %v773 = vpop.f32.mrb[0].mxu0
  %v774 = vadd.f32 %v88, %v773
  %v775 = vpop.f32.mrb[0].mxu0
  %776 = vmatprep.mubr.bf16.mxu0 0
  %777 = vmatmul.mubr.bf16.gmra.mrb[0].mxu0 %v728
  %v778 = vpop.f32.mrb[0].mxu0
  %v779 = vadd.f32 %v89, %v778
  %v780 = vpop.f32.mrb[0].mxu0
  %v781 = vpop.f32.mrb[0].mxu0
  %v782 = vadd.f32 %v90, %v781
  %v783 = vpop.f32.mrb[0].mxu0
  %784 = vdwg.mxu0
  %v785 = vsel %vm169, %v771, -inf
  %786 = vmax.xlane.f32.xlu0 %v785
  %v787 = vpop.xlane.xlu0 %786
  %v788 = vsel %vm169, %v774, -inf
  %789 = vmax.xlane.f32.xlu0 %v788
  %v790 = vpop.xlane.xlu0 %789
  %v791 = vsel %vm169, %v779, -inf
  %792 = vmax.xlane.f32.xlu0 %v791
  %v793 = vpop.xlane.xlu0 %792
  %v794 = vsel %vm169, %v782, -inf
  %795 = vmax.xlane.f32.xlu0 %v794
  %v796 = vpop.xlane.xlu0 %795
  %v797 = vsub.f32 %v771, %v787
  %v798 = vsub.f32 %v774, %v790
  %v799 = vsub.f32 %v779, %v793
  %v800 = vsub.f32 %v782, %v796
  %v801 = vmul.f32 %v797, 1.442695
  %v802 = vpow.pop %v801
  %v803 = vmul.f32 %v798, 1.442695
  %v804 = vpow.pop %v803
  %v805 = vmul.f32 %v799, 1.442695
  %v806 = vpow.pop %v805
  %v807 = vmul.f32 %v800, 1.442695
  %v808 = vpow.pop %v807
  %v809 = vsel %vm169, %v802, 0.0
  %810 = vadd.xlane.f32.xlu0 %v809
  %v811 = vpop.xlane.xlu0 %810
  %v812 = vsel %vm169, %v804, 0.0
  %813 = vadd.xlane.f32.xlu0 %v812
  %v814 = vpop.xlane.xlu0 %813
  %v815 = vsel %vm169, %v806, 0.0
  %816 = vadd.xlane.f32.xlu0 %v815
  %v817 = vpop.xlane.xlu0 %816
  %v818 = vsel %vm169, %v808, 0.0
  %819 = vadd.xlane.f32.xlu0 %v818
  %v820 = vpop.xlane.xlu0 %819
  %v821 = vrcp.pop %v811
  %v822 = vrcp.pop %v814
  %v823 = vrcp.pop %v817
  %v824 = vrcp.pop %v820
  %v825 = vmul.f32 %v802, %v821
  %v826 = vmul.f32 %v804, %v822
  %v827 = vmul.f32 %v806, %v823
  %v828 = vmul.f32 %v808, %v824
  %v829 = vpack.c.bf16 %v826, %v825
  %v830 = vpack.c.bf16 %v828, %v827
  %831 = vrot.lane.b32.xlu0 %v367, 96
  %v832 = vpop.permute.xlu0 %831
  %833 = vrot.lane.b32.xlu0 %v368, 96
  %v834 = vpop.permute.xlu0 %833
  %v838 = vsel %vm169, %v829, 0
  %v841 = vsel %vm169, %v830, 0
  %843 = vmatprep.subr.bf16.mxu0 0
  %844 = vmatpush1.bf16.msra.mxu0 %v832
  %845 = vmatprep.subr.bf16.mxu0 0
  %846 = vmatpush1.bf16.msra.mxu0 %v834
  %847 = vmatprep.subr.bf16.mxu0 0
  %848 = vmatpush1.bf16.msra.mxu0 0
  %849 = vmatprep.subr.bf16.mxu0 0
  %850 = vmatpush1.bf16.msra.mxu0 0
  %851 = vmatprep.subr.bf16.mxu0 0
  %852 = vmatpush1.bf16.msra.mxu0 0
  %853 = vmatprep.subr.bf16.mxu0 0
  %854 = vmatpush1.bf16.msra.mxu0 0
  %855 = vmatprep.subr.bf16.mxu0 0
  %856 = vmatpush1.bf16.msra.mxu0 0
  %857 = vmatprep.subr.bf16.mxu0 0
  %858 = vmatpush1.bf16.msra.mxu0 0
  %859 = vmatprep.subr.bf16.mxu0 0
  %860 = vmatpush1.bf16.msra.mxu0 0
  %861 = vmatprep.subr.bf16.mxu0 0
  %862 = vmatpush1.bf16.msra.mxu0 0
  %863 = vmatprep.subr.bf16.mxu0 0
  %864 = vmatpush1.bf16.msra.mxu0 0
  %865 = vmatprep.subr.bf16.mxu0 0
  %866 = vmatpush1.bf16.msra.mxu0 0
  %867 = vmatprep.subr.bf16.mxu0 0
  %868 = vmatpush1.bf16.msra.mxu0 0
  %869 = vmatprep.subr.bf16.mxu0 0
  %870 = vmatpush1.bf16.msra.mxu0 0
  %871 = vmatprep.subr.bf16.mxu0 0
  %872 = vmatpush1.bf16.msra.mxu0 0
  %873 = vmatprep.subr.bf16.mxu0 0
  %874 = vmatpush1.bf16.msra.mxu0 0
  %875 = vmatprep.mubr.bf16.mxu0 0
  %876 = vmatmul.mubr.bf16.gmra.mrb[0].mxu0 %v838
  %v877 = vpop.f32.mrb[0].mxu0
  %v878 = vadd.f32 0.0, %v877
  %v879 = vpop.f32.mrb[0].mxu0
  %v880 = vpop.f32.mrb[0].mxu0
  %v881 = vadd.f32 0.0, %v880
  %v882 = vpop.f32.mrb[0].mxu0
  %883 = vmatprep.mubr.bf16.mxu0 0
  %884 = vmatmul.mubr.bf16.gmra.mrb[0].mxu0 %v841
  %v885 = vpop.f32.mrb[0].mxu0
  %v886 = vadd.f32 0.0, %v885
  %v887 = vpop.f32.mrb[0].mxu0
  %v888 = vpop.f32.mrb[0].mxu0
  %v889 = vadd.f32 0.0, %v888
  %v890 = vpop.f32.mrb[0].mxu0
  %891 = vdwg.mxu0
  %892 = vrot.lane.b32.xlu0 %v365, 80
  %v893 = vpop.permute.xlu0 %892
  %894 = vrot.lane.b32.xlu0 %v366, 80
  %v895 = vpop.permute.xlu0 %894
  %896 = vrot.lane.b32.xlu0 %v365, 16
  %v897 = vpop.permute.xlu0 %896
  %898 = vrot.lane.b32.xlu0 %v366, 16
  %v899 = vpop.permute.xlu0 %898
  %v901 = vsel %vm375, %v893, 0
  %v904 = vsel %vm375, %v895, 0
  %v907 = vsel %vm375, %v897, 0
  %v910 = vsel %vm375, %v899, 0
  %912 = vmatprep.subr.bf16.mxu0 0
  %913 = vmatpush1.bf16.xpose.msra.mxu0 %v907
  %914 = vmatprep.subr.bf16.mxu0 0
  %915 = vmatpush1.bf16.xpose.msra.mxu0 %v910
  %916 = vmatprep.subr.bf16.mxu0 0
  %917 = vmatpush1.bf16.xpose.msra.mxu0 0
  %918 = vmatprep.subr.bf16.mxu0 0
  %919 = vmatpush1.bf16.xpose.msra.mxu0 0
  %920 = vmatprep.subr.bf16.mxu0 0
  %921 = vmatpush1.bf16.xpose.msra.mxu0 0
  %922 = vmatprep.subr.bf16.mxu0 0
  %923 = vmatpush1.bf16.xpose.msra.mxu0 0
  %924 = vmatprep.subr.bf16.mxu0 0
  %925 = vmatpush1.bf16.xpose.msra.mxu0 0
  %926 = vmatprep.subr.bf16.mxu0 0
  %927 = vmatpush1.bf16.xpose.msra.mxu0 0
  %928 = vmatprep.subr.bf16.mxu0 0
  %929 = vmatpush1.bf16.xpose.msra.mxu0 0
  %930 = vmatprep.subr.bf16.mxu0 0
  %931 = vmatpush1.bf16.xpose.msra.mxu0 0
  %932 = vmatprep.subr.bf16.mxu0 0
  %933 = vmatpush1.bf16.xpose.msra.mxu0 0
  %934 = vmatprep.subr.bf16.mxu0 0
  %935 = vmatpush1.bf16.xpose.msra.mxu0 0
  %936 = vmatprep.subr.bf16.mxu0 0
  %937 = vmatpush1.bf16.xpose.msra.mxu0 0
  %938 = vmatprep.subr.bf16.mxu0 0
  %939 = vmatpush1.bf16.xpose.msra.mxu0 0
  %940 = vmatprep.subr.bf16.mxu0 0
  %941 = vmatpush1.bf16.xpose.msra.mxu0 0
  %942 = vmatprep.subr.bf16.mxu0 0
  %943 = vmatpush1.bf16.xpose.msra.mxu0 0
  %944 = vmatprep.mubr.bf16.mxu0 0
  %945 = vmatmul.mubr.bf16.gmra.mrb[0].mxu0 %v901
  %v946 = vpop.f32.mrb[0].mxu0
  %v947 = vadd.f32 %v87, %v946
  %v948 = vpop.f32.mrb[0].mxu0
  %v949 = vpop.f32.mrb[0].mxu0
  %v950 = vadd.f32 %v88, %v949
  %v951 = vpop.f32.mrb[0].mxu0
  %952 = vmatprep.mubr.bf16.mxu0 0
  %953 = vmatmul.mubr.bf16.gmra.mrb[0].mxu0 %v904
  %v954 = vpop.f32.mrb[0].mxu0
  %v955 = vadd.f32 %v89, %v954
  %v956 = vpop.f32.mrb[0].mxu0
  %v957 = vpop.f32.mrb[0].mxu0
  %v958 = vadd.f32 %v90, %v957
  %v959 = vpop.f32.mrb[0].mxu0
  %960 = vdwg.mxu0
  %v961 = vsel %vm169, %v947, -inf
  %962 = vmax.xlane.f32.xlu0 %v961
  %v963 = vpop.xlane.xlu0 %962
  %v964 = vsel %vm169, %v950, -inf
  %965 = vmax.xlane.f32.xlu0 %v964
  %v966 = vpop.xlane.xlu0 %965
  %v967 = vsel %vm169, %v955, -inf
  %968 = vmax.xlane.f32.xlu0 %v967
  %v969 = vpop.xlane.xlu0 %968
  %v970 = vsel %vm169, %v958, -inf
  %971 = vmax.xlane.f32.xlu0 %v970
  %v972 = vpop.xlane.xlu0 %971
  %v973 = vsub.f32 %v947, %v963
  %v974 = vsub.f32 %v950, %v966
  %v975 = vsub.f32 %v955, %v969
  %v976 = vsub.f32 %v958, %v972
  %v977 = vmul.f32 %v973, 1.442695
  %v978 = vpow.pop %v977
  %v979 = vmul.f32 %v974, 1.442695
  %v980 = vpow.pop %v979
  %v981 = vmul.f32 %v975, 1.442695
  %v982 = vpow.pop %v981
  %v983 = vmul.f32 %v976, 1.442695
  %v984 = vpow.pop %v983
  %v985 = vsel %vm169, %v978, 0.0
  %986 = vadd.xlane.f32.xlu0 %v985
  %v987 = vpop.xlane.xlu0 %986
  %v988 = vsel %vm169, %v980, 0.0
  %989 = vadd.xlane.f32.xlu0 %v988
  %v990 = vpop.xlane.xlu0 %989
  %v991 = vsel %vm169, %v982, 0.0
  %992 = vadd.xlane.f32.xlu0 %v991
  %v993 = vpop.xlane.xlu0 %992
  %v994 = vsel %vm169, %v984, 0.0
  %995 = vadd.xlane.f32.xlu0 %v994
  %v996 = vpop.xlane.xlu0 %995
  %v997 = vrcp.pop %v987
  %v998 = vrcp.pop %v990
  %v999 = vrcp.pop %v993
  %v1000 = vrcp.pop %v996
  %v1001 = vmul.f32 %v978, %v997
  %v1002 = vmul.f32 %v980, %v998
  %v1003 = vmul.f32 %v982, %v999
  %v1004 = vmul.f32 %v984, %v1000
  %v1005 = vpack.c.bf16 %v1002, %v1001
  %v1006 = vpack.c.bf16 %v1004, %v1003
  %1007 = vrot.lane.b32.xlu0 %v367, 80
  %v1008 = vpop.permute.xlu0 %1007
  %1009 = vrot.lane.b32.xlu0 %v368, 80
  %v1010 = vpop.permute.xlu0 %1009
  %v1014 = vsel %vm169, %v1005, 0
  %v1017 = vsel %vm169, %v1006, 0
  %1019 = vmatprep.subr.bf16.mxu0 0
  %1020 = vmatpush1.bf16.msra.mxu0 %v1008
  %1021 = vmatprep.subr.bf16.mxu0 0
  %1022 = vmatpush1.bf16.msra.mxu0 %v1010
  %1023 = vmatprep.subr.bf16.mxu0 0
  %1024 = vmatpush1.bf16.msra.mxu0 0
  %1025 = vmatprep.subr.bf16.mxu0 0
  %1026 = vmatpush1.bf16.msra.mxu0 0
  %1027 = vmatprep.subr.bf16.mxu0 0
  %1028 = vmatpush1.bf16.msra.mxu0 0
  %1029 = vmatprep.subr.bf16.mxu0 0
  %1030 = vmatpush1.bf16.msra.mxu0 0
  %1031 = vmatprep.subr.bf16.mxu0 0
  %1032 = vmatpush1.bf16.msra.mxu0 0
  %1033 = vmatprep.subr.bf16.mxu0 0
  %1034 = vmatpush1.bf16.msra.mxu0 0
  %1035 = vmatprep.subr.bf16.mxu0 0
  %1036 = vmatpush1.bf16.msra.mxu0 0
  %1037 = vmatprep.subr.bf16.mxu0 0
  %1038 = vmatpush1.bf16.msra.mxu0 0
  %1039 = vmatprep.subr.bf16.mxu0 0
  %1040 = vmatpush1.bf16.msra.mxu0 0
  %1041 = vmatprep.subr.bf16.mxu0 0
  %1042 = vmatpush1.bf16.msra.mxu0 0
  %1043 = vmatprep.subr.bf16.mxu0 0
  %1044 = vmatpush1.bf16.msra.mxu0 0
  %1045 = vmatprep.subr.bf16.mxu0 0
  %1046 = vmatpush1.bf16.msra.mxu0 0
  %1047 = vmatprep.subr.bf16.mxu0 0
  %1048 = vmatpush1.bf16.msra.mxu0 0
  %1049 = vmatprep.subr.bf16.mxu0 0
  %1050 = vmatpush1.bf16.msra.mxu0 0
  %1051 = vmatprep.mubr.bf16.mxu0 0
  %1052 = vmatmul.mubr.bf16.gmra.mrb[0].mxu0 %v1014
  %v1053 = vpop.f32.mrb[0].mxu0
  %v1054 = vadd.f32 0.0, %v1053
  %v1055 = vpop.f32.mrb[0].mxu0
  %v1056 = vpop.f32.mrb[0].mxu0
  %v1057 = vadd.f32 0.0, %v1056
  %v1058 = vpop.f32.mrb[0].mxu0
  %1059 = vmatprep.mubr.bf16.mxu0 0
  %1060 = vmatmul.mubr.bf16.gmra.mrb[0].mxu0 %v1017
  %v1061 = vpop.f32.mrb[0].mxu0
  %v1062 = vadd.f32 0.0, %v1061
  %v1063 = vpop.f32.mrb[0].mxu0
  %v1064 = vpop.f32.mrb[0].mxu0
  %v1065 = vadd.f32 0.0, %v1064
  %v1066 = vpop.f32.mrb[0].mxu0
  %1067 = vdwg.mxu0
  %1072 = vrot.lane.b32.xlu0 %v702, 16
  %v1073 = vpop.permute.xlu0 %1072
  %1074 = vrot.lane.b32.xlu0 %v705, 16
  %v1075 = vpop.permute.xlu0 %1074
  %1076 = vrot.lane.b32.xlu0 %v710, 16
  %v1077 = vpop.permute.xlu0 %1076
  %1078 = vrot.lane.b32.xlu0 %v713, 16
  %v1079 = vpop.permute.xlu0 %1078
  %1088 = vrot.lane.b32.xlu0 %v878, 32
  %v1089 = vpop.permute.xlu0 %1088
  %1090 = vrot.lane.b32.xlu0 %v881, 32
  %v1091 = vpop.permute.xlu0 %1090
  %1092 = vrot.lane.b32.xlu0 %v886, 32
  %v1093 = vpop.permute.xlu0 %1092
  %1094 = vrot.lane.b32.xlu0 %v889, 32
  %v1095 = vpop.permute.xlu0 %1094
  %1104 = vrot.lane.b32.xlu0 %v1054, 48
  %v1105 = vpop.permute.xlu0 %1104
  %1106 = vrot.lane.b32.xlu0 %v1057, 48
  %v1107 = vpop.permute.xlu0 %1106
  %1108 = vrot.lane.b32.xlu0 %v1062, 48
  %v1109 = vpop.permute.xlu0 %1108
  %1110 = vrot.lane.b32.xlu0 %v1065, 48
  %v1111 = vpop.permute.xlu0 %1110
  %v1116 = vsel %vm375, %v524, %v1073
  %v1117 = vsel %vm375, %v527, %v1075
  %v1118 = vsel %vm375, %v532, %v1077
  %v1119 = vsel %vm375, %v535, %v1079
  %v1120 = vsel %vm169, %v1116, %v1089
  %v1121 = vsel %vm169, %v1117, %v1091
  %v1122 = vsel %vm169, %v1118, %v1093
  %v1123 = vsel %vm169, %v1119, %v1095
  %vm1124 = vcmask 392192
  %v1125 = vsel %vm1124, %v1120, %v1105
  %v1126 = vsel %vm1124, %v1121, %v1107
  %v1127 = vsel %vm1124, %v1122, %v1109
  %v1128 = vsel %vm1124, %v1123, %v1111
  %v1129 = vpack.c.bf16 %v1126, %v1125
  %v1130 = vpack.c.bf16 %v1128, %v1127
  %v1131 = vld [vmem:[%s9] sm:$0xf]
  %v1132 = vld [vmem:[%s9 + $0x4] sm:$0xf]
  %v1133 = vld [vmem:[%s9 + $0x8] sm:$0xf]
  %v1134 = vld [vmem:[%s9 + $0xc] sm:$0xf]
  %v1135 = vld [vmem:[%s9 + $0x10] sm:$0xf]
  %v1136 = vld [vmem:[%s9 + $0x14] sm:$0xf]
  %v1137 = vld [vmem:[%s9 + $0x18] sm:$0xf]
  %v1138 = vld [vmem:[%s9 + $0x1c] sm:$0xf]
  %v1139 = vld [vmem:[%s10] sm:$0x1]
  %v1141 = vlaneseq
  %v1142 = vshrl.u32 %v1141, 7
  %v1143 = vsub.s32 0, %v1142
  %v1144 = vrot.slane %v1139, %v1143
  %v1154 = vunpack.c.l.b16 %v1131
  %v1155 = vunpack.c.l.b16 %v1132
  %v1156 = vunpack.c.l.b16 %v1133
  %v1157 = vunpack.c.l.b16 %v1134
  %v1158 = vunpack.c.l.b16 %v1135
  %v1159 = vunpack.c.l.b16 %v1136
  %v1160 = vunpack.c.l.b16 %v1137
  %v1161 = vunpack.c.l.b16 %v1138
  %v1162 = vpack.c.b16 %v1155, %v1154
  %v1163 = vpack.c.b16 %v1157, %v1156
  %v1164 = vpack.c.b16 %v1159, %v1158
  %v1165 = vpack.c.b16 %v1161, %v1160
  %v1171 = vsel %vm95, %v1129, 0
  %v1174 = vsel %vm95, %v1130, 0
  %1176 = vmatprep.subr.bf16.mxu0 0
  %1177 = vmatpush1.bf16.msra.mxu0 %v1162
  %1178 = vmatprep.subr.bf16.mxu0 0
  %1179 = vmatpush1.bf16.msra.mxu0 %v1163
  %1180 = vmatprep.subr.bf16.mxu0 0
  %1181 = vmatpush1.bf16.msra.mxu0 %v1164
  %1182 = vmatprep.subr.bf16.mxu0 0
  %1183 = vmatpush1.bf16.msra.mxu0 %v1165
  %1184 = vmatprep.subr.bf16.mxu0 0
  %1185 = vmatpush1.bf16.msra.mxu0 0
  %1186 = vmatprep.subr.bf16.mxu0 0
  %1187 = vmatpush1.bf16.msra.mxu0 0
  %1188 = vmatprep.subr.bf16.mxu0 0
  %1189 = vmatpush1.bf16.msra.mxu0 0
  %1190 = vmatprep.subr.bf16.mxu0 0
  %1191 = vmatpush1.bf16.msra.mxu0 0
  %1192 = vmatprep.subr.bf16.mxu0 0
  %1193 = vmatpush1.bf16.msra.mxu0 0
  %1194 = vmatprep.subr.bf16.mxu0 0
  %1195 = vmatpush1.bf16.msra.mxu0 0
  %1196 = vmatprep.subr.bf16.mxu0 0
  %1197 = vmatpush1.bf16.msra.mxu0 0
  %1198 = vmatprep.subr.bf16.mxu0 0
  %1199 = vmatpush1.bf16.msra.mxu0 0
  %1200 = vmatprep.subr.bf16.mxu0 0
  %1201 = vmatpush1.bf16.msra.mxu0 0
  %1202 = vmatprep.subr.bf16.mxu0 0
  %1203 = vmatpush1.bf16.msra.mxu0 0
  %1204 = vmatprep.subr.bf16.mxu0 0
  %1205 = vmatpush1.bf16.msra.mxu0 0
  %1206 = vmatprep.subr.bf16.mxu0 0
  %1207 = vmatpush1.bf16.msra.mxu0 0
  %1208 = vmatprep.mubr.bf16.mxu0 0
  %1209 = vmatmul.mubr.bf16.gmra.mrb[0].mxu0 %v1171
  %v1210 = vpop.f32.mrb[0].mxu0
  %v1211 = vadd.f32 %v1144, %v1210
  %v1212 = vpop.f32.mrb[0].mxu0
  %v1213 = vpop.f32.mrb[0].mxu0
  %v1214 = vadd.f32 %v1144, %v1213
  %v1215 = vpop.f32.mrb[0].mxu0
  %1216 = vmatprep.mubr.bf16.mxu0 0
  %1217 = vmatmul.mubr.bf16.gmra.mrb[0].mxu0 %v1174
  %v1218 = vpop.f32.mrb[0].mxu0
  %v1219 = vadd.f32 %v1144, %v1218
  %v1220 = vpop.f32.mrb[0].mxu0
  %v1221 = vpop.f32.mrb[0].mxu0
  %v1222 = vadd.f32 %v1144, %v1221
  %v1223 = vpop.f32.mrb[0].mxu0
  %1224 = vdwg.mxu0
  %v1225 = vadd.f32 %v1211, %v137
  %v1226 = vadd.f32 %v1214, %v242
  %v1227 = vadd.f32 %v1219, %v138
  %v1228 = vadd.f32 %v1222, %v243
  %v1229 = vld [vmem:[%s11] sm:$0x1]
  %v1230 = vld [vmem:[%s12] sm:$0x1]
  %v1231 = vsel %vm95, %v1225, 0.0
  %1232 = vadd.xlane.f32.xlu0 %v1231
  %v1233 = vpop.xlane.xlu0 %1232
  %v1234 = vsel %vm95, %v1226, 0.0
  %1235 = vadd.xlane.f32.xlu0 %v1234
  %v1236 = vpop.xlane.xlu0 %1235
  %v1237 = vsel %vm95, %v1227, 0.0
  %1238 = vadd.xlane.f32.xlu0 %v1237
  %v1239 = vpop.xlane.xlu0 %1238
  %v1240 = vsel %vm95, %v1228, 0.0
  %1241 = vadd.xlane.f32.xlu0 %v1240
  %v1242 = vpop.xlane.xlu0 %1241
  %v1243 = vmul.f32 %v1233, %v102
  %v1244 = vmul.f32 %v1236, %v102
  %v1245 = vmul.f32 %v1239, %v102
  %v1246 = vmul.f32 %v1242, %v102
  %v1247 = vsub.f32 %v1225, %v1243
  %v1248 = vsub.f32 %v1226, %v1244
  %v1249 = vsub.f32 %v1227, %v1245
  %v1250 = vsub.f32 %v1228, %v1246
  %v1251 = vmul.f32 %v1247, %v1247
  %v1252 = vmul.f32 %v1248, %v1248
  %v1253 = vmul.f32 %v1249, %v1249
  %v1254 = vmul.f32 %v1250, %v1250
  %v1255 = vsel %vm95, %v1251, 0.0
  %1256 = vadd.xlane.f32.xlu0 %v1255
  %v1257 = vpop.xlane.xlu0 %1256
  %v1258 = vsel %vm95, %v1252, 0.0
  %1259 = vadd.xlane.f32.xlu0 %v1258
  %v1260 = vpop.xlane.xlu0 %1259
  %v1261 = vsel %vm95, %v1253, 0.0
  %1262 = vadd.xlane.f32.xlu0 %v1261
  %v1263 = vpop.xlane.xlu0 %1262
  %v1264 = vsel %vm95, %v1254, 0.0
  %1265 = vadd.xlane.f32.xlu0 %v1264
  %v1266 = vpop.xlane.xlu0 %1265
  %v1267 = vmul.f32 %v1257, %v102
  %v1268 = vmul.f32 %v1260, %v102
  %v1269 = vmul.f32 %v1263, %v102
  %v1270 = vmul.f32 %v1266, %v102
  %v1271 = vadd.f32 %v1267, 1e-12
  %v1272 = vadd.f32 %v1268, 1e-12
  %v1273 = vadd.f32 %v1269, 1e-12
  %v1274 = vadd.f32 %v1270, 1e-12
  %v1275 = vrsqrt.pop %v1271
  %v1276 = vrsqrt.pop %v1272
  %v1277 = vrsqrt.pop %v1273
  %v1278 = vrsqrt.pop %v1274
  %v1279 = vmul.f32 %v1247, %v1275
  %v1280 = vmul.f32 %v1248, %v1276
  %v1281 = vmul.f32 %v1249, %v1277
  %v1282 = vmul.f32 %v1250, %v1278
  %v1284 = vlaneseq
  %v1285 = vshrl.u32 %v1284, 7
  %v1286 = vsub.s32 0, %v1285
  %v1287 = vrot.slane %v1229, %v1286
  %v1289 = vmul.f32 %v1279, %v1287
  %v1290 = vmul.f32 %v1280, %v1287
  %v1291 = vmul.f32 %v1281, %v1287
  %v1292 = vmul.f32 %v1282, %v1287
  %v1294 = vlaneseq
  %v1295 = vshrl.u32 %v1294, 7
  %v1296 = vsub.s32 0, %v1295
  %v1297 = vrot.slane %v1230, %v1296
  %v1299 = vadd.f32 %v1289, %v1297
  %v1300 = vadd.f32 %v1290, %v1297
  %v1301 = vadd.f32 %v1291, %v1297
  %v1302 = vadd.f32 %v1292, %v1297
  %v1303 = vpack.c.bf16 %v1300, %v1299
  %v1304 = vpack.c.bf16 %v1302, %v1301
  %v1305 = vld [vmem:[%s13] sm:$0xf]
  %v1306 = vld [vmem:[%s13 + $0x4] sm:$0xf]
  %v1307 = vld [vmem:[%s13 + $0x8] sm:$0xf]
  %v1308 = vld [vmem:[%s13 + $0xc] sm:$0xf]
  %v1309 = vld [vmem:[%s13 + $0x10] sm:$0xf]
  %v1310 = vld [vmem:[%s13 + $0x14] sm:$0xf]
  %v1311 = vld [vmem:[%s13 + $0x18] sm:$0xf]
  %v1312 = vld [vmem:[%s13 + $0x1c] sm:$0xf]
  %v1313 = vld [vmem:[%s14] sm:$0x1]
  %v1315 = vlaneseq
  %v1316 = vshrl.u32 %v1315, 7
  %v1317 = vsub.s32 0, %v1316
  %v1318 = vrot.slane %v1313, %v1317
  %v1328 = vunpack.c.l.b16 %v1305
  %v1329 = vunpack.c.l.b16 %v1306
  %v1330 = vunpack.c.l.b16 %v1307
  %v1331 = vunpack.c.l.b16 %v1308
  %v1332 = vunpack.c.l.b16 %v1309
  %v1333 = vunpack.c.l.b16 %v1310
  %v1334 = vunpack.c.l.b16 %v1311
  %v1335 = vunpack.c.l.b16 %v1312
  %v1336 = vpack.c.b16 %v1329, %v1328
  %v1337 = vpack.c.b16 %v1331, %v1330
  %v1338 = vpack.c.b16 %v1333, %v1332
  %v1339 = vpack.c.b16 %v1335, %v1334
  %v1345 = vsel %vm95, %v1303, 0
  %v1348 = vsel %vm95, %v1304, 0
  %1350 = vmatprep.subr.bf16.mxu0 0
  %1351 = vmatpush1.bf16.msra.mxu0 %v1336
  %1352 = vmatprep.subr.bf16.mxu0 0
  %1353 = vmatpush1.bf16.msra.mxu0 %v1337
  %1354 = vmatprep.subr.bf16.mxu0 0
  %1355 = vmatpush1.bf16.msra.mxu0 %v1338
  %1356 = vmatprep.subr.bf16.mxu0 0
  %1357 = vmatpush1.bf16.msra.mxu0 %v1339
  %1358 = vmatprep.subr.bf16.mxu0 0
  %1359 = vmatpush1.bf16.msra.mxu0 0
  %1360 = vmatprep.subr.bf16.mxu0 0
  %1361 = vmatpush1.bf16.msra.mxu0 0
  %1362 = vmatprep.subr.bf16.mxu0 0
  %1363 = vmatpush1.bf16.msra.mxu0 0
  %1364 = vmatprep.subr.bf16.mxu0 0
  %1365 = vmatpush1.bf16.msra.mxu0 0
  %1366 = vmatprep.subr.bf16.mxu0 0
  %1367 = vmatpush1.bf16.msra.mxu0 0
  %1368 = vmatprep.subr.bf16.mxu0 0
  %1369 = vmatpush1.bf16.msra.mxu0 0
  %1370 = vmatprep.subr.bf16.mxu0 0
  %1371 = vmatpush1.bf16.msra.mxu0 0
  %1372 = vmatprep.subr.bf16.mxu0 0
  %1373 = vmatpush1.bf16.msra.mxu0 0
  %1374 = vmatprep.subr.bf16.mxu0 0
  %1375 = vmatpush1.bf16.msra.mxu0 0
  %1376 = vmatprep.subr.bf16.mxu0 0
  %1377 = vmatpush1.bf16.msra.mxu0 0
  %1378 = vmatprep.subr.bf16.mxu0 0
  %1379 = vmatpush1.bf16.msra.mxu0 0
  %1380 = vmatprep.subr.bf16.mxu0 0
  %1381 = vmatpush1.bf16.msra.mxu0 0
  %1382 = vmatprep.mubr.bf16.mxu0 0
  %1383 = vmatmul.mubr.bf16.gmra.mrb[0].mxu0 %v1345
  %v1384 = vpop.f32.mrb[0].mxu0
  %v1385 = vadd.f32 %v1318, %v1384
  %v1386 = vpop.f32.mrb[0].mxu0
  %v1387 = vpop.f32.mrb[0].mxu0
  %v1388 = vadd.f32 %v1318, %v1387
  %v1389 = vpop.f32.mrb[0].mxu0
  %1390 = vmatprep.mubr.bf16.mxu0 0
  %1391 = vmatmul.mubr.bf16.gmra.mrb[0].mxu0 %v1348
  %v1392 = vpop.f32.mrb[0].mxu0
  %v1393 = vadd.f32 %v1318, %v1392
  %v1394 = vpop.f32.mrb[0].mxu0
  %v1395 = vpop.f32.mrb[0].mxu0
  %v1396 = vadd.f32 %v1318, %v1395
  %v1397 = vpop.f32.mrb[0].mxu0
  %1398 = vdwg.mxu0
  %v1399 = vmul.f32 %v1385, %v1385
  %v1400 = vmul.f32 %v1388, %v1388
  %v1401 = vmul.f32 %v1393, %v1393
  %v1402 = vmul.f32 %v1396, %v1396
  %v1403 = vmul.f32 %v1385, %v1399
  %v1404 = vmul.f32 %v1388, %v1400
  %v1405 = vmul.f32 %v1393, %v1401
  %v1406 = vmul.f32 %v1396, %v1402
  %v1407 = vmul.f32 %v1403, 0.044715
  %v1408 = vmul.f32 %v1404, 0.044715
  %v1409 = vmul.f32 %v1405, 0.044715
  %v1410 = vmul.f32 %v1406, 0.044715
  %v1411 = vadd.f32 %v1385, %v1407
  %v1412 = vadd.f32 %v1388, %v1408
  %v1413 = vadd.f32 %v1393, %v1409
  %v1414 = vadd.f32 %v1396, %v1410
  %v1415 = vmul.f32 %v1411, 0.7978846
  %v1416 = vmul.f32 %v1412, 0.7978846
  %v1417 = vmul.f32 %v1413, 0.7978846
  %v1418 = vmul.f32 %v1414, 0.7978846
  %v1419 = vtanh.pop %v1415
  %v1420 = vtanh.pop %v1416
  %v1421 = vtanh.pop %v1417
  %v1422 = vtanh.pop %v1418
  %v1423 = vadd.f32 %v1419, 1.0
  %v1424 = vadd.f32 %v1420, 1.0
  %v1425 = vadd.f32 %v1421, 1.0
  %v1426 = vadd.f32 %v1422, 1.0
  %v1427 = vmul.f32 %v1423, 0.5
  %v1428 = vmul.f32 %v1424, 0.5
  %v1429 = vmul.f32 %v1425, 0.5
  %v1430 = vmul.f32 %v1426, 0.5
  %v1431 = vmul.f32 %v1385, %v1427
  %v1432 = vmul.f32 %v1388, %v1428
  %v1433 = vmul.f32 %v1393, %v1429
  %v1434 = vmul.f32 %v1396, %v1430
  %v1435 = vpack.c.bf16 %v1432, %v1431
  %v1436 = vpack.c.bf16 %v1434, %v1433
  %v1437 = vld [vmem:[%s15] sm:$0xf]
  %v1438 = vld [vmem:[%s15 + $0x4] sm:$0xf]
  %v1439 = vld [vmem:[%s15 + $0x8] sm:$0xf]
  %v1440 = vld [vmem:[%s15 + $0xc] sm:$0xf]
  %v1441 = vld [vmem:[%s15 + $0x10] sm:$0xf]
  %v1442 = vld [vmem:[%s15 + $0x14] sm:$0xf]
  %v1443 = vld [vmem:[%s15 + $0x18] sm:$0xf]
  %v1444 = vld [vmem:[%s15 + $0x1c] sm:$0xf]
  %v1445 = vld [vmem:[%s15 + $0x20] sm:$0xf]
  %v1446 = vld [vmem:[%s15 + $0x24] sm:$0xf]
  %v1447 = vld [vmem:[%s15 + $0x28] sm:$0xf]
  %v1448 = vld [vmem:[%s15 + $0x2c] sm:$0xf]
  %v1449 = vld [vmem:[%s15 + $0x30] sm:$0xf]
  %v1450 = vld [vmem:[%s15 + $0x34] sm:$0xf]
  %v1451 = vld [vmem:[%s15 + $0x38] sm:$0xf]
  %v1452 = vld [vmem:[%s15 + $0x3c] sm:$0xf]
  %v1453 = vld [vmem:[%s16] sm:$0x1]
  %v1455 = vlaneseq
  %v1456 = vshrl.u32 %v1455, 7
  %v1457 = vsub.s32 0, %v1456
  %v1458 = vrot.slane %v1453, %v1457
  %v1476 = vunpack.c.l.b16 %v1437
  %v1477 = vunpack.c.l.b16 %v1438
  %v1478 = vunpack.c.l.b16 %v1439
  %v1479 = vunpack.c.l.b16 %v1440
  %v1480 = vunpack.c.l.b16 %v1441
  %v1481 = vunpack.c.l.b16 %v1442
  %v1482 = vunpack.c.l.b16 %v1443
  %v1483 = vunpack.c.l.b16 %v1444
  %v1484 = vunpack.c.l.b16 %v1445
  %v1485 = vunpack.c.l.b16 %v1446
  %v1486 = vunpack.c.l.b16 %v1447
  %v1487 = vunpack.c.l.b16 %v1448
  %v1488 = vunpack.c.l.b16 %v1449
  %v1489 = vunpack.c.l.b16 %v1450
  %v1490 = vunpack.c.l.b16 %v1451
  %v1491 = vunpack.c.l.b16 %v1452
  %v1492 = vpack.c.b16 %v1477, %v1476
  %v1493 = vpack.c.b16 %v1479, %v1478
  %v1494 = vpack.c.b16 %v1481, %v1480
  %v1495 = vpack.c.b16 %v1483, %v1482
  %v1496 = vpack.c.b16 %v1485, %v1484
  %v1497 = vpack.c.b16 %v1487, %v1486
  %v1498 = vpack.c.b16 %v1489, %v1488
  %v1499 = vpack.c.b16 %v1491, %v1490
  %1508 = vmatprep.subr.bf16.mxu0 0
  %1509 = vmatpush1.bf16.msra.mxu0 %v1492
  %1510 = vmatprep.subr.bf16.mxu0 0
  %1511 = vmatpush1.bf16.msra.mxu0 %v1493
  %1512 = vmatprep.subr.bf16.mxu0 0
  %1513 = vmatpush1.bf16.msra.mxu0 %v1494
  %1514 = vmatprep.subr.bf16.mxu0 0
  %1515 = vmatpush1.bf16.msra.mxu0 %v1495
  %1516 = vmatprep.subr.bf16.mxu0 0
  %1517 = vmatpush1.bf16.msra.mxu0 %v1496
  %1518 = vmatprep.subr.bf16.mxu0 0
  %1519 = vmatpush1.bf16.msra.mxu0 %v1497
  %1520 = vmatprep.subr.bf16.mxu0 0
  %1521 = vmatpush1.bf16.msra.mxu0 %v1498
  %1522 = vmatprep.subr.bf16.mxu0 0
  %1523 = vmatpush1.bf16.msra.mxu0 %v1499
  %1524 = vmatprep.subr.bf16.mxu0 0
  %1525 = vmatpush1.bf16.msra.mxu0 0
  %1526 = vmatprep.subr.bf16.mxu0 0
  %1527 = vmatpush1.bf16.msra.mxu0 0
  %1528 = vmatprep.subr.bf16.mxu0 0
  %1529 = vmatpush1.bf16.msra.mxu0 0
  %1530 = vmatprep.subr.bf16.mxu0 0
  %1531 = vmatpush1.bf16.msra.mxu0 0
  %1532 = vmatprep.subr.bf16.mxu0 0
  %1533 = vmatpush1.bf16.msra.mxu0 0
  %1534 = vmatprep.subr.bf16.mxu0 0
  %1535 = vmatpush1.bf16.msra.mxu0 0
  %1536 = vmatprep.subr.bf16.mxu0 0
  %1537 = vmatpush1.bf16.msra.mxu0 0
  %1538 = vmatprep.subr.bf16.mxu0 0
  %1539 = vmatpush1.bf16.msra.mxu0 0
  %1540 = vmatprep.mubr.bf16.mxu0 0
  %1541 = vmatmul.mubr.bf16.gmra.mrb[0].mxu0 %v1435
  %v1542 = vpop.f32.mrb[0].mxu0
  %v1543 = vadd.f32 %v1458, %v1542
  %v1544 = vpop.f32.mrb[0].mxu0
  %v1545 = vpop.f32.mrb[0].mxu0
  %v1546 = vadd.f32 %v1458, %v1545
  %v1547 = vpop.f32.mrb[0].mxu0
  %1548 = vmatprep.mubr.bf16.mxu0 0
  %1549 = vmatmul.mubr.bf16.gmra.mrb[0].mxu0 %v1436
  %v1550 = vpop.f32.mrb[0].mxu0
  %v1551 = vadd.f32 %v1458, %v1550
  %v1552 = vpop.f32.mrb[0].mxu0
  %v1553 = vpop.f32.mrb[0].mxu0
  %v1554 = vadd.f32 %v1458, %v1553
  %v1555 = vpop.f32.mrb[0].mxu0
  %1556 = vdwg.mxu0
  %v1557 = vadd.f32 %v1543, %v1299
  %v1558 = vadd.f32 %v1546, %v1300
  %v1559 = vadd.f32 %v1551, %v1301
  %v1560 = vadd.f32 %v1554, %v1302
  %v1561 = vld [vmem:[%s17] sm:$0x1]
  %v1562 = vld [vmem:[%s18] sm:$0x1]
  %v1563 = vsel %vm95, %v1557, 0.0
  %1564 = vadd.xlane.f32.xlu0 %v1563
  %v1565 = vpop.xlane.xlu0 %1564
  %v1566 = vsel %vm95, %v1558, 0.0
  %1567 = vadd.xlane.f32.xlu0 %v1566
  %v1568 = vpop.xlane.xlu0 %1567
  %v1569 = vsel %vm95, %v1559, 0.0
  %1570 = vadd.xlane.f32.xlu0 %v1569
  %v1571 = vpop.xlane.xlu0 %1570
  %v1572 = vsel %vm95, %v1560, 0.0
  %1573 = vadd.xlane.f32.xlu0 %v1572
  %v1574 = vpop.xlane.xlu0 %1573
  %v1575 = vmul.f32 %v1565, %v102
  %v1576 = vmul.f32 %v1568, %v102
  %v1577 = vmul.f32 %v1571, %v102
  %v1578 = vmul.f32 %v1574, %v102
  %v1579 = vsub.f32 %v1557, %v1575
  %v1580 = vsub.f32 %v1558, %v1576
  %v1581 = vsub.f32 %v1559, %v1577
  %v1582 = vsub.f32 %v1560, %v1578
  %v1583 = vmul.f32 %v1579, %v1579
  %v1584 = vmul.f32 %v1580, %v1580
  %v1585 = vmul.f32 %v1581, %v1581
  %v1586 = vmul.f32 %v1582, %v1582
  %v1587 = vsel %vm95, %v1583, 0.0
  %1588 = vadd.xlane.f32.xlu0 %v1587
  %v1589 = vpop.xlane.xlu0 %1588
  %v1590 = vsel %vm95, %v1584, 0.0
  %1591 = vadd.xlane.f32.xlu0 %v1590
  %v1592 = vpop.xlane.xlu0 %1591
  %v1593 = vsel %vm95, %v1585, 0.0
  %1594 = vadd.xlane.f32.xlu0 %v1593
  %v1595 = vpop.xlane.xlu0 %1594
  %v1596 = vsel %vm95, %v1586, 0.0
  %1597 = vadd.xlane.f32.xlu0 %v1596
  %v1598 = vpop.xlane.xlu0 %1597
  %v1599 = vmul.f32 %v1589, %v102
  %v1600 = vmul.f32 %v1592, %v102
  %v1601 = vmul.f32 %v1595, %v102
  %v1602 = vmul.f32 %v1598, %v102
  %v1603 = vadd.f32 %v1599, 1e-12
  %v1604 = vadd.f32 %v1600, 1e-12
  %v1605 = vadd.f32 %v1601, 1e-12
  %v1606 = vadd.f32 %v1602, 1e-12
  %v1607 = vrsqrt.pop %v1603
  %v1608 = vrsqrt.pop %v1604
  %v1609 = vrsqrt.pop %v1605
  %v1610 = vrsqrt.pop %v1606
  %v1611 = vmul.f32 %v1579, %v1607
  %v1612 = vmul.f32 %v1580, %v1608
  %v1613 = vmul.f32 %v1581, %v1609
  %v1614 = vmul.f32 %v1582, %v1610
  %v1616 = vlaneseq
  %v1617 = vshrl.u32 %v1616, 7
  %v1618 = vsub.s32 0, %v1617
  %v1619 = vrot.slane %v1561, %v1618
  %v1621 = vmul.f32 %v1611, %v1619
  %v1622 = vmul.f32 %v1612, %v1619
  %v1623 = vmul.f32 %v1613, %v1619
  %v1624 = vmul.f32 %v1614, %v1619
  %v1626 = vlaneseq
  %v1627 = vshrl.u32 %v1626, 7
  %v1628 = vsub.s32 0, %v1627
  %v1629 = vrot.slane %v1562, %v1628
  %v1631 = vadd.f32 %v1621, %v1629
  %v1632 = vadd.f32 %v1622, %v1629
  %v1633 = vadd.f32 %v1623, %v1629
  %v1634 = vadd.f32 %v1624, %v1629
  %v1635 = vpack.c.bf16 %v1632, %v1631
  %v1636 = vpack.c.bf16 %v1634, %v1633
  %s1637 = scalar_lea.vmem %s7, 64
  %v1638 = vld [vmem:[%s1637] sm:$0xff]
  %v1639 = vld [vmem:[%s1637 + $0x8] sm:$0xff]
  %v1640 = vld [vmem:[%s1637 + $0x10] sm:$0xff]
  %v1641 = vld [vmem:[%s1637 + $0x18] sm:$0xff]
  %v1642 = vld [vmem:[%s1637 + $0x20] sm:$0xff]
  %v1643 = vld [vmem:[%s1637 + $0x28] sm:$0xff]
  %v1644 = vld [vmem:[%s1637 + $0x30] sm:$0xff]
  %v1645 = vld [vmem:[%s1637 + $0x38] sm:$0xff]
  %s1646 = scalar_lea.vmem %s8, 2
  %v1647 = vld [vmem:[%s1646] sm:$0x3]
  %v1649 = vlaneseq
  %v1650 = vshrl.u32 %v1649, 7
  %v1651 = vsub.s32 0, %v1650
  %v1652 = vrot.slane %v1647, %v1651
  %v1653 = vlaneseq
  %v1654 = vshrl.u32 %v1653, 7
  %v1655 = vsub.s32 1, %v1654
  %v1656 = vrot.slane %v1647, %v1655
  %v1667 = vunpack.c.l.b16 %v1638
  %v1668 = vunpack.c.h.b16 %v1638
  %v1669 = vunpack.c.l.b16 %v1639
  %v1670 = vunpack.c.h.b16 %v1639
  %v1671 = vunpack.c.l.b16 %v1640
  %v1672 = vunpack.c.h.b16 %v1640
  %v1673 = vunpack.c.l.b16 %v1641
  %v1674 = vunpack.c.h.b16 %v1641
  %v1675 = vunpack.c.l.b16 %v1642
  %v1676 = vunpack.c.h.b16 %v1642
  %v1677 = vunpack.c.l.b16 %v1643
  %v1678 = vunpack.c.h.b16 %v1643
  %v1679 = vunpack.c.l.b16 %v1644
  %v1680 = vunpack.c.h.b16 %v1644
  %v1681 = vunpack.c.l.b16 %v1645
  %v1682 = vunpack.c.h.b16 %v1645
  %v1683 = vpack.c.b16 %v1669, %v1667
  %v1684 = vpack.c.b16 %v1670, %v1668
  %v1685 = vpack.c.b16 %v1673, %v1671
  %v1686 = vpack.c.b16 %v1674, %v1672
  %v1687 = vpack.c.b16 %v1677, %v1675
  %v1688 = vpack.c.b16 %v1678, %v1676
  %v1689 = vpack.c.b16 %v1681, %v1679
  %v1690 = vpack.c.b16 %v1682, %v1680
  %v1700 = vsel %vm95, %v1635, 0
  %v1703 = vsel %vm95, %v1636, 0
  %1705 = vmatprep.subr.bf16.mxu0 %v1684
  %1706 = vmatpush1.bf16.msra.mxu0 %v1683
  %1707 = vmatprep.subr.bf16.mxu0 %v1686
  %1708 = vmatpush1.bf16.msra.mxu0 %v1685
  %1709 = vmatprep.subr.bf16.mxu0 %v1688
  %1710 = vmatpush1.bf16.msra.mxu0 %v1687
  %1711 = vmatprep.subr.bf16.mxu0 %v1690
  %1712 = vmatpush1.bf16.msra.mxu0 %v1689
  %1713 = vmatprep.subr.bf16.mxu0 0
  %1714 = vmatpush1.bf16.msra.mxu0 0
  %1715 = vmatprep.subr.bf16.mxu0 0
  %1716 = vmatpush1.bf16.msra.mxu0 0
  %1717 = vmatprep.subr.bf16.mxu0 0
  %1718 = vmatpush1.bf16.msra.mxu0 0
  %1719 = vmatprep.subr.bf16.mxu0 0
  %1720 = vmatpush1.bf16.msra.mxu0 0
  %1721 = vmatprep.subr.bf16.mxu0 0
  %1722 = vmatpush1.bf16.msra.mxu0 0
  %1723 = vmatprep.subr.bf16.mxu0 0
  %1724 = vmatpush1.bf16.msra.mxu0 0
  %1725 = vmatprep.subr.bf16.mxu0 0
  %1726 = vmatpush1.bf16.msra.mxu0 0
  %1727 = vmatprep.subr.bf16.mxu0 0
  %1728 = vmatpush1.bf16.msra.mxu0 0
  %1729 = vmatprep.subr.bf16.mxu0 0
  %1730 = vmatpush1.bf16.msra.mxu0 0
  %1731 = vmatprep.subr.bf16.mxu0 0
  %1732 = vmatpush1.bf16.msra.mxu0 0
  %1733 = vmatprep.subr.bf16.mxu0 0
  %1734 = vmatpush1.bf16.msra.mxu0 0
  %1735 = vmatprep.subr.bf16.mxu0 0
  %1736 = vmatpush1.bf16.msra.mxu0 0
  %1737 = vmatprep.mubr.bf16.mxu0 0
  %1738 = vmatmul.mubr.bf16.gmra.mrb[0].mxu0 %v1700
  %v1739 = vpop.f32.mrb[0].mxu0
  %v1740 = vadd.f32 %v1652, %v1739
  %v1741 = vpop.f32.mrb[0].mxu0
  %v1742 = vadd.f32 %v1656, %v1741
  %v1743 = vpop.f32.mrb[0].mxu0
  %v1744 = vadd.f32 %v1652, %v1743
  %v1745 = vpop.f32.mrb[0].mxu0
  %v1746 = vadd.f32 %v1656, %v1745
  %1747 = vmatprep.mubr.bf16.mxu0 0
  %1748 = vmatmul.mubr.bf16.gmra.mrb[0].mxu0 %v1703
  %v1749 = vpop.f32.mrb[0].mxu0
  %v1750 = vadd.f32 %v1652, %v1749
  %v1751 = vpop.f32.mrb[0].mxu0
  %v1752 = vadd.f32 %v1656, %v1751
  %v1753 = vpop.f32.mrb[0].mxu0
  %v1754 = vadd.f32 %v1652, %v1753
  %v1755 = vpop.f32.mrb[0].mxu0
  %v1756 = vadd.f32 %v1656, %v1755
  %1757 = vdwg.mxu0
  %v1758 = vpack.c.bf16 %v1744, %v1740
  %v1759 = vpack.c.bf16 %v1754, %v1750
  %v1760 = vpack.c.bf16 %v1746, %v1742
  %v1761 = vpack.c.bf16 %v1756, %v1752
  %1764 = vrot.lane.b32.xlu0 %v1758, 64
  %v1765 = vpop.permute.xlu0 %1764
  %1766 = vrot.lane.b32.xlu0 %v1759, 64
  %v1767 = vpop.permute.xlu0 %1766
  %v1769 = vsel %vm375, %v1758, 0
  %v1772 = vsel %vm375, %v1759, 0
  %v1775 = vsel %vm375, %v1765, 0
  %v1778 = vsel %vm375, %v1767, 0
  %1780 = vmatprep.subr.bf16.mxu0 0
  %1781 = vmatpush1.bf16.xpose.msra.mxu0 %v1775
  %1782 = vmatprep.subr.bf16.mxu0 0
  %1783 = vmatpush1.bf16.xpose.msra.mxu0 %v1778
  %1784 = vmatprep.subr.bf16.mxu0 0
  %1785 = vmatpush1.bf16.xpose.msra.mxu0 0
  %1786 = vmatprep.subr.bf16.mxu0 0
  %1787 = vmatpush1.bf16.xpose.msra.mxu0 0
  %1788 = vmatprep.subr.bf16.mxu0 0
  %1789 = vmatpush1.bf16.xpose.msra.mxu0 0
  %1790 = vmatprep.subr.bf16.mxu0 0
  %1791 = vmatpush1.bf16.xpose.msra.mxu0 0
  %1792 = vmatprep.subr.bf16.mxu0 0
  %1793 = vmatpush1.bf16.xpose.msra.mxu0 0
  %1794 = vmatprep.subr.bf16.mxu0 0
  %1795 = vmatpush1.bf16.xpose.msra.mxu0 0
  %1796 = vmatprep.subr.bf16.mxu0 0
  %1797 = vmatpush1.bf16.xpose.msra.mxu0 0
  %1798 = vmatprep.subr.bf16.mxu0 0
  %1799 = vmatpush1.bf16.xpose.msra.mxu0 0
  %1800 = vmatprep.subr.bf16.mxu0 0
  %1801 = vmatpush1.bf16.xpose.msra.mxu0 0
  %1802 = vmatprep.subr.bf16.mxu0 0
  %1803 = vmatpush1.bf16.xpose.msra.mxu0 0
  %1804 = vmatprep.subr.bf16.mxu0 0
  %1805 = vmatpush1.bf16.xpose.msra.mxu0 0
  %1806 = vmatprep.subr.bf16.mxu0 0
  %1807 = vmatpush1.bf16.xpose.msra.mxu0 0
  %1808 = vmatprep.subr.bf16.mxu0 0
  %1809 = vmatpush1.bf16.xpose.msra.mxu0 0
  %1810 = vmatprep.subr.bf16.mxu0 0
  %1811 = vmatpush1.bf16.xpose.msra.mxu0 0
  %1812 = vmatprep.mubr.bf16.mxu0 0
  %1813 = vmatmul.mubr.bf16.gmra.mrb[0].mxu0 %v1769
  %v1814 = vpop.f32.mrb[0].mxu0
  %v1815 = vadd.f32 %v87, %v1814
  %v1816 = vpop.f32.mrb[0].mxu0
  %v1817 = vpop.f32.mrb[0].mxu0
  %v1818 = vadd.f32 %v88, %v1817
  %v1819 = vpop.f32.mrb[0].mxu0
  %1820 = vmatprep.mubr.bf16.mxu0 0
  %1821 = vmatmul.mubr.bf16.gmra.mrb[0].mxu0 %v1772
  %v1822 = vpop.f32.mrb[0].mxu0
  %v1823 = vadd.f32 %v89, %v1822
  %v1824 = vpop.f32.mrb[0].mxu0
  %v1825 = vpop.f32.mrb[0].mxu0
  %v1826 = vadd.f32 %v90, %v1825
  %v1827 = vpop.f32.mrb[0].mxu0
  %1828 = vdwg.mxu0
  %v1829 = vsel %vm169, %v1815, -inf
  %1830 = vmax.xlane.f32.xlu0 %v1829
  %v1831 = vpop.xlane.xlu0 %1830
  %v1832 = vsel %vm169, %v1818, -inf
  %1833 = vmax.xlane.f32.xlu0 %v1832
  %v1834 = vpop.xlane.xlu0 %1833
  %v1835 = vsel %vm169, %v1823, -inf
  %1836 = vmax.xlane.f32.xlu0 %v1835
  %v1837 = vpop.xlane.xlu0 %1836
  %v1838 = vsel %vm169, %v1826, -inf
  %1839 = vmax.xlane.f32.xlu0 %v1838
  %v1840 = vpop.xlane.xlu0 %1839
  %v1841 = vsub.f32 %v1815, %v1831
  %v1842 = vsub.f32 %v1818, %v1834
  %v1843 = vsub.f32 %v1823, %v1837
  %v1844 = vsub.f32 %v1826, %v1840
  %v1845 = vmul.f32 %v1841, 1.442695
  %v1846 = vpow.pop %v1845
  %v1847 = vmul.f32 %v1842, 1.442695
  %v1848 = vpow.pop %v1847
  %v1849 = vmul.f32 %v1843, 1.442695
  %v1850 = vpow.pop %v1849
  %v1851 = vmul.f32 %v1844, 1.442695
  %v1852 = vpow.pop %v1851
  %v1853 = vsel %vm169, %v1846, 0.0
  %1854 = vadd.xlane.f32.xlu0 %v1853
  %v1855 = vpop.xlane.xlu0 %1854
  %v1856 = vsel %vm169, %v1848, 0.0
  %1857 = vadd.xlane.f32.xlu0 %v1856
  %v1858 = vpop.xlane.xlu0 %1857
  %v1859 = vsel %vm169, %v1850, 0.0
  %1860 = vadd.xlane.f32.xlu0 %v1859
  %v1861 = vpop.xlane.xlu0 %1860
  %v1862 = vsel %vm169, %v1852, 0.0
  %1863 = vadd.xlane.f32.xlu0 %v1862
  %v1864 = vpop.xlane.xlu0 %1863
  %v1865 = vrcp.pop %v1855
  %v1866 = vrcp.pop %v1858
  %v1867 = vrcp.pop %v1861
  %v1868 = vrcp.pop %v1864
  %v1869 = vmul.f32 %v1846, %v1865
  %v1870 = vmul.f32 %v1848, %v1866
  %v1871 = vmul.f32 %v1850, %v1867
  %v1872 = vmul.f32 %v1852, %v1868
  %v1873 = vpack.c.bf16 %v1870, %v1869
  %v1874 = vpack.c.bf16 %v1872, %v1871
  %v1876 = vsel %vm169, %v1873, 0
  %v1879 = vsel %vm169, %v1874, 0
  %1881 = vmatprep.subr.bf16.mxu0 0
  %1882 = vmatpush1.bf16.msra.mxu0 %v1760
  %1883 = vmatprep.subr.bf16.mxu0 0
  %1884 = vmatpush1.bf16.msra.mxu0 %v1761
  %1885 = vmatprep.subr.bf16.mxu0 0
  %1886 = vmatpush1.bf16.msra.mxu0 0
  %1887 = vmatprep.subr.bf16.mxu0 0
  %1888 = vmatpush1.bf16.msra.mxu0 0
  %1889 = vmatprep.subr.bf16.mxu0 0
  %1890 = vmatpush1.bf16.msra.mxu0 0
  %1891 = vmatprep.subr.bf16.mxu0 0
  %1892 = vmatpush1.bf16.msra.mxu0 0
  %1893 = vmatprep.subr.bf16.mxu0 0
  %1894 = vmatpush1.bf16.msra.mxu0 0
  %1895 = vmatprep.subr.bf16.mxu0 0
  %1896 = vmatpush1.bf16.msra.mxu0 0
  %1897 = vmatprep.subr.bf16.mxu0 0
  %1898 = vmatpush1.bf16.msra.mxu0 0
  %1899 = vmatprep.subr.bf16.mxu0 0
  %1900 = vmatpush1.bf16.msra.mxu0 0
  %1901 = vmatprep.subr.bf16.mxu0 0
  %1902 = vmatpush1.bf16.msra.mxu0 0
  %1903 = vmatprep.subr.bf16.mxu0 0
  %1904 = vmatpush1.bf16.msra.mxu0 0
  %1905 = vmatprep.subr.bf16.mxu0 0
  %1906 = vmatpush1.bf16.msra.mxu0 0
  %1907 = vmatprep.subr.bf16.mxu0 0
  %1908 = vmatpush1.bf16.msra.mxu0 0
  %1909 = vmatprep.subr.bf16.mxu0 0
  %1910 = vmatpush1.bf16.msra.mxu0 0
  %1911 = vmatprep.subr.bf16.mxu0 0
  %1912 = vmatpush1.bf16.msra.mxu0 0
  %1913 = vmatprep.mubr.bf16.mxu0 0
  %1914 = vmatmul.mubr.bf16.gmra.mrb[0].mxu0 %v1876
  %v1915 = vpop.f32.mrb[0].mxu0
  %v1916 = vadd.f32 0.0, %v1915
  %v1917 = vpop.f32.mrb[0].mxu0
  %v1918 = vpop.f32.mrb[0].mxu0
  %v1919 = vadd.f32 0.0, %v1918
  %v1920 = vpop.f32.mrb[0].mxu0
  %1921 = vmatprep.mubr.bf16.mxu0 0
  %1922 = vmatmul.mubr.bf16.gmra.mrb[0].mxu0 %v1879
  %v1923 = vpop.f32.mrb[0].mxu0
  %v1924 = vadd.f32 0.0, %v1923
  %v1925 = vpop.f32.mrb[0].mxu0
  %v1926 = vpop.f32.mrb[0].mxu0
  %v1927 = vadd.f32 0.0, %v1926
  %v1928 = vpop.f32.mrb[0].mxu0
  %1929 = vdwg.mxu0
  %1930 = vrot.lane.b32.xlu0 %v1758, 112
  %v1931 = vpop.permute.xlu0 %1930
  %1932 = vrot.lane.b32.xlu0 %v1759, 112
  %v1933 = vpop.permute.xlu0 %1932
  %1934 = vrot.lane.b32.xlu0 %v1758, 48
  %v1935 = vpop.permute.xlu0 %1934
  %1936 = vrot.lane.b32.xlu0 %v1759, 48
  %v1937 = vpop.permute.xlu0 %1936
  %v1939 = vsel %vm375, %v1931, 0
  %v1942 = vsel %vm375, %v1933, 0
  %v1945 = vsel %vm375, %v1935, 0
  %v1948 = vsel %vm375, %v1937, 0
  %1950 = vmatprep.subr.bf16.mxu0 0
  %1951 = vmatpush1.bf16.xpose.msra.mxu0 %v1945
  %1952 = vmatprep.subr.bf16.mxu0 0
  %1953 = vmatpush1.bf16.xpose.msra.mxu0 %v1948
  %1954 = vmatprep.subr.bf16.mxu0 0
  %1955 = vmatpush1.bf16.xpose.msra.mxu0 0
  %1956 = vmatprep.subr.bf16.mxu0 0
  %1957 = vmatpush1.bf16.xpose.msra.mxu0 0
  %1958 = vmatprep.subr.bf16.mxu0 0
  %1959 = vmatpush1.bf16.xpose.msra.mxu0 0
  %1960 = vmatprep.subr.bf16.mxu0 0
  %1961 = vmatpush1.bf16.xpose.msra.mxu0 0
  %1962 = vmatprep.subr.bf16.mxu0 0
  %1963 = vmatpush1.bf16.xpose.msra.mxu0 0
  %1964 = vmatprep.subr.bf16.mxu0 0
  %1965 = vmatpush1.bf16.xpose.msra.mxu0 0
  %1966 = vmatprep.subr.bf16.mxu0 0
  %1967 = vmatpush1.bf16.xpose.msra.mxu0 0
  %1968 = vmatprep.subr.bf16.mxu0 0
  %1969 = vmatpush1.bf16.xpose.msra.mxu0 0
  %1970 = vmatprep.subr.bf16.mxu0 0
  %1971 = vmatpush1.bf16.xpose.msra.mxu0 0
  %1972 = vmatprep.subr.bf16.mxu0 0
  %1973 = vmatpush1.bf16.xpose.msra.mxu0 0
  %1974 = vmatprep.subr.bf16.mxu0 0
  %1975 = vmatpush1.bf16.xpose.msra.mxu0 0
  %1976 = vmatprep.subr.bf16.mxu0 0
  %1977 = vmatpush1.bf16.xpose.msra.mxu0 0
  %1978 = vmatprep.subr.bf16.mxu0 0
  %1979 = vmatpush1.bf16.xpose.msra.mxu0 0
  %1980 = vmatprep.subr.bf16.mxu0 0
  %1981 = vmatpush1.bf16.xpose.msra.mxu0 0
  %1982 = vmatprep.mubr.bf16.mxu0 0
  %1983 = vmatmul.mubr.bf16.gmra.mrb[0].mxu0 %v1939
  %v1984 = vpop.f32.mrb[0].mxu0
  %v1985 = vadd.f32 %v87, %v1984
  %v1986 = vpop.f32.mrb[0].mxu0
  %v1987 = vpop.f32.mrb[0].mxu0
  %v1988 = vadd.f32 %v88, %v1987
  %v1989 = vpop.f32.mrb[0].mxu0
  %1990 = vmatprep.mubr.bf16.mxu0 0
  %1991 = vmatmul.mubr.bf16.gmra.mrb[0].mxu0 %v1942
  %v1992 = vpop.f32.mrb[0].mxu0
  %v1993 = vadd.f32 %v89, %v1992
  %v1994 = vpop.f32.mrb[0].mxu0
  %v1995 = vpop.f32.mrb[0].mxu0
  %v1996 = vadd.f32 %v90, %v1995
  %v1997 = vpop.f32.mrb[0].mxu0
  %1998 = vdwg.mxu0
  %v1999 = vsel %vm169, %v1985, -inf
  %2000 = vmax.xlane.f32.xlu0 %v1999
  %v2001 = vpop.xlane.xlu0 %2000
  %v2002 = vsel %vm169, %v1988, -inf
  %2003 = vmax.xlane.f32.xlu0 %v2002
  %v2004 = vpop.xlane.xlu0 %2003
  %v2005 = vsel %vm169, %v1993, -inf
  %2006 = vmax.xlane.f32.xlu0 %v2005
  %v2007 = vpop.xlane.xlu0 %2006
  %v2008 = vsel %vm169, %v1996, -inf
  %2009 = vmax.xlane.f32.xlu0 %v2008
  %v2010 = vpop.xlane.xlu0 %2009
  %v2011 = vsub.f32 %v1985, %v2001
  %v2012 = vsub.f32 %v1988, %v2004
  %v2013 = vsub.f32 %v1993, %v2007
  %v2014 = vsub.f32 %v1996, %v2010
  %v2015 = vmul.f32 %v2011, 1.442695
  %v2016 = vpow.pop %v2015
  %v2017 = vmul.f32 %v2012, 1.442695
  %v2018 = vpow.pop %v2017
  %v2019 = vmul.f32 %v2013, 1.442695
  %v2020 = vpow.pop %v2019
  %v2021 = vmul.f32 %v2014, 1.442695
  %v2022 = vpow.pop %v2021
  %v2023 = vsel %vm169, %v2016, 0.0
  %2024 = vadd.xlane.f32.xlu0 %v2023
  %v2025 = vpop.xlane.xlu0 %2024
  %v2026 = vsel %vm169, %v2018, 0.0
  %2027 = vadd.xlane.f32.xlu0 %v2026
  %v2028 = vpop.xlane.xlu0 %2027
  %v2029 = vsel %vm169, %v2020, 0.0
  %2030 = vadd.xlane.f32.xlu0 %v2029
  %v2031 = vpop.xlane.xlu0 %2030
  %v2032 = vsel %vm169, %v2022, 0.0
  %2033 = vadd.xlane.f32.xlu0 %v2032
  %v2034 = vpop.xlane.xlu0 %2033
  %v2035 = vrcp.pop %v2025
  %v2036 = vrcp.pop %v2028
  %v2037 = vrcp.pop %v2031
  %v2038 = vrcp.pop %v2034
  %v2039 = vmul.f32 %v2016, %v2035
  %v2040 = vmul.f32 %v2018, %v2036
  %v2041 = vmul.f32 %v2020, %v2037
  %v2042 = vmul.f32 %v2022, %v2038
  %v2043 = vpack.c.bf16 %v2040, %v2039
  %v2044 = vpack.c.bf16 %v2042, %v2041
  %2047 = vrot.lane.b32.xlu0 %v1760, 112
  %v2048 = vpop.permute.xlu0 %2047
  %2049 = vrot.lane.b32.xlu0 %v1761, 112
  %v2050 = vpop.permute.xlu0 %2049
  %v2054 = vsel %vm169, %v2043, 0
  %v2057 = vsel %vm169, %v2044, 0
  %2059 = vmatprep.subr.bf16.mxu0 0
  %2060 = vmatpush1.bf16.msra.mxu0 %v2048
  %2061 = vmatprep.subr.bf16.mxu0 0
  %2062 = vmatpush1.bf16.msra.mxu0 %v2050
  %2063 = vmatprep.subr.bf16.mxu0 0
  %2064 = vmatpush1.bf16.msra.mxu0 0
  %2065 = vmatprep.subr.bf16.mxu0 0
  %2066 = vmatpush1.bf16.msra.mxu0 0
  %2067 = vmatprep.subr.bf16.mxu0 0
  %2068 = vmatpush1.bf16.msra.mxu0 0
  %2069 = vmatprep.subr.bf16.mxu0 0
  %2070 = vmatpush1.bf16.msra.mxu0 0
  %2071 = vmatprep.subr.bf16.mxu0 0
  %2072 = vmatpush1.bf16.msra.mxu0 0
  %2073 = vmatprep.subr.bf16.mxu0 0
  %2074 = vmatpush1.bf16.msra.mxu0 0
  %2075 = vmatprep.subr.bf16.mxu0 0
  %2076 = vmatpush1.bf16.msra.mxu0 0
  %2077 = vmatprep.subr.bf16.mxu0 0
  %2078 = vmatpush1.bf16.msra.mxu0 0
  %2079 = vmatprep.subr.bf16.mxu0 0
  %2080 = vmatpush1.bf16.msra.mxu0 0
  %2081 = vmatprep.subr.bf16.mxu0 0
  %2082 = vmatpush1.bf16.msra.mxu0 0
  %2083 = vmatprep.subr.bf16.mxu0 0
  %2084 = vmatpush1.bf16.msra.mxu0 0
  %2085 = vmatprep.subr.bf16.mxu0 0
  %2086 = vmatpush1.bf16.msra.mxu0 0
  %2087 = vmatprep.subr.bf16.mxu0 0
  %2088 = vmatpush1.bf16.msra.mxu0 0
  %2089 = vmatprep.subr.bf16.mxu0 0
  %2090 = vmatpush1.bf16.msra.mxu0 0
  %2091 = vmatprep.mubr.bf16.mxu0 0
  %2092 = vmatmul.mubr.bf16.gmra.mrb[0].mxu0 %v2054
  %v2093 = vpop.f32.mrb[0].mxu0
  %v2094 = vadd.f32 0.0, %v2093
  %v2095 = vpop.f32.mrb[0].mxu0
  %v2096 = vpop.f32.mrb[0].mxu0
  %v2097 = vadd.f32 0.0, %v2096
  %v2098 = vpop.f32.mrb[0].mxu0
  %2099 = vmatprep.mubr.bf16.mxu0 0
  %2100 = vmatmul.mubr.bf16.gmra.mrb[0].mxu0 %v2057
  %v2101 = vpop.f32.mrb[0].mxu0
  %v2102 = vadd.f32 0.0, %v2101
  %v2103 = vpop.f32.mrb[0].mxu0
  %v2104 = vpop.f32.mrb[0].mxu0
  %v2105 = vadd.f32 0.0, %v2104
  %v2106 = vpop.f32.mrb[0].mxu0
  %2107 = vdwg.mxu0
  %2108 = vrot.lane.b32.xlu0 %v1758, 96
  %v2109 = vpop.permute.xlu0 %2108
  %2110 = vrot.lane.b32.xlu0 %v1759, 96
  %v2111 = vpop.permute.xlu0 %2110
  %2112 = vrot.lane.b32.xlu0 %v1758, 32
  %v2113 = vpop.permute.xlu0 %2112
  %2114 = vrot.lane.b32.xlu0 %v1759, 32
  %v2115 = vpop.permute.xlu0 %2114
  %v2117 = vsel %vm375, %v2109, 0
  %v2120 = vsel %vm375, %v2111, 0
  %v2123 = vsel %vm375, %v2113, 0
  %v2126 = vsel %vm375, %v2115, 0
  %2128 = vmatprep.subr.bf16.mxu0 0
  %2129 = vmatpush1.bf16.xpose.msra.mxu0 %v2123
  %2130 = vmatprep.subr.bf16.mxu0 0
  %2131 = vmatpush1.bf16.xpose.msra.mxu0 %v2126
  %2132 = vmatprep.subr.bf16.mxu0 0
  %2133 = vmatpush1.bf16.xpose.msra.mxu0 0
  %2134 = vmatprep.subr.bf16.mxu0 0
  %2135 = vmatpush1.bf16.xpose.msra.mxu0 0
  %2136 = vmatprep.subr.bf16.mxu0 0
  %2137 = vmatpush1.bf16.xpose.msra.mxu0 0
  %2138 = vmatprep.subr.bf16.mxu0 0
  %2139 = vmatpush1.bf16.xpose.msra.mxu0 0
  %2140 = vmatprep.subr.bf16.mxu0 0
  %2141 = vmatpush1.bf16.xpose.msra.mxu0 0
  %2142 = vmatprep.subr.bf16.mxu0 0
  %2143 = vmatpush1.bf16.xpose.msra.mxu0 0
  %2144 = vmatprep.subr.bf16.mxu0 0
  %2145 = vmatpush1.bf16.xpose.msra.mxu0 0
  %2146 = vmatprep.subr.bf16.mxu0 0
  %2147 = vmatpush1.bf16.xpose.msra.mxu0 0
  %2148 = vmatprep.subr.bf16.mxu0 0
  %2149 = vmatpush1.bf16.xpose.msra.mxu0 0
  %2150 = vmatprep.subr.bf16.mxu0 0
  %2151 = vmatpush1.bf16.xpose.msra.mxu0 0
  %2152 = vmatprep.subr.bf16.mxu0 0
  %2153 = vmatpush1.bf16.xpose.msra.mxu0 0
  %2154 = vmatprep.subr.bf16.mxu0 0
  %2155 = vmatpush1.bf16.xpose.msra.mxu0 0
  %2156 = vmatprep.subr.bf16.mxu0 0
  %2157 = vmatpush1.bf16.xpose.msra.mxu0 0
  %2158 = vmatprep.subr.bf16.mxu0 0
  %2159 = vmatpush1.bf16.xpose.msra.mxu0 0
  %2160 = vmatprep.mubr.bf16.mxu0 0
  %2161 = vmatmul.mubr.bf16.gmra.mrb[0].mxu0 %v2117
  %v2162 = vpop.f32.mrb[0].mxu0
  %v2163 = vadd.f32 %v87, %v2162
  %v2164 = vpop.f32.mrb[0].mxu0
  %v2165 = vpop.f32.mrb[0].mxu0
  %v2166 = vadd.f32 %v88, %v2165
  %v2167 = vpop.f32.mrb[0].mxu0
  %2168 = vmatprep.mubr.bf16.mxu0 0
  %2169 = vmatmul.mubr.bf16.gmra.mrb[0].mxu0 %v2120
  %v2170 = vpop.f32.mrb[0].mxu0
  %v2171 = vadd.f32 %v89, %v2170
  %v2172 = vpop.f32.mrb[0].mxu0
  %v2173 = vpop.f32.mrb[0].mxu0
  %v2174 = vadd.f32 %v90, %v2173
  %v2175 = vpop.f32.mrb[0].mxu0
  %2176 = vdwg.mxu0
  %v2177 = vsel %vm169, %v2163, -inf
  %2178 = vmax.xlane.f32.xlu0 %v2177
  %v2179 = vpop.xlane.xlu0 %2178
  %v2180 = vsel %vm169, %v2166, -inf
  %2181 = vmax.xlane.f32.xlu0 %v2180
  %v2182 = vpop.xlane.xlu0 %2181
  %v2183 = vsel %vm169, %v2171, -inf
  %2184 = vmax.xlane.f32.xlu0 %v2183
  %v2185 = vpop.xlane.xlu0 %2184
  %v2186 = vsel %vm169, %v2174, -inf
  %2187 = vmax.xlane.f32.xlu0 %v2186
  %v2188 = vpop.xlane.xlu0 %2187
  %v2189 = vsub.f32 %v2163, %v2179
  %v2190 = vsub.f32 %v2166, %v2182
  %v2191 = vsub.f32 %v2171, %v2185
  %v2192 = vsub.f32 %v2174, %v2188
  %v2193 = vmul.f32 %v2189, 1.442695
  %v2194 = vpow.pop %v2193
  %v2195 = vmul.f32 %v2190, 1.442695
  %v2196 = vpow.pop %v2195
  %v2197 = vmul.f32 %v2191, 1.442695
  %v2198 = vpow.pop %v2197
  %v2199 = vmul.f32 %v2192, 1.442695
  %v2200 = vpow.pop %v2199
  %v2201 = vsel %vm169, %v2194, 0.0
  %2202 = vadd.xlane.f32.xlu0 %v2201
  %v2203 = vpop.xlane.xlu0 %2202
  %v2204 = vsel %vm169, %v2196, 0.0
  %2205 = vadd.xlane.f32.xlu0 %v2204
  %v2206 = vpop.xlane.xlu0 %2205
  %v2207 = vsel %vm169, %v2198, 0.0
  %2208 = vadd.xlane.f32.xlu0 %v2207
  %v2209 = vpop.xlane.xlu0 %2208
  %v2210 = vsel %vm169, %v2200, 0.0
  %2211 = vadd.xlane.f32.xlu0 %v2210
  %v2212 = vpop.xlane.xlu0 %2211
  %v2213 = vrcp.pop %v2203
  %v2214 = vrcp.pop %v2206
  %v2215 = vrcp.pop %v2209
  %v2216 = vrcp.pop %v2212
  %v2217 = vmul.f32 %v2194, %v2213
  %v2218 = vmul.f32 %v2196, %v2214
  %v2219 = vmul.f32 %v2198, %v2215
  %v2220 = vmul.f32 %v2200, %v2216
  %v2221 = vpack.c.bf16 %v2218, %v2217
  %v2222 = vpack.c.bf16 %v2220, %v2219
  %2223 = vrot.lane.b32.xlu0 %v1760, 96
  %v2224 = vpop.permute.xlu0 %2223
  %2225 = vrot.lane.b32.xlu0 %v1761, 96
  %v2226 = vpop.permute.xlu0 %2225
  %v2230 = vsel %vm169, %v2221, 0
  %v2233 = vsel %vm169, %v2222, 0
  %2235 = vmatprep.subr.bf16.mxu0 0
  %2236 = vmatpush1.bf16.msra.mxu0 %v2224
  %2237 = vmatprep.subr.bf16.mxu0 0
  %2238 = vmatpush1.bf16.msra.mxu0 %v2226
  %2239 = vmatprep.subr.bf16.mxu0 0
  %2240 = vmatpush1.bf16.msra.mxu0 0
  %2241 = vmatprep.subr.bf16.mxu0 0
  %2242 = vmatpush1.bf16.msra.mxu0 0
  %2243 = vmatprep.subr.bf16.mxu0 0
  %2244 = vmatpush1.bf16.msra.mxu0 0
  %2245 = vmatprep.subr.bf16.mxu0 0
  %2246 = vmatpush1.bf16.msra.mxu0 0
  %2247 = vmatprep.subr.bf16.mxu0 0
  %2248 = vmatpush1.bf16.msra.mxu0 0
  %2249 = vmatprep.subr.bf16.mxu0 0
  %2250 = vmatpush1.bf16.msra.mxu0 0
  %2251 = vmatprep.subr.bf16.mxu0 0
  %2252 = vmatpush1.bf16.msra.mxu0 0
  %2253 = vmatprep.subr.bf16.mxu0 0
  %2254 = vmatpush1.bf16.msra.mxu0 0
  %2255 = vmatprep.subr.bf16.mxu0 0
  %2256 = vmatpush1.bf16.msra.mxu0 0
  %2257 = vmatprep.subr.bf16.mxu0 0
  %2258 = vmatpush1.bf16.msra.mxu0 0
  %2259 = vmatprep.subr.bf16.mxu0 0
  %2260 = vmatpush1.bf16.msra.mxu0 0
  %2261 = vmatprep.subr.bf16.mxu0 0
  %2262 = vmatpush1.bf16.msra.mxu0 0
  %2263 = vmatprep.subr.bf16.mxu0 0
  %2264 = vmatpush1.bf16.msra.mxu0 0
  %2265 = vmatprep.subr.bf16.mxu0 0
  %2266 = vmatpush1.bf16.msra.mxu0 0
  %2267 = vmatprep.mubr.bf16.mxu0 0
  %2268 = vmatmul.mubr.bf16.gmra.mrb[0].mxu0 %v2230
  %v2269 = vpop.f32.mrb[0].mxu0
  %v2270 = vadd.f32 0.0, %v2269
  %v2271 = vpop.f32.mrb[0].mxu0
  %v2272 = vpop.f32.mrb[0].mxu0
  %v2273 = vadd.f32 0.0, %v2272
  %v2274 = vpop.f32.mrb[0].mxu0
  %2275 = vmatprep.mubr.bf16.mxu0 0
  %2276 = vmatmul.mubr.bf16.gmra.mrb[0].mxu0 %v2233
  %v2277 = vpop.f32.mrb[0].mxu0
  %v2278 = vadd.f32 0.0, %v2277
  %v2279 = vpop.f32.mrb[0].mxu0
  %v2280 = vpop.f32.mrb[0].mxu0
  %v2281 = vadd.f32 0.0, %v2280
  %v2282 = vpop.f32.mrb[0].mxu0
  %2283 = vdwg.mxu0
  %2284 = vrot.lane.b32.xlu0 %v1758, 80
  %v2285 = vpop.permute.xlu0 %2284
  %2286 = vrot.lane.b32.xlu0 %v1759, 80
  %v2287 = vpop.permute.xlu0 %2286
  %2288 = vrot.lane.b32.xlu0 %v1758, 16
  %v2289 = vpop.permute.xlu0 %2288
  %2290 = vrot.lane.b32.xlu0 %v1759, 16
  %v2291 = vpop.permute.xlu0 %2290
  %v2293 = vsel %vm375, %v2285, 0
  %v2296 = vsel %vm375, %v2287, 0
  %v2299 = vsel %vm375, %v2289, 0
  %v2302 = vsel %vm375, %v2291, 0
  %2304 = vmatprep.subr.bf16.mxu0 0
  %2305 = vmatpush1.bf16.xpose.msra.mxu0 %v2299
  %2306 = vmatprep.subr.bf16.mxu0 0
  %2307 = vmatpush1.bf16.xpose.msra.mxu0 %v2302
  %2308 = vmatprep.subr.bf16.mxu0 0
  %2309 = vmatpush1.bf16.xpose.msra.mxu0 0
  %2310 = vmatprep.subr.bf16.mxu0 0
  %2311 = vmatpush1.bf16.xpose.msra.mxu0 0
  %2312 = vmatprep.subr.bf16.mxu0 0
  %2313 = vmatpush1.bf16.xpose.msra.mxu0 0
  %2314 = vmatprep.subr.bf16.mxu0 0
  %2315 = vmatpush1.bf16.xpose.msra.mxu0 0
  %2316 = vmatprep.subr.bf16.mxu0 0
  %2317 = vmatpush1.bf16.xpose.msra.mxu0 0
  %2318 = vmatprep.subr.bf16.mxu0 0
  %2319 = vmatpush1.bf16.xpose.msra.mxu0 0
  %2320 = vmatprep.subr.bf16.mxu0 0
  %2321 = vmatpush1.bf16.xpose.msra.mxu0 0
  %2322 = vmatprep.subr.bf16.mxu0 0
  %2323 = vmatpush1.bf16.xpose.msra.mxu0 0
  %2324 = vmatprep.subr.bf16.mxu0 0
  %2325 = vmatpush1.bf16.xpose.msra.mxu0 0
  %2326 = vmatprep.subr.bf16.mxu0 0
  %2327 = vmatpush1.bf16.xpose.msra.mxu0 0
  %2328 = vmatprep.subr.bf16.mxu0 0
  %2329 = vmatpush1.bf16.xpose.msra.mxu0 0
  %2330 = vmatprep.subr.bf16.mxu0 0
  %2331 = vmatpush1.bf16.xpose.msra.mxu0 0
  %2332 = vmatprep.subr.bf16.mxu0 0
  %2333 = vmatpush1.bf16.xpose.msra.mxu0 0
  %2334 = vmatprep.subr.bf16.mxu0 0
  %2335 = vmatpush1.bf16.xpose.msra.mxu0 0
  %2336 = vmatprep.mubr.bf16.mxu0 0
  %2337 = vmatmul.mubr.bf16.gmra.mrb[0].mxu0 %v2293
  %v2338 = vpop.f32.mrb[0].mxu0
  %v2339 = vadd.f32 %v87, %v2338
  %v2340 = vpop.f32.mrb[0].mxu0
  %v2341 = vpop.f32.mrb[0].mxu0
  %v2342 = vadd.f32 %v88, %v2341
  %v2343 = vpop.f32.mrb[0].mxu0
  %2344 = vmatprep.mubr.bf16.mxu0 0
  %2345 = vmatmul.mubr.bf16.gmra.mrb[0].mxu0 %v2296
  %v2346 = vpop.f32.mrb[0].mxu0
  %v2347 = vadd.f32 %v89, %v2346
  %v2348 = vpop.f32.mrb[0].mxu0
  %v2349 = vpop.f32.mrb[0].mxu0
  %v2350 = vadd.f32 %v90, %v2349
  %v2351 = vpop.f32.mrb[0].mxu0
  %2352 = vdwg.mxu0
  %v2353 = vsel %vm169, %v2339, -inf
  %2354 = vmax.xlane.f32.xlu0 %v2353
  %v2355 = vpop.xlane.xlu0 %2354
  %v2356 = vsel %vm169, %v2342, -inf
  %2357 = vmax.xlane.f32.xlu0 %v2356
  %v2358 = vpop.xlane.xlu0 %2357
  %v2359 = vsel %vm169, %v2347, -inf
  %2360 = vmax.xlane.f32.xlu0 %v2359
  %v2361 = vpop.xlane.xlu0 %2360
  %v2362 = vsel %vm169, %v2350, -inf
  %2363 = vmax.xlane.f32.xlu0 %v2362
  %v2364 = vpop.xlane.xlu0 %2363
  %v2365 = vsub.f32 %v2339, %v2355
  %v2366 = vsub.f32 %v2342, %v2358
  %v2367 = vsub.f32 %v2347, %v2361
  %v2368 = vsub.f32 %v2350, %v2364
  %v2369 = vmul.f32 %v2365, 1.442695
  %v2370 = vpow.pop %v2369
  %v2371 = vmul.f32 %v2366, 1.442695
  %v2372 = vpow.pop %v2371
  %v2373 = vmul.f32 %v2367, 1.442695
  %v2374 = vpow.pop %v2373
  %v2375 = vmul.f32 %v2368, 1.442695
  %v2376 = vpow.pop %v2375
  %v2377 = vsel %vm169, %v2370, 0.0
  %2378 = vadd.xlane.f32.xlu0 %v2377
  %v2379 = vpop.xlane.xlu0 %2378
  %v2380 = vsel %vm169, %v2372, 0.0
  %2381 = vadd.xlane.f32.xlu0 %v2380
  %v2382 = vpop.xlane.xlu0 %2381
  %v2383 = vsel %vm169, %v2374, 0.0
  %2384 = vadd.xlane.f32.xlu0 %v2383
  %v2385 = vpop.xlane.xlu0 %2384
  %v2386 = vsel %vm169, %v2376, 0.0
  %2387 = vadd.xlane.f32.xlu0 %v2386
  %v2388 = vpop.xlane.xlu0 %2387
  %v2389 = vrcp.pop %v2379
  %v2390 = vrcp.pop %v2382
  %v2391 = vrcp.pop %v2385
  %v2392 = vrcp.pop %v2388
  %v2393 = vmul.f32 %v2370, %v2389
  %v2394 = vmul.f32 %v2372, %v2390
  %v2395 = vmul.f32 %v2374, %v2391
  %v2396 = vmul.f32 %v2376, %v2392
  %v2397 = vpack.c.bf16 %v2394, %v2393
  %v2398 = vpack.c.bf16 %v2396, %v2395
  %2399 = vrot.lane.b32.xlu0 %v1760, 80
  %v2400 = vpop.permute.xlu0 %2399
  %2401 = vrot.lane.b32.xlu0 %v1761, 80
  %v2402 = vpop.permute.xlu0 %2401
  %v2406 = vsel %vm169, %v2397, 0
  %v2409 = vsel %vm169, %v2398, 0
  %2411 = vmatprep.subr.bf16.mxu0 0
  %2412 = vmatpush1.bf16.msra.mxu0 %v2400
  %2413 = vmatprep.subr.bf16.mxu0 0
  %2414 = vmatpush1.bf16.msra.mxu0 %v2402
  %2415 = vmatprep.subr.bf16.mxu0 0
  %2416 = vmatpush1.bf16.msra.mxu0 0
  %2417 = vmatprep.subr.bf16.mxu0 0
  %2418 = vmatpush1.bf16.msra.mxu0 0
  %2419 = vmatprep.subr.bf16.mxu0 0
  %2420 = vmatpush1.bf16.msra.mxu0 0
  %2421 = vmatprep.subr.bf16.mxu0 0
  %2422 = vmatpush1.bf16.msra.mxu0 0
  %2423 = vmatprep.subr.bf16.mxu0 0
  %2424 = vmatpush1.bf16.msra.mxu0 0
  %2425 = vmatprep.subr.bf16.mxu0 0
  %2426 = vmatpush1.bf16.msra.mxu0 0
  %2427 = vmatprep.subr.bf16.mxu0 0
  %2428 = vmatpush1.bf16.msra.mxu0 0
  %2429 = vmatprep.subr.bf16.mxu0 0
  %2430 = vmatpush1.bf16.msra.mxu0 0
  %2431 = vmatprep.subr.bf16.mxu0 0
  %2432 = vmatpush1.bf16.msra.mxu0 0
  %2433 = vmatprep.subr.bf16.mxu0 0
  %2434 = vmatpush1.bf16.msra.mxu0 0
  %2435 = vmatprep.subr.bf16.mxu0 0
  %2436 = vmatpush1.bf16.msra.mxu0 0
  %2437 = vmatprep.subr.bf16.mxu0 0
  %2438 = vmatpush1.bf16.msra.mxu0 0
  %2439 = vmatprep.subr.bf16.mxu0 0
  %2440 = vmatpush1.bf16.msra.mxu0 0
  %2441 = vmatprep.subr.bf16.mxu0 0
  %2442 = vmatpush1.bf16.msra.mxu0 0
  %2443 = vmatprep.mubr.bf16.mxu0 0
  %2444 = vmatmul.mubr.bf16.gmra.mrb[0].mxu0 %v2406
  %v2445 = vpop.f32.mrb[0].mxu0
  %v2446 = vadd.f32 0.0, %v2445
  %v2447 = vpop.f32.mrb[0].mxu0
  %v2448 = vpop.f32.mrb[0].mxu0
  %v2449 = vadd.f32 0.0, %v2448
  %v2450 = vpop.f32.mrb[0].mxu0
  %2451 = vmatprep.mubr.bf16.mxu0 0
  %2452 = vmatmul.mubr.bf16.gmra.mrb[0].mxu0 %v2409
  %v2453 = vpop.f32.mrb[0].mxu0
  %v2454 = vadd.f32 0.0, %v2453
  %v2455 = vpop.f32.mrb[0].mxu0
  %v2456 = vpop.f32.mrb[0].mxu0
  %v2457 = vadd.f32 0.0, %v2456
  %v2458 = vpop.f32.mrb[0].mxu0
  %2459 = vdwg.mxu0
  %2464 = vrot.lane.b32.xlu0 %v2094, 16
  %v2465 = vpop.permute.xlu0 %2464
  %2466 = vrot.lane.b32.xlu0 %v2097, 16
  %v2467 = vpop.permute.xlu0 %2466
  %2468 = vrot.lane.b32.xlu0 %v2102, 16
  %v2469 = vpop.permute.xlu0 %2468
  %2470 = vrot.lane.b32.xlu0 %v2105, 16
  %v2471 = vpop.permute.xlu0 %2470
  %2480 = vrot.lane.b32.xlu0 %v2270, 32
  %v2481 = vpop.permute.xlu0 %2480
  %2482 = vrot.lane.b32.xlu0 %v2273, 32
  %v2483 = vpop.permute.xlu0 %2482
  %2484 = vrot.lane.b32.xlu0 %v2278, 32
  %v2485 = vpop.permute.xlu0 %2484
  %2486 = vrot.lane.b32.xlu0 %v2281, 32
  %v2487 = vpop.permute.xlu0 %2486
  %2496 = vrot.lane.b32.xlu0 %v2446, 48
  %v2497 = vpop.permute.xlu0 %2496
  %2498 = vrot.lane.b32.xlu0 %v2449, 48
  %v2499 = vpop.permute.xlu0 %2498
  %2500 = vrot.lane.b32.xlu0 %v2454, 48
  %v2501 = vpop.permute.xlu0 %2500
  %2502 = vrot.lane.b32.xlu0 %v2457, 48
  %v2503 = vpop.permute.xlu0 %2502
  %v2508 = vsel %vm375, %v1916, %v2465
  %v2509 = vsel %vm375, %v1919, %v2467
  %v2510 = vsel %vm375, %v1924, %v2469
  %v2511 = vsel %vm375, %v1927, %v2471
  %v2512 = vsel %vm169, %v2508, %v2481
  %v2513 = vsel %vm169, %v2509, %v2483
  %v2514 = vsel %vm169, %v2510, %v2485
  %v2515 = vsel %vm169, %v2511, %v2487
  %v2516 = vsel %vm1124, %v2512, %v2497
  %v2517 = vsel %vm1124, %v2513, %v2499
  %v2518 = vsel %vm1124, %v2514, %v2501
  %v2519 = vsel %vm1124, %v2515, %v2503
  %v2520 = vpack.c.bf16 %v2517, %v2516
  %v2521 = vpack.c.bf16 %v2519, %v2518
  %s2522 = scalar_lea.vmem %s9, 32
  %v2523 = vld [vmem:[%s2522] sm:$0xf]
  %v2524 = vld [vmem:[%s2522 + $0x4] sm:$0xf]
  %v2525 = vld [vmem:[%s2522 + $0x8] sm:$0xf]
  %v2526 = vld [vmem:[%s2522 + $0xc] sm:$0xf]
  %v2527 = vld [vmem:[%s2522 + $0x10] sm:$0xf]
  %v2528 = vld [vmem:[%s2522 + $0x14] sm:$0xf]
  %v2529 = vld [vmem:[%s2522 + $0x18] sm:$0xf]
  %v2530 = vld [vmem:[%s2522 + $0x1c] sm:$0xf]
  %s2531 = scalar_lea.vmem %s10, 1
  %v2532 = vld [vmem:[%s2531] sm:$0x1]
  %v2534 = vlaneseq
  %v2535 = vshrl.u32 %v2534, 7
  %v2536 = vsub.s32 0, %v2535
  %v2537 = vrot.slane %v2532, %v2536
  %v2547 = vunpack.c.l.b16 %v2523
  %v2548 = vunpack.c.l.b16 %v2524
  %v2549 = vunpack.c.l.b16 %v2525
  %v2550 = vunpack.c.l.b16 %v2526
  %v2551 = vunpack.c.l.b16 %v2527
  %v2552 = vunpack.c.l.b16 %v2528
  %v2553 = vunpack.c.l.b16 %v2529
  %v2554 = vunpack.c.l.b16 %v2530
  %v2555 = vpack.c.b16 %v2548, %v2547
  %v2556 = vpack.c.b16 %v2550, %v2549
  %v2557 = vpack.c.b16 %v2552, %v2551
  %v2558 = vpack.c.b16 %v2554, %v2553
  %v2564 = vsel %vm95, %v2520, 0
  %v2567 = vsel %vm95, %v2521, 0
  %2569 = vmatprep.subr.bf16.mxu0 0
  %2570 = vmatpush1.bf16.msra.mxu0 %v2555
  %2571 = vmatprep.subr.bf16.mxu0 0
  %2572 = vmatpush1.bf16.msra.mxu0 %v2556
  %2573 = vmatprep.subr.bf16.mxu0 0
  %2574 = vmatpush1.bf16.msra.mxu0 %v2557
  %2575 = vmatprep.subr.bf16.mxu0 0
  %2576 = vmatpush1.bf16.msra.mxu0 %v2558
  %2577 = vmatprep.subr.bf16.mxu0 0
  %2578 = vmatpush1.bf16.msra.mxu0 0
  %2579 = vmatprep.subr.bf16.mxu0 0
  %2580 = vmatpush1.bf16.msra.mxu0 0
  %2581 = vmatprep.subr.bf16.mxu0 0
  %2582 = vmatpush1.bf16.msra.mxu0 0
  %2583 = vmatprep.subr.bf16.mxu0 0
  %2584 = vmatpush1.bf16.msra.mxu0 0
  %2585 = vmatprep.subr.bf16.mxu0 0
  %2586 = vmatpush1.bf16.msra.mxu0 0
  %2587 = vmatprep.subr.bf16.mxu0 0
  %2588 = vmatpush1.bf16.msra.mxu0 0
  %2589 = vmatprep.subr.bf16.mxu0 0
  %2590 = vmatpush1.bf16.msra.mxu0 0
  %2591 = vmatprep.subr.bf16.mxu0 0
  %2592 = vmatpush1.bf16.msra.mxu0 0
  %2593 = vmatprep.subr.bf16.mxu0 0
  %2594 = vmatpush1.bf16.msra.mxu0 0
  %2595 = vmatprep.subr.bf16.mxu0 0
  %2596 = vmatpush1.bf16.msra.mxu0 0
  %2597 = vmatprep.subr.bf16.mxu0 0
  %2598 = vmatpush1.bf16.msra.mxu0 0
  %2599 = vmatprep.subr.bf16.mxu0 0
  %2600 = vmatpush1.bf16.msra.mxu0 0
  %2601 = vmatprep.mubr.bf16.mxu0 0
  %2602 = vmatmul.mubr.bf16.gmra.mrb[0].mxu0 %v2564
  %v2603 = vpop.f32.mrb[0].mxu0
  %v2604 = vadd.f32 %v2537, %v2603
  %v2605 = vpop.f32.mrb[0].mxu0
  %v2606 = vpop.f32.mrb[0].mxu0
  %v2607 = vadd.f32 %v2537, %v2606
  %v2608 = vpop.f32.mrb[0].mxu0
  %2609 = vmatprep.mubr.bf16.mxu0 0
  %2610 = vmatmul.mubr.bf16.gmra.mrb[0].mxu0 %v2567
  %v2611 = vpop.f32.mrb[0].mxu0
  %v2612 = vadd.f32 %v2537, %v2611
  %v2613 = vpop.f32.mrb[0].mxu0
  %v2614 = vpop.f32.mrb[0].mxu0
  %v2615 = vadd.f32 %v2537, %v2614
  %v2616 = vpop.f32.mrb[0].mxu0
  %2617 = vdwg.mxu0
  %v2618 = vadd.f32 %v2604, %v1631
  %v2619 = vadd.f32 %v2607, %v1632
  %v2620 = vadd.f32 %v2612, %v1633
  %v2621 = vadd.f32 %v2615, %v1634
  %s2622 = scalar_lea.vmem %s11, 1
  %v2623 = vld [vmem:[%s2622] sm:$0x1]
  %s2624 = scalar_lea.vmem %s12, 1
  %v2625 = vld [vmem:[%s2624] sm:$0x1]
  %v2626 = vsel %vm95, %v2618, 0.0
  %2627 = vadd.xlane.f32.xlu0 %v2626
  %v2628 = vpop.xlane.xlu0 %2627
  %v2629 = vsel %vm95, %v2619, 0.0
  %2630 = vadd.xlane.f32.xlu0 %v2629
  %v2631 = vpop.xlane.xlu0 %2630
  %v2632 = vsel %vm95, %v2620, 0.0
  %2633 = vadd.xlane.f32.xlu0 %v2632
  %v2634 = vpop.xlane.xlu0 %2633
  %v2635 = vsel %vm95, %v2621, 0.0
  %2636 = vadd.xlane.f32.xlu0 %v2635
  %v2637 = vpop.xlane.xlu0 %2636
  %v2638 = vmul.f32 %v2628, %v102
  %v2639 = vmul.f32 %v2631, %v102
  %v2640 = vmul.f32 %v2634, %v102
  %v2641 = vmul.f32 %v2637, %v102
  %v2642 = vsub.f32 %v2618, %v2638
  %v2643 = vsub.f32 %v2619, %v2639
  %v2644 = vsub.f32 %v2620, %v2640
  %v2645 = vsub.f32 %v2621, %v2641
  %v2646 = vmul.f32 %v2642, %v2642
  %v2647 = vmul.f32 %v2643, %v2643
  %v2648 = vmul.f32 %v2644, %v2644
  %v2649 = vmul.f32 %v2645, %v2645
  %v2650 = vsel %vm95, %v2646, 0.0
  %2651 = vadd.xlane.f32.xlu0 %v2650
  %v2652 = vpop.xlane.xlu0 %2651
  %v2653 = vsel %vm95, %v2647, 0.0
  %2654 = vadd.xlane.f32.xlu0 %v2653
  %v2655 = vpop.xlane.xlu0 %2654
  %v2656 = vsel %vm95, %v2648, 0.0
  %2657 = vadd.xlane.f32.xlu0 %v2656
  %v2658 = vpop.xlane.xlu0 %2657
  %v2659 = vsel %vm95, %v2649, 0.0
  %2660 = vadd.xlane.f32.xlu0 %v2659
  %v2661 = vpop.xlane.xlu0 %2660
  %v2662 = vmul.f32 %v2652, %v102
  %v2663 = vmul.f32 %v2655, %v102
  %v2664 = vmul.f32 %v2658, %v102
  %v2665 = vmul.f32 %v2661, %v102
  %v2666 = vadd.f32 %v2662, 1e-12
  %v2667 = vadd.f32 %v2663, 1e-12
  %v2668 = vadd.f32 %v2664, 1e-12
  %v2669 = vadd.f32 %v2665, 1e-12
  %v2670 = vrsqrt.pop %v2666
  %v2671 = vrsqrt.pop %v2667
  %v2672 = vrsqrt.pop %v2668
  %v2673 = vrsqrt.pop %v2669
  %v2674 = vmul.f32 %v2642, %v2670
  %v2675 = vmul.f32 %v2643, %v2671
  %v2676 = vmul.f32 %v2644, %v2672
  %v2677 = vmul.f32 %v2645, %v2673
  %v2679 = vlaneseq
  %v2680 = vshrl.u32 %v2679, 7
  %v2681 = vsub.s32 0, %v2680
  %v2682 = vrot.slane %v2623, %v2681
  %v2684 = vmul.f32 %v2674, %v2682
  %v2685 = vmul.f32 %v2675, %v2682
  %v2686 = vmul.f32 %v2676, %v2682
  %v2687 = vmul.f32 %v2677, %v2682
  %v2689 = vlaneseq
  %v2690 = vshrl.u32 %v2689, 7
  %v2691 = vsub.s32 0, %v2690
  %v2692 = vrot.slane %v2625, %v2691
  %v2694 = vadd.f32 %v2684, %v2692
  %v2695 = vadd.f32 %v2685, %v2692
  %v2696 = vadd.f32 %v2686, %v2692
  %v2697 = vadd.f32 %v2687, %v2692
  %v2698 = vpack.c.bf16 %v2695, %v2694
  %v2699 = vpack.c.bf16 %v2697, %v2696
  %s2700 = scalar_lea.vmem %s13, 32
  %v2701 = vld [vmem:[%s2700] sm:$0xf]
  %v2702 = vld [vmem:[%s2700 + $0x4] sm:$0xf]
  %v2703 = vld [vmem:[%s2700 + $0x8] sm:$0xf]
  %v2704 = vld [vmem:[%s2700 + $0xc] sm:$0xf]
  %v2705 = vld [vmem:[%s2700 + $0x10] sm:$0xf]
  %v2706 = vld [vmem:[%s2700 + $0x14] sm:$0xf]
  %v2707 = vld [vmem:[%s2700 + $0x18] sm:$0xf]
  %v2708 = vld [vmem:[%s2700 + $0x1c] sm:$0xf]
  %s2709 = scalar_lea.vmem %s14, 1
  %v2710 = vld [vmem:[%s2709] sm:$0x1]
  %v2712 = vlaneseq
  %v2713 = vshrl.u32 %v2712, 7
  %v2714 = vsub.s32 0, %v2713
  %v2715 = vrot.slane %v2710, %v2714
  %v2725 = vunpack.c.l.b16 %v2701
  %v2726 = vunpack.c.l.b16 %v2702
  %v2727 = vunpack.c.l.b16 %v2703
  %v2728 = vunpack.c.l.b16 %v2704
  %v2729 = vunpack.c.l.b16 %v2705
  %v2730 = vunpack.c.l.b16 %v2706
  %v2731 = vunpack.c.l.b16 %v2707
  %v2732 = vunpack.c.l.b16 %v2708
  %v2733 = vpack.c.b16 %v2726, %v2725
  %v2734 = vpack.c.b16 %v2728, %v2727
  %v2735 = vpack.c.b16 %v2730, %v2729
  %v2736 = vpack.c.b16 %v2732, %v2731
  %v2742 = vsel %vm95, %v2698, 0
  %v2745 = vsel %vm95, %v2699, 0
  %2747 = vmatprep.subr.bf16.mxu0 0
  %2748 = vmatpush1.bf16.msra.mxu0 %v2733
  %2749 = vmatprep.subr.bf16.mxu0 0
  %2750 = vmatpush1.bf16.msra.mxu0 %v2734
  %2751 = vmatprep.subr.bf16.mxu0 0
  %2752 = vmatpush1.bf16.msra.mxu0 %v2735
  %2753 = vmatprep.subr.bf16.mxu0 0
  %2754 = vmatpush1.bf16.msra.mxu0 %v2736
  %2755 = vmatprep.subr.bf16.mxu0 0
  %2756 = vmatpush1.bf16.msra.mxu0 0
  %2757 = vmatprep.subr.bf16.mxu0 0
  %2758 = vmatpush1.bf16.msra.mxu0 0
  %2759 = vmatprep.subr.bf16.mxu0 0
  %2760 = vmatpush1.bf16.msra.mxu0 0
  %2761 = vmatprep.subr.bf16.mxu0 0
  %2762 = vmatpush1.bf16.msra.mxu0 0
  %2763 = vmatprep.subr.bf16.mxu0 0
  %2764 = vmatpush1.bf16.msra.mxu0 0
  %2765 = vmatprep.subr.bf16.mxu0 0
  %2766 = vmatpush1.bf16.msra.mxu0 0
  %2767 = vmatprep.subr.bf16.mxu0 0
  %2768 = vmatpush1.bf16.msra.mxu0 0
  %2769 = vmatprep.subr.bf16.mxu0 0
  %2770 = vmatpush1.bf16.msra.mxu0 0
  %2771 = vmatprep.subr.bf16.mxu0 0
  %2772 = vmatpush1.bf16.msra.mxu0 0
  %2773 = vmatprep.subr.bf16.mxu0 0
  %2774 = vmatpush1.bf16.msra.mxu0 0
  %2775 = vmatprep.subr.bf16.mxu0 0
  %2776 = vmatpush1.bf16.msra.mxu0 0
  %2777 = vmatprep.subr.bf16.mxu0 0
  %2778 = vmatpush1.bf16.msra.mxu0 0
  %2779 = vmatprep.mubr.bf16.mxu0 0
  %2780 = vmatmul.mubr.bf16.gmra.mrb[0].mxu0 %v2742
  %v2781 = vpop.f32.mrb[0].mxu0
  %v2782 = vadd.f32 %v2715, %v2781
  %v2783 = vpop.f32.mrb[0].mxu0
  %v2784 = vpop.f32.mrb[0].mxu0
  %v2785 = vadd.f32 %v2715, %v2784
  %v2786 = vpop.f32.mrb[0].mxu0
  %2787 = vmatprep.mubr.bf16.mxu0 0
  %2788 = vmatmul.mubr.bf16.gmra.mrb[0].mxu0 %v2745
  %v2789 = vpop.f32.mrb[0].mxu0
  %v2790 = vadd.f32 %v2715, %v2789
  %v2791 = vpop.f32.mrb[0].mxu0
  %v2792 = vpop.f32.mrb[0].mxu0
  %v2793 = vadd.f32 %v2715, %v2792
  %v2794 = vpop.f32.mrb[0].mxu0
  %2795 = vdwg.mxu0
  %v2796 = vmul.f32 %v2782, %v2782
  %v2797 = vmul.f32 %v2785, %v2785
  %v2798 = vmul.f32 %v2790, %v2790
  %v2799 = vmul.f32 %v2793, %v2793
  %v2800 = vmul.f32 %v2782, %v2796
  %v2801 = vmul.f32 %v2785, %v2797
  %v2802 = vmul.f32 %v2790, %v2798
  %v2803 = vmul.f32 %v2793, %v2799
  %v2804 = vmul.f32 %v2800, 0.044715
  %v2805 = vmul.f32 %v2801, 0.044715
  %v2806 = vmul.f32 %v2802, 0.044715
  %v2807 = vmul.f32 %v2803, 0.044715
  %v2808 = vadd.f32 %v2782, %v2804
  %v2809 = vadd.f32 %v2785, %v2805
  %v2810 = vadd.f32 %v2790, %v2806
  %v2811 = vadd.f32 %v2793, %v2807
  %v2812 = vmul.f32 %v2808, 0.7978846
  %v2813 = vmul.f32 %v2809, 0.7978846
  %v2814 = vmul.f32 %v2810, 0.7978846
  %v2815 = vmul.f32 %v2811, 0.7978846
  %v2816 = vtanh.pop %v2812
  %v2817 = vtanh.pop %v2813
  %v2818 = vtanh.pop %v2814
  %v2819 = vtanh.pop %v2815
  %v2820 = vadd.f32 %v2816, 1.0
  %v2821 = vadd.f32 %v2817, 1.0
  %v2822 = vadd.f32 %v2818, 1.0
  %v2823 = vadd.f32 %v2819, 1.0
  %v2824 = vmul.f32 %v2820, 0.5
  %v2825 = vmul.f32 %v2821, 0.5
  %v2826 = vmul.f32 %v2822, 0.5
  %v2827 = vmul.f32 %v2823, 0.5
  %v2828 = vmul.f32 %v2782, %v2824
  %v2829 = vmul.f32 %v2785, %v2825
  %v2830 = vmul.f32 %v2790, %v2826
  %v2831 = vmul.f32 %v2793, %v2827
  %v2832 = vpack.c.bf16 %v2829, %v2828
  %v2833 = vpack.c.bf16 %v2831, %v2830
  %s2834 = scalar_lea.vmem %s15, 64
  %v2835 = vld [vmem:[%s2834] sm:$0xf]
  %v2836 = vld [vmem:[%s2834 + $0x4] sm:$0xf]
  %v2837 = vld [vmem:[%s2834 + $0x8] sm:$0xf]
  %v2838 = vld [vmem:[%s2834 + $0xc] sm:$0xf]
  %v2839 = vld [vmem:[%s2834 + $0x10] sm:$0xf]
  %v2840 = vld [vmem:[%s2834 + $0x14] sm:$0xf]
  %v2841 = vld [vmem:[%s2834 + $0x18] sm:$0xf]
  %v2842 = vld [vmem:[%s2834 + $0x1c] sm:$0xf]
  %v2843 = vld [vmem:[%s2834 + $0x20] sm:$0xf]
  %v2844 = vld [vmem:[%s2834 + $0x24] sm:$0xf]
  %v2845 = vld [vmem:[%s2834 + $0x28] sm:$0xf]
  %v2846 = vld [vmem:[%s2834 + $0x2c] sm:$0xf]
  %v2847 = vld [vmem:[%s2834 + $0x30] sm:$0xf]
  %v2848 = vld [vmem:[%s2834 + $0x34] sm:$0xf]
  %v2849 = vld [vmem:[%s2834 + $0x38] sm:$0xf]
  %v2850 = vld [vmem:[%s2834 + $0x3c] sm:$0xf]
  %s2851 = scalar_lea.vmem %s16, 1
  %v2852 = vld [vmem:[%s2851] sm:$0x1]
  %v2854 = vlaneseq
  %v2855 = vshrl.u32 %v2854, 7
  %v2856 = vsub.s32 0, %v2855
  %v2857 = vrot.slane %v2852, %v2856
  %v2875 = vunpack.c.l.b16 %v2835
  %v2876 = vunpack.c.l.b16 %v2836
  %v2877 = vunpack.c.l.b16 %v2837
  %v2878 = vunpack.c.l.b16 %v2838
  %v2879 = vunpack.c.l.b16 %v2839
  %v2880 = vunpack.c.l.b16 %v2840
  %v2881 = vunpack.c.l.b16 %v2841
  %v2882 = vunpack.c.l.b16 %v2842
  %v2883 = vunpack.c.l.b16 %v2843
  %v2884 = vunpack.c.l.b16 %v2844
  %v2885 = vunpack.c.l.b16 %v2845
  %v2886 = vunpack.c.l.b16 %v2846
  %v2887 = vunpack.c.l.b16 %v2847
  %v2888 = vunpack.c.l.b16 %v2848
  %v2889 = vunpack.c.l.b16 %v2849
  %v2890 = vunpack.c.l.b16 %v2850
  %v2891 = vpack.c.b16 %v2876, %v2875
  %v2892 = vpack.c.b16 %v2878, %v2877
  %v2893 = vpack.c.b16 %v2880, %v2879
  %v2894 = vpack.c.b16 %v2882, %v2881
  %v2895 = vpack.c.b16 %v2884, %v2883
  %v2896 = vpack.c.b16 %v2886, %v2885
  %v2897 = vpack.c.b16 %v2888, %v2887
  %v2898 = vpack.c.b16 %v2890, %v2889
  %2907 = vmatprep.subr.bf16.mxu0 0
  %2908 = vmatpush1.bf16.msra.mxu0 %v2891
  %2909 = vmatprep.subr.bf16.mxu0 0
  %2910 = vmatpush1.bf16.msra.mxu0 %v2892
  %2911 = vmatprep.subr.bf16.mxu0 0
  %2912 = vmatpush1.bf16.msra.mxu0 %v2893
  %2913 = vmatprep.subr.bf16.mxu0 0
  %2914 = vmatpush1.bf16.msra.mxu0 %v2894
  %2915 = vmatprep.subr.bf16.mxu0 0
  %2916 = vmatpush1.bf16.msra.mxu0 %v2895
  %2917 = vmatprep.subr.bf16.mxu0 0
  %2918 = vmatpush1.bf16.msra.mxu0 %v2896
  %2919 = vmatprep.subr.bf16.mxu0 0
  %2920 = vmatpush1.bf16.msra.mxu0 %v2897
  %2921 = vmatprep.subr.bf16.mxu0 0
  %2922 = vmatpush1.bf16.msra.mxu0 %v2898
  %2923 = vmatprep.subr.bf16.mxu0 0
  %2924 = vmatpush1.bf16.msra.mxu0 0
  %2925 = vmatprep.subr.bf16.mxu0 0
  %2926 = vmatpush1.bf16.msra.mxu0 0
  %2927 = vmatprep.subr.bf16.mxu0 0
  %2928 = vmatpush1.bf16.msra.mxu0 0
  %2929 = vmatprep.subr.bf16.mxu0 0
  %2930 = vmatpush1.bf16.msra.mxu0 0
  %2931 = vmatprep.subr.bf16.mxu0 0
  %2932 = vmatpush1.bf16.msra.mxu0 0
  %2933 = vmatprep.subr.bf16.mxu0 0
  %2934 = vmatpush1.bf16.msra.mxu0 0
  %2935 = vmatprep.subr.bf16.mxu0 0
  %2936 = vmatpush1.bf16.msra.mxu0 0
  %2937 = vmatprep.subr.bf16.mxu0 0
  %2938 = vmatpush1.bf16.msra.mxu0 0
  %2939 = vmatprep.mubr.bf16.mxu0 0
  %2940 = vmatmul.mubr.bf16.gmra.mrb[0].mxu0 %v2832
  %v2941 = vpop.f32.mrb[0].mxu0
  %v2942 = vadd.f32 %v2857, %v2941
  %v2943 = vpop.f32.mrb[0].mxu0
  %v2944 = vpop.f32.mrb[0].mxu0
  %v2945 = vpop.f32.mrb[0].mxu0
  %2946 = vmatprep.mubr.bf16.mxu0 0
  %2947 = vmatmul.mubr.bf16.gmra.mrb[0].mxu0 %v2833
  %v2948 = vpop.f32.mrb[0].mxu0
  %v2949 = vadd.f32 %v2857, %v2948
  %v2950 = vpop.f32.mrb[0].mxu0
  %v2951 = vpop.f32.mrb[0].mxu0
  %v2952 = vpop.f32.mrb[0].mxu0
  %2953 = vdwg.mxu0
  %v2954 = vadd.f32 %v2942, %v2694
  %v2955 = vadd.f32 %v2949, %v2696
  %s2956 = scalar_lea.vmem %s17, 1
  %v2957 = vld [vmem:[%s2956] sm:$0x1]
  %s2958 = scalar_lea.vmem %s18, 1
  %v2959 = vld [vmem:[%s2958] sm:$0x1]
  %v2960 = vsel %vm95, %v2954, 0.0
  %2961 = vadd.xlane.f32.xlu0 %v2960
  %v2962 = vpop.xlane.xlu0 %2961
  %v2963 = vsel %vm95, %v2955, 0.0
  %2964 = vadd.xlane.f32.xlu0 %v2963
  %v2965 = vpop.xlane.xlu0 %2964
  %v2966 = vmul.f32 %v2962, %v102
  %v2967 = vmul.f32 %v2965, %v102
  %v2968 = vsub.f32 %v2954, %v2966
  %v2969 = vsub.f32 %v2955, %v2967
  %v2970 = vmul.f32 %v2968, %v2968
  %v2971 = vmul.f32 %v2969, %v2969
  %v2972 = vsel %vm95, %v2970, 0.0
  %2973 = vadd.xlane.f32.xlu0 %v2972
  %v2974 = vpop.xlane.xlu0 %2973
  %v2975 = vsel %vm95, %v2971, 0.0
  %2976 = vadd.xlane.f32.xlu0 %v2975
  %v2977 = vpop.xlane.xlu0 %2976
  %v2978 = vmul.f32 %v2974, %v102
  %v2979 = vmul.f32 %v2977, %v102
  %v2980 = vadd.f32 %v2978, 1e-12
  %v2981 = vadd.f32 %v2979, 1e-12
  %v2982 = vrsqrt.pop %v2980
  %v2983 = vrsqrt.pop %v2981
  %v2984 = vmul.f32 %v2968, %v2982
  %v2985 = vmul.f32 %v2969, %v2983
  %v2987 = vlaneseq
  %v2988 = vshrl.u32 %v2987, 7
  %v2989 = vsub.s32 0, %v2988
  %v2990 = vrot.slane %v2957, %v2989
  %v2992 = vmul.f32 %v2984, %v2990
  %v2993 = vmul.f32 %v2985, %v2990
  %v2995 = vlaneseq
  %v2996 = vshrl.u32 %v2995, 7
  %v2997 = vsub.s32 0, %v2996
  %v2998 = vrot.slane %v2959, %v2997
  %v3000 = vadd.f32 %v2992, %v2998
  %v3001 = vadd.f32 %v2993, %v2998
  %v3003 = vrot.slane %v3001, 7
  %vm3005 = vcmask 1040384
  %v3006 = vsel %vm3005, %v3000, %v3003
  %v3007 = vpack.c.bf16 %v3006, %v3006
  %v3008 = vld [vmem:[%s19] sm:$0xf]
  %v3009 = vld [vmem:[%s19 + $0x4] sm:$0xf]
  %v3010 = vld [vmem:[%s19 + $0x8] sm:$0xf]
  %v3011 = vld [vmem:[%s19 + $0xc] sm:$0xf]
  %v3012 = vld [vmem:[%s19 + $0x10] sm:$0xf]
  %v3013 = vld [vmem:[%s19 + $0x14] sm:$0xf]
  %v3014 = vld [vmem:[%s19 + $0x18] sm:$0xf]
  %v3015 = vld [vmem:[%s19 + $0x1c] sm:$0xf]
  %v3016 = vld [vmem:[%s20] sm:$0x1]
  %v3018 = vlaneseq
  %v3019 = vshrl.u32 %v3018, 7
  %v3020 = vsub.s32 0, %v3019
  %v3021 = vrot.slane %v3016, %v3020
  %v3031 = vunpack.c.l.b16 %v3008
  %v3032 = vunpack.c.l.b16 %v3009
  %v3033 = vunpack.c.l.b16 %v3010
  %v3034 = vunpack.c.l.b16 %v3011
  %v3035 = vunpack.c.l.b16 %v3012
  %v3036 = vunpack.c.l.b16 %v3013
  %v3037 = vunpack.c.l.b16 %v3014
  %v3038 = vunpack.c.l.b16 %v3015
  %v3039 = vpack.c.b16 %v3032, %v3031
  %v3040 = vpack.c.b16 %v3034, %v3033
  %v3041 = vpack.c.b16 %v3036, %v3035
  %v3042 = vpack.c.b16 %v3038, %v3037
  %v3048 = vsel %vm95, %v3007, 0
  %3050 = vmatprep.subr.bf16.mxu0 0
  %3051 = vmatpush1.bf16.msra.mxu0 %v3039
  %3052 = vmatprep.subr.bf16.mxu0 0
  %3053 = vmatpush1.bf16.msra.mxu0 %v3040
  %3054 = vmatprep.subr.bf16.mxu0 0
  %3055 = vmatpush1.bf16.msra.mxu0 %v3041
  %3056 = vmatprep.subr.bf16.mxu0 0
  %3057 = vmatpush1.bf16.msra.mxu0 %v3042
  %3058 = vmatprep.subr.bf16.mxu0 0
  %3059 = vmatpush1.bf16.msra.mxu0 0
  %3060 = vmatprep.subr.bf16.mxu0 0
  %3061 = vmatpush1.bf16.msra.mxu0 0
  %3062 = vmatprep.subr.bf16.mxu0 0
  %3063 = vmatpush1.bf16.msra.mxu0 0
  %3064 = vmatprep.subr.bf16.mxu0 0
  %3065 = vmatpush1.bf16.msra.mxu0 0
  %3066 = vmatprep.subr.bf16.mxu0 0
  %3067 = vmatpush1.bf16.msra.mxu0 0
  %3068 = vmatprep.subr.bf16.mxu0 0
  %3069 = vmatpush1.bf16.msra.mxu0 0
  %3070 = vmatprep.subr.bf16.mxu0 0
  %3071 = vmatpush1.bf16.msra.mxu0 0
  %3072 = vmatprep.subr.bf16.mxu0 0
  %3073 = vmatpush1.bf16.msra.mxu0 0
  %3074 = vmatprep.subr.bf16.mxu0 0
  %3075 = vmatpush1.bf16.msra.mxu0 0
  %3076 = vmatprep.subr.bf16.mxu0 0
  %3077 = vmatpush1.bf16.msra.mxu0 0
  %3078 = vmatprep.subr.bf16.mxu0 0
  %3079 = vmatpush1.bf16.msra.mxu0 0
  %3080 = vmatprep.subr.bf16.mxu0 0
  %3081 = vmatpush1.bf16.msra.mxu0 0
  %3082 = vmatprep.mubr.bf16.mxu0 0
  %3083 = vmatmul.mubr.bf16.gmra.mrb[0].mxu0 %v3048
  %v3084 = vpop.f32.mrb[0].mxu0
  %v3085 = vadd.f32 %v3021, %v3084
  %v3086 = vpop.f32.mrb[0].mxu0
  %v3087 = vpop.f32.mrb[0].mxu0
  %v3088 = vpop.f32.mrb[0].mxu0
  %3089 = vdwg.mxu0
  %v3090 = vtanh.pop %v3085
  %v3091 = vld [vmem:[%s21] sm:$0xf]
  %v3092 = vld [vmem:[%s21 + $0x4] sm:$0xf]
  %v3093 = vld [vmem:[%s21 + $0x8] sm:$0xf]
  %v3094 = vld [vmem:[%s21 + $0xc] sm:$0xf]
  %v3095 = vld [vmem:[%s21 + $0x10] sm:$0xf]
  %v3096 = vld [vmem:[%s21 + $0x14] sm:$0xf]
  %v3097 = vld [vmem:[%s21 + $0x18] sm:$0xf]
  %v3098 = vld [vmem:[%s21 + $0x1c] sm:$0xf]
  %v3099 = vld [vmem:[%s22] sm:$0x1]
  %v3101 = vlaneseq
  %v3102 = vshrl.u32 %v3101, 7
  %v3103 = vsub.s32 0, %v3102
  %v3104 = vrot.slane %v3099, %v3103
  %v3114 = vunpack.c.l.b16 %v3091
  %v3115 = vunpack.c.l.b16 %v3092
  %v3116 = vunpack.c.l.b16 %v3093
  %v3117 = vunpack.c.l.b16 %v3094
  %v3118 = vunpack.c.l.b16 %v3095
  %v3119 = vunpack.c.l.b16 %v3096
  %v3120 = vunpack.c.l.b16 %v3097
  %v3121 = vunpack.c.l.b16 %v3098
  %v3122 = vpack.c.b16 %v3115, %v3114
  %v3123 = vpack.c.b16 %v3117, %v3116
  %v3124 = vpack.c.b16 %v3119, %v3118
  %v3125 = vpack.c.b16 %v3121, %v3120
  %3130 = vmatprep.subr.bf16.mxu0 0
  %3131 = vmatpush1.bf16.msra.mxu0 %v3122
  %3132 = vmatprep.subr.bf16.mxu0 0
  %3133 = vmatpush1.bf16.msra.mxu0 %v3123
  %3134 = vmatprep.subr.bf16.mxu0 0
  %3135 = vmatpush1.bf16.msra.mxu0 %v3124
  %3136 = vmatprep.subr.bf16.mxu0 0
  %3137 = vmatpush1.bf16.msra.mxu0 %v3125
  %3138 = vmatprep.subr.bf16.mxu0 0
  %3139 = vmatpush1.bf16.msra.mxu0 0
  %3140 = vmatprep.subr.bf16.mxu0 0
  %3141 = vmatpush1.bf16.msra.mxu0 0
  %3142 = vmatprep.subr.bf16.mxu0 0
  %3143 = vmatpush1.bf16.msra.mxu0 0
  %3144 = vmatprep.subr.bf16.mxu0 0
  %3145 = vmatpush1.bf16.msra.mxu0 0
  %3146 = vmatprep.subr.bf16.mxu0 0
  %3147 = vmatpush1.bf16.msra.mxu0 0
  %3148 = vmatprep.subr.bf16.mxu0 0
  %3149 = vmatpush1.bf16.msra.mxu0 0
  %3150 = vmatprep.subr.bf16.mxu0 0
  %3151 = vmatpush1.bf16.msra.mxu0 0
  %3152 = vmatprep.subr.bf16.mxu0 0
  %3153 = vmatpush1.bf16.msra.mxu0 0
  %3154 = vmatprep.subr.bf16.mxu0 0
  %3155 = vmatpush1.bf16.msra.mxu0 0
  %3156 = vmatprep.subr.bf16.mxu0 0
  %3157 = vmatpush1.bf16.msra.mxu0 0
  %3158 = vmatprep.subr.bf16.mxu0 0
  %3159 = vmatpush1.bf16.msra.mxu0 0
  %3160 = vmatprep.subr.bf16.mxu0 0
  %3161 = vmatpush1.bf16.msra.mxu0 0
  %3162 = vmatprep.mubr.bf16.mxu0 0
  %3163 = vmatmul.mubr.bf16.gmra.mrb[0].mxu0 %v3048
  %v3164 = vpop.f32.mrb[0].mxu0
  %v3165 = vadd.f32 %v3104, %v3164
  %v3166 = vpop.f32.mrb[0].mxu0
  %v3167 = vpop.f32.mrb[0].mxu0
  %v3168 = vpop.f32.mrb[0].mxu0
  %3169 = vdwg.mxu0
  %v3170 = vpack.c.bf16 %v3090, %v3090
  %v3171 = vld [vmem:[%s23] sm:$0xf]
  %v3172 = vld [vmem:[%s23 + $0x4] sm:$0xf]
  %v3173 = vld [vmem:[%s23 + $0x8] sm:$0xf]
  %v3174 = vld [vmem:[%s23 + $0xc] sm:$0xf]
  %v3175 = vld [vmem:[%s23 + $0x10] sm:$0xf]
  %v3176 = vld [vmem:[%s23 + $0x14] sm:$0xf]
  %v3177 = vld [vmem:[%s23 + $0x18] sm:$0xf]
  %v3178 = vld [vmem:[%s23 + $0x1c] sm:$0xf]
  %v3179 = vld [vmem:[%s24] sm:$0x1]
  %v3181 = vlaneseq
  %v3182 = vshrl.u32 %v3181, 7
  %v3183 = vsub.s32 0, %v3182
  %v3184 = vrot.slane %v3179, %v3183
  %v3194 = vunpack.c.l.b16 %v3171
  %v3195 = vunpack.c.l.b16 %v3172
  %v3196 = vunpack.c.l.b16 %v3173
  %v3197 = vunpack.c.l.b16 %v3174
  %v3198 = vunpack.c.l.b16 %v3175
  %v3199 = vunpack.c.l.b16 %v3176
  %v3200 = vunpack.c.l.b16 %v3177
  %v3201 = vunpack.c.l.b16 %v3178
  %v3202 = vpack.c.b16 %v3195, %v3194
  %v3203 = vpack.c.b16 %v3197, %v3196
  %v3204 = vpack.c.b16 %v3199, %v3198
  %v3205 = vpack.c.b16 %v3201, %v3200
  %v3211 = vsel %vm95, %v3170, 0
  %3213 = vmatprep.subr.bf16.mxu0 0
  %3214 = vmatpush1.bf16.msra.mxu0 %v3202
  %3215 = vmatprep.subr.bf16.mxu0 0
  %3216 = vmatpush1.bf16.msra.mxu0 %v3203
  %3217 = vmatprep.subr.bf16.mxu0 0
  %3218 = vmatpush1.bf16.msra.mxu0 %v3204
  %3219 = vmatprep.subr.bf16.mxu0 0
  %3220 = vmatpush1.bf16.msra.mxu0 %v3205
  %3221 = vmatprep.subr.bf16.mxu0 0
  %3222 = vmatpush1.bf16.msra.mxu0 0
  %3223 = vmatprep.subr.bf16.mxu0 0
  %3224 = vmatpush1.bf16.msra.mxu0 0
  %3225 = vmatprep.subr.bf16.mxu0 0
  %3226 = vmatpush1.bf16.msra.mxu0 0
  %3227 = vmatprep.subr.bf16.mxu0 0
  %3228 = vmatpush1.bf16.msra.mxu0 0
  %3229 = vmatprep.subr.bf16.mxu0 0
  %3230 = vmatpush1.bf16.msra.mxu0 0
  %3231 = vmatprep.subr.bf16.mxu0 0
  %3232 = vmatpush1.bf16.msra.mxu0 0
  %3233 = vmatprep.subr.bf16.mxu0 0
  %3234 = vmatpush1.bf16.msra.mxu0 0
  %3235 = vmatprep.subr.bf16.mxu0 0
  %3236 = vmatpush1.bf16.msra.mxu0 0
  %3237 = vmatprep.subr.bf16.mxu0 0
  %3238 = vmatpush1.bf16.msra.mxu0 0
  %3239 = vmatprep.subr.bf16.mxu0 0
  %3240 = vmatpush1.bf16.msra.mxu0 0
  %3241 = vmatprep.subr.bf16.mxu0 0
  %3242 = vmatpush1.bf16.msra.mxu0 0
  %3243 = vmatprep.subr.bf16.mxu0 0
  %3244 = vmatpush1.bf16.msra.mxu0 0
  %3245 = vmatprep.mubr.bf16.mxu0 0
  %3246 = vmatmul.mubr.bf16.gmra.mrb[0].mxu0 %v3211
  %v3247 = vpop.f32.mrb[0].mxu0
  %v3248 = vadd.f32 %v3184, %v3247
  %v3249 = vpop.f32.mrb[0].mxu0
  %v3250 = vpop.f32.mrb[0].mxu0
  %v3251 = vpop.f32.mrb[0].mxu0
  %3252 = vdwg.mxu0
  %v3253 = vpack.c.bf16 %v3248, %v3248
  %v3254 = vld [vmem:[%s25] sm:$0xf]
  %v3255 = vld [vmem:[%s25 + $0x4] sm:$0xf]
  %v3256 = vld [vmem:[%s25 + $0x8] sm:$0xf]
  %v3257 = vld [vmem:[%s25 + $0xc] sm:$0xf]
  %v3258 = vpack.c.bf16 %v3165, %v3165
  %v3259 = vld [vmem:[%s25 + $0x10] sm:$0xf]
  %v3260 = vld [vmem:[%s25 + $0x14] sm:$0xf]
  %v3261 = vld [vmem:[%s25 + $0x18] sm:$0xf]
  %v3262 = vld [vmem:[%s25 + $0x1c] sm:$0xf]
  %v3267 = vunpack.c.l.b16 %v3259
  %v3268 = vunpack.c.l.b16 %v3260
  %v3269 = vunpack.c.l.b16 %v3261
  %v3270 = vunpack.c.l.b16 %v3262
  %v3271 = vpack.c.b16 %v3268, %v3267
  %v3272 = vpack.c.b16 %v3270, %v3269
  %v3276 = vsel %vm169, %v3258, 0
  %3278 = vmatprep.subr.bf16.mxu0 0
  %3279 = vmatpush1.bf16.msra.mxu0 %v3271
  %3280 = vmatprep.subr.bf16.mxu0 0
  %3281 = vmatpush1.bf16.msra.mxu0 %v3272
  %3282 = vmatprep.subr.bf16.mxu0 0
  %3283 = vmatpush1.bf16.msra.mxu0 0
  %3284 = vmatprep.subr.bf16.mxu0 0
  %3285 = vmatpush1.bf16.msra.mxu0 0
  %3286 = vmatprep.subr.bf16.mxu0 0
  %3287 = vmatpush1.bf16.msra.mxu0 0
  %3288 = vmatprep.subr.bf16.mxu0 0
  %3289 = vmatpush1.bf16.msra.mxu0 0
  %3290 = vmatprep.subr.bf16.mxu0 0
  %3291 = vmatpush1.bf16.msra.mxu0 0
  %3292 = vmatprep.subr.bf16.mxu0 0
  %3293 = vmatpush1.bf16.msra.mxu0 0
  %3294 = vmatprep.subr.bf16.mxu0 0
  %3295 = vmatpush1.bf16.msra.mxu0 0
  %3296 = vmatprep.subr.bf16.mxu0 0
  %3297 = vmatpush1.bf16.msra.mxu0 0
  %3298 = vmatprep.subr.bf16.mxu0 0
  %3299 = vmatpush1.bf16.msra.mxu0 0
  %3300 = vmatprep.subr.bf16.mxu0 0
  %3301 = vmatpush1.bf16.msra.mxu0 0
  %3302 = vmatprep.subr.bf16.mxu0 0
  %3303 = vmatpush1.bf16.msra.mxu0 0
  %3304 = vmatprep.subr.bf16.mxu0 0
  %3305 = vmatpush1.bf16.msra.mxu0 0
  %3306 = vmatprep.subr.bf16.mxu0 0
  %3307 = vmatpush1.bf16.msra.mxu0 0
  %3308 = vmatprep.subr.bf16.mxu0 0
  %3309 = vmatpush1.bf16.msra.mxu0 0
  %3310 = vmatprep.mubr.bf16.mxu0 0
  %3311 = vmatmul.mubr.bf16.gmra.mrb[0].mxu0 %v3276
  %v3312 = vpop.f32.mrb[0].mxu0
  %v3313 = vadd.f32 0.0, %v3312
  %v3314 = vpop.f32.mrb[0].mxu0
  %v3315 = vpop.f32.mrb[0].mxu0
  %v3316 = vpop.f32.mrb[0].mxu0
  %3317 = vdwg.mxu0
  %v3322 = vunpack.c.l.b16 %v3254
  %v3323 = vunpack.c.l.b16 %v3255
  %v3324 = vunpack.c.l.b16 %v3256
  %v3325 = vunpack.c.l.b16 %v3257
  %v3326 = vpack.c.b16 %v3323, %v3322
  %v3327 = vpack.c.b16 %v3325, %v3324
  %v3331 = vsel %vm169, %v3253, 0
  %3333 = vmatprep.subr.bf16.mxu0 0
  %3334 = vmatpush1.bf16.msra.mxu0 %v3326
  %3335 = vmatprep.subr.bf16.mxu0 0
  %3336 = vmatpush1.bf16.msra.mxu0 %v3327
  %3337 = vmatprep.subr.bf16.mxu0 0
  %3338 = vmatpush1.bf16.msra.mxu0 0
  %3339 = vmatprep.subr.bf16.mxu0 0
  %3340 = vmatpush1.bf16.msra.mxu0 0
  %3341 = vmatprep.subr.bf16.mxu0 0
  %3342 = vmatpush1.bf16.msra.mxu0 0
  %3343 = vmatprep.subr.bf16.mxu0 0
  %3344 = vmatpush1.bf16.msra.mxu0 0
  %3345 = vmatprep.subr.bf16.mxu0 0
  %3346 = vmatpush1.bf16.msra.mxu0 0
  %3347 = vmatprep.subr.bf16.mxu0 0
  %3348 = vmatpush1.bf16.msra.mxu0 0
  %3349 = vmatprep.subr.bf16.mxu0 0
  %3350 = vmatpush1.bf16.msra.mxu0 0
  %3351 = vmatprep.subr.bf16.mxu0 0
  %3352 = vmatpush1.bf16.msra.mxu0 0
  %3353 = vmatprep.subr.bf16.mxu0 0
  %3354 = vmatpush1.bf16.msra.mxu0 0
  %3355 = vmatprep.subr.bf16.mxu0 0
  %3356 = vmatpush1.bf16.msra.mxu0 0
  %3357 = vmatprep.subr.bf16.mxu0 0
  %3358 = vmatpush1.bf16.msra.mxu0 0
  %3359 = vmatprep.subr.bf16.mxu0 0
  %3360 = vmatpush1.bf16.msra.mxu0 0
  %3361 = vmatprep.subr.bf16.mxu0 0
  %3362 = vmatpush1.bf16.msra.mxu0 0
  %3363 = vmatprep.subr.bf16.mxu0 0
  %3364 = vmatpush1.bf16.msra.mxu0 0
  %3365 = vmatprep.mubr.bf16.mxu0 0
  %3366 = vmatmul.mubr.bf16.gmra.mrb[0].mxu0 %v3331
  %v3367 = vpop.f32.mrb[0].mxu0
  %v3368 = vadd.f32 %v3313, %v3367
  %v3369 = vpop.f32.mrb[0].mxu0
  %v3370 = vpop.f32.mrb[0].mxu0
  %v3371 = vpop.f32.mrb[0].mxu0
  %3372 = vdwg.mxu0
  %v3373 = vld [vmem:[%s26] sm:$0x1]
  %v3375 = vlaneseq
  %v3376 = vshrl.u32 %v3375, 7
  %v3377 = vsub.s32 0, %v3376
  %v3378 = vrot.slane %v3373, %v3377
  %v3380 = vadd.f32 %v3368, %v3378
  %3382 = vrot.lane.b32.xlu0 %v3248, 16
  %v3383 = vpop.permute.xlu0 %3382
  %3386 = vrot.lane.b32.xlu0 %v3165, 48
  %v3387 = vpop.permute.xlu0 %3386
  %v3389 = vsel %vm375, %v3380, %v3383
  %v3390 = vsel %vm1124, %v3389, %v3387
  %vm3391 = vcmask 654336
  %v3392 = vsel %vm3391, %v3390, 0.0
  %vm3393 = vcmask 1041408
  %v3394 = vsel %vm3393, %v3392, 0.0
  %3395 = vst [vmem:[%s27] sm:$0xff] %v3394
  // Predicated region
  $region110: #{visualbert_classification_forward.1} parent=0 // pred_check
    _
  $region111: #{visualbert_classification_forward.1} parent=0 // pred_check_branch
    %3397 = sbr.rel (0) target = $region113
  $region112: #{visualbert_classification_forward.1} parent=0 // pred_region
    _
  $region113: #{visualbert_classification_forward.1} parent=0 // pred_fallthru
    _
  // Predicated region
  $region114: #{visualbert_classification_forward.1} parent=0 // pred_check
    _
  $region115: #{visualbert_classification_forward.1} parent=0 // pred_check_branch
    %3399 = sbr.rel (0) target = $region117
  $region116: #{visualbert_classification_forward.1} parent=0 // pred_region
    _
  $region117: #{visualbert_classification_forward.1} parent=0 // pred_fallthru
    _

</llo_original>
